<compile_context>
chip_gen: v5e
topology: v5e:2x2
jax: 0.10.0
libtpu: 0.0.40
codegen_flags: <defaults>
</compile_context>

<pallas_src>
import functools

import jax
import jax.numpy as jnp
from jax.experimental import pallas as pl
from jax.experimental.pallas import tpu as pltpu


def _round_up(x, m):
    return ((x + m - 1) // m) * m


def _vmem_limit_bytes(tm, k, n, out_bytes):
    # double-buffered x tiles + double-buffered out tiles + resident weights/bias
    need = 2 * tm * k * 2 + 2 * tm * n * out_bytes + k * n * 2 + 8 * n * 4
    return int(min(max(4 * need, 16 * 1024 * 1024), 48 * 1024 * 1024))


# ---------------------------------------------------------------------------
# Kernel 1: fused matmul + bias (+ ReLU).
#   x:(TM,K) bf16 (pipelined), w:(K,N) bf16 resident, b:(1,N) f32 resident.
# ---------------------------------------------------------------------------
def _linear_kernel(x_ref, w_ref, b_ref, o_ref, *, relu):
    y = jnp.dot(x_ref[...], w_ref[...], preferred_element_type=jnp.float32)
    y = y + b_ref[...]
    if relu:
        y = jnp.maximum(y, 0.0)
    o_ref[...] = y.astype(o_ref.dtype)


def fused_linear(x, w, b, *, relu, out_dtype=jnp.float32, tm_target=512):
    """act(x @ w + b), tiled over rows; weights/bias stay VMEM-resident.

    tm_target=512 is a safe default for all generations; on v5e/v6e (128 MiB
    VMEM) it can be swept up to 1024-2048 rows for large batches.
    """
    M, K = x.shape
    Kw, N = w.shape
    assert K == Kw, (K, Kw)

    grid_m = pl.cdiv(M, tm_target)
    tm = _round_up(pl.cdiv(M, grid_m), 16)        # 16-row aligned (bf16 sublanes)
    Mp = grid_m * tm

    x = x.astype(jnp.bfloat16)
    if Mp != M:
        x = jnp.pad(x, ((0, Mp - M), (0, 0)))     # padded rows sliced off below
    w = w.astype(jnp.bfloat16)
    b2 = b.reshape(1, N).astype(jnp.float32)

    out_bytes = jnp.dtype(out_dtype).itemsize
    out = pl.pallas_call(
        functools.partial(_linear_kernel, relu=relu),
        grid=(grid_m,),
        in_specs=[
            pl.BlockSpec((tm, K), lambda i: (i, 0)),   # row tile (pipelined)
            pl.BlockSpec((K, N), lambda i: (0, 0)),    # weights resident
            pl.BlockSpec((1, N), lambda i: (0, 0)),    # bias resident
        ],
        out_specs=pl.BlockSpec((tm, N), lambda i: (i, 0)),
        out_shape=jax.ShapeDtypeStruct((Mp, N), out_dtype),
        compiler_params=pltpu.CompilerParams(
            dimension_semantics=("parallel",),
            vmem_limit_bytes=_vmem_limit_bytes(tm, K, N, out_bytes),
        ),
    )(x, w, b2)
    return out[:M] if Mp != M else out


# ---------------------------------------------------------------------------
# Kernel 2: fused FC (+ReLU) with the critic head in the epilogue.
#   feats = relu(x @ w_fc + b_fc);  value = sum(feats * w_critic) + b_critic
# ---------------------------------------------------------------------------
def _fc_critic_kernel(x_ref, wf_ref, bf_ref, wc_ref, bc_ref, h_ref, v_ref):
    h = jnp.dot(x_ref[...], wf_ref[...], preferred_element_type=jnp.float32)
    h = jnp.maximum(h + bf_ref[...], 0.0)
    # critic head fused as a VPU multiply + cross-lane row reduction (XLU);
    # avoids a dedicated Nout=1 matmul pallas_call.
    v = jnp.sum(h * wc_ref[...], axis=-1, keepdims=True) + bc_ref[...]
    h_ref[...] = h.astype(h_ref.dtype)
    v_ref[...] = v.astype(v_ref.dtype)


def fused_fc_critic(x, w_fc, b_fc, w_critic, b_critic, *, tm_target=512):
    M, K = x.shape
    _, H = w_fc.shape

    grid_m = pl.cdiv(M, tm_target)
    tm = _round_up(pl.cdiv(M, grid_m), 16)
    Mp = grid_m * tm

    x = x.astype(jnp.bfloat16)
    if Mp != M:
        x = jnp.pad(x, ((0, Mp - M), (0, 0)))

    feats, value = pl.pallas_call(
        _fc_critic_kernel,
        grid=(grid_m,),
        in_specs=[
            pl.BlockSpec((tm, K), lambda i: (i, 0)),   # flattened conv3 rows
            pl.BlockSpec((K, H), lambda i: (0, 0)),    # w_fc resident (bf16)
            pl.BlockSpec((1, H), lambda i: (0, 0)),    # b_fc resident
            pl.BlockSpec((1, H), lambda i: (0, 0)),    # w_critic (as a row)
            pl.BlockSpec((1, 1), lambda i: (0, 0)),    # b_critic
        ],
        out_specs=(
            pl.BlockSpec((tm, H), lambda i: (i, 0)),
            pl.BlockSpec((tm, 1), lambda i: (i, 0)),
        ),
        out_shape=(
            jax.ShapeDtypeStruct((Mp, H), jnp.float32),
            jax.ShapeDtypeStruct((Mp, 1), jnp.float32),
        ),
        compiler_params=pltpu.CompilerParams(
            dimension_semantics=("parallel",),
            vmem_limit_bytes=_vmem_limit_bytes(tm, K, H, 4),
        ),
    )(
        x,
        w_fc.astype(jnp.bfloat16),
        b_fc.reshape(1, H).astype(jnp.float32),
        w_critic.reshape(1, H).astype(jnp.float32),   # (H,1) column -> (1,H) row
        b_critic.reshape(1, 1).astype(jnp.float32),
    )
    if Mp != M:
        feats, value = feats[:M], value[:M]
    return value, feats


# ---------------------------------------------------------------------------
# Conv2d (valid padding, square kernel/stride) = im2col glue + fused matmul.
# ---------------------------------------------------------------------------
def conv2d_relu(x_nhwc, w_flat, b, *, ksize, stride):
    """x_nhwc: (N,H,W,Cin) bf16; w_flat: (ksize*ksize*Cin, Cout), (kh,kw,ci) order."""
    N, H, W, Cin = x_nhwc.shape
    Ho = (H - ksize) // stride + 1
    Wo = (W - ksize) // stride + 1
    cols = []
    for kh in range(ksize):
        for kw in range(ksize):
            cols.append(
                x_nhwc[:, kh:kh + stride * Ho:stride, kw:kw + stride * Wo:stride, :]
            )  # (N, Ho, Wo, Cin)
    patches = jnp.concatenate(cols, axis=-1).reshape(N * Ho * Wo, ksize * ksize * Cin)
    out = fused_linear(patches, w_flat, b, relu=True, out_dtype=jnp.bfloat16)
    return out.reshape(N, Ho, Wo, w_flat.shape[1])


# ---------------------------------------------------------------------------
# Parameters: orthogonal init (gain sqrt(2) for ReLU layers), zero bias —
# matches the init_() scheme of CNNBase.
# ---------------------------------------------------------------------------
def make_params(key, num_inputs, hidden_size):
    relu_gain = 2.0 ** 0.5
    ortho = lambda g: jax.nn.initializers.orthogonal(scale=g)
    k = jax.random.split(key, 5)
    params = {
        # Conv weights stored flat as (kh*kw*Cin, Cout) matching the im2col order.
        # The /255 input normalization of CNNBase.forward is folded into w1.
        "w1": ortho(relu_gain)(k[0], (8 * 8 * num_inputs, 32), jnp.float32) * (1.0 / 255.0),
        "b1": jnp.zeros((32,), jnp.float32),
        "w2": ortho(relu_gain)(k[1], (4 * 4 * 32, 64), jnp.float32),
        "b2": jnp.zeros((64,), jnp.float32),
        "w3": ortho(relu_gain)(k[2], (3 * 3 * 64, 32), jnp.float32),
        "b3": jnp.zeros((32,), jnp.float32),
        # w_fc rows are in NHWC-flatten order of conv3's output (a static row
        # permutation of the PyTorch NCHW-flatten Linear weight), so no
        # transpose is needed between conv3 and the FC.
        "w_fc": ortho(relu_gain)(k[3], (7 * 7 * 32, hidden_size), jnp.float32),
        "b_fc": jnp.zeros((hidden_size,), jnp.float32),
        "w_critic": ortho(1.0)(k[4], (hidden_size, 1), jnp.float32),
        "b_critic": jnp.zeros((1,), jnp.float32),
    }
    return params


# ---------------------------------------------------------------------------
# CNNBase.forward (non-recurrent): returns (critic_value, features, rnn_hxs)
# ---------------------------------------------------------------------------
@jax.jit
def cnn_base_forward(params, inputs_nchw, rnn_hxs, masks):
    # PyTorch conv inputs are NCHW; the kernels use NHWC (channels on lanes).
    x = jnp.transpose(inputs_nchw, (0, 2, 3, 1)).astype(jnp.bfloat16)

    x = conv2d_relu(x, params["w1"], params["b1"], ksize=8, stride=4)   # (N,20,20,32)
    x = conv2d_relu(x, params["w2"], params["b2"], ksize=4, stride=2)   # (N, 9, 9,64)
    x = conv2d_relu(x, params["w3"], params["b3"], ksize=3, stride=1)   # (N, 7, 7,32)

    N = x.shape[0]
    x = x.reshape(N, -1)                                                # NHWC flatten (N, 1568)

    value, feats = fused_fc_critic(
        x, params["w_fc"], params["b_fc"], params["w_critic"], params["b_critic"])

    # recurrent=False: rnn_hxs passes through untouched; masks unused.
    return value, feats, rnn_hxs


if __name__ == "__main__":
    key = jax.random.PRNGKey(0)
    k_in, k_p = jax.random.split(key)

    batch = 2
    num_inputs = 4          # e.g. Atari 4-frame stack
    spatial = 84            # required by Linear(32*7*7, hidden) in the module
    hidden_size = 512

    inputs = jax.random.uniform(
        k_in, (batch, num_inputs, spatial, spatial),
        minval=0.0, maxval=255.0, dtype=jnp.float32)
    # recurrent=False -> recurrent_hidden_state_size == 1; hxs pass through.
    rnn_hxs = jnp.zeros((batch, 1), jnp.float32)
    masks = jnp.ones((batch, 1), jnp.float32)

    params = make_params(k_p, num_inputs, hidden_size)

    value, feats, hxs_out = jax.block_until_ready(
        cnn_base_forward(params, inputs, rnn_hxs, masks))

    assert value.shape == (batch, 1), value.shape
    assert feats.shape == (batch, hidden_size), feats.shape
    assert hxs_out.shape == rnn_hxs.shape
    assert bool(jnp.all(jnp.isfinite(value))) and bool(jnp.all(jnp.isfinite(feats)))
    print("KERNEL_OK")
</pallas_src>

<mosaic_0001>
module attributes {stable_mosaic.version = 11 : i64} {
  func.func @_linear_kernel(%arg0: i32, %arg1: memref<400x256xbf16, #tpu.memory_space<vmem>>, %arg2: memref<256x32xbf16, #tpu.memory_space<vmem>>, %arg3: memref<1x32xf32, #tpu.memory_space<vmem>>, %arg4: memref<400x32xbf16, #tpu.memory_space<vmem>>) attributes {dimension_semantics = [#tpu.dimension_semantics<parallel>], iteration_bounds = array<i64: 2>, scalar_prefetch = 0 : i64, scratch_operands = 0 : i64, tpu.core_type = #tpu.core_type<tc>, window_params = [{transform_indices = @transform_0, window_bounds = array<i64: 400, 256>}, {pipeline_mode = #tpu.pipeline_mode<synchronous>, transform_indices = @transform_1, window_bounds = array<i64: 256, 32>}, {pipeline_mode = #tpu.pipeline_mode<synchronous>, transform_indices = @transform_2, window_bounds = array<i64: 1, 32>}, {transform_indices = @transform_3, window_bounds = array<i64: 400, 32>}]} {
    %c0 = arith.constant 0 : index
    %c0_0 = arith.constant 0 : index
    %0 = vector.load %arg1[%c0, %c0_0] : memref<400x256xbf16, #tpu.memory_space<vmem>>, vector<400x256xbf16>
    %c0_1 = arith.constant 0 : index
    %c0_2 = arith.constant 0 : index
    %1 = vector.load %arg2[%c0_1, %c0_2] : memref<256x32xbf16, #tpu.memory_space<vmem>>, vector<256x32xbf16>
    %cst = arith.constant dense<0.000000e+00> : vector<400x32xf32>
    %2 = tpu.matmul %0, %1, %cst {dimension_numbers = #tpu.dot_dimension_numbers<[1], [0], [0], [1], [0, 0, 1, 1], [], []>} : vector<400x256xbf16>, vector<256x32xbf16>, vector<400x32xf32> -> vector<400x32xf32>
    %c0_3 = arith.constant 0 : index
    %c0_4 = arith.constant 0 : index
    %3 = vector.load %arg3[%c0_3, %c0_4] : memref<1x32xf32, #tpu.memory_space<vmem>>, vector<1x32xf32>
    %4 = vector.broadcast %3 : vector<1x32xf32> to vector<400x32xf32>
    %5 = arith.addf %2, %4 : vector<400x32xf32>
    %cst_5 = arith.constant 0.000000e+00 : f32
    %6 = vector.broadcast %cst_5 : f32 to vector<400x32xf32>
    %7 = arith.maximumf %5, %6 : vector<400x32xf32>
    %8 = arith.truncf %7 : vector<400x32xf32> to vector<400x32xbf16>
    %c0_6 = arith.constant 0 : index
    %c0_7 = arith.constant 0 : index
    %9 = vector.load %arg4[%c0_6, %c0_7] : memref<400x32xbf16, #tpu.memory_space<vmem>>, vector<400x32xbf16>
    tpu.vector_store %arg4[%c0_6, %c0_7], %8 {strides = array<i32>} : memref<400x32xbf16, #tpu.memory_space<vmem>>, vector<400x32xbf16>,
    return
  }
  func.func @transform_0(%arg0: i32) -> (i32, i32) {
    %c0_i32 = arith.constant 0 : i32
    %c0_i32_0 = arith.constant 0 : i32
    return %arg0, %c0_i32 : i32, i32
  }
  func.func @transform_1(%arg0: i32) -> (i32, i32) {
    %c0_i32 = arith.constant 0 : i32
    %c0_i32_0 = arith.constant 0 : i32
    %c0_i32_1 = arith.constant 0 : i32
    return %c0_i32, %c0_i32_0 : i32, i32
  }
  func.func @transform_2(%arg0: i32) -> (i32, i32) {
    %c0_i32 = arith.constant 0 : i32
    %c0_i32_0 = arith.constant 0 : i32
    %c0_i32_1 = arith.constant 0 : i32
    return %c0_i32, %c0_i32_0 : i32, i32
  }
  func.func @transform_3(%arg0: i32) -> (i32, i32) {
    %c0_i32 = arith.constant 0 : i32
    %c0_i32_0 = arith.constant 0 : i32
    return %arg0, %c0_i32 : i32, i32
  }
}

module attributes {stable_mosaic.version = 11 : i64} {
  func.func @_linear_kernel(%arg0: i32, %arg1: memref<176x512xbf16, #tpu.memory_space<vmem>>, %arg2: memref<512x64xbf16, #tpu.memory_space<vmem>>, %arg3: memref<1x64xf32, #tpu.memory_space<vmem>>, %arg4: memref<176x64xbf16, #tpu.memory_space<vmem>>) attributes {dimension_semantics = [#tpu.dimension_semantics<parallel>], iteration_bounds = array<i64: 1>, scalar_prefetch = 0 : i64, scratch_operands = 0 : i64, tpu.core_type = #tpu.core_type<tc>, window_params = [{transform_indices = @transform_0, window_bounds = array<i64: 176, 512>}, {pipeline_mode = #tpu.pipeline_mode<synchronous>, transform_indices = @transform_1, window_bounds = array<i64: 512, 64>}, {pipeline_mode = #tpu.pipeline_mode<synchronous>, transform_indices = @transform_2, window_bounds = array<i64: 1, 64>}, {transform_indices = @transform_3, window_bounds = array<i64: 176, 64>}]} {
    %c0 = arith.constant 0 : index
    %c0_0 = arith.constant 0 : index
    %0 = vector.load %arg1[%c0, %c0_0] : memref<176x512xbf16, #tpu.memory_space<vmem>>, vector<176x512xbf16>
    %c0_1 = arith.constant 0 : index
    %c0_2 = arith.constant 0 : index
    %1 = vector.load %arg2[%c0_1, %c0_2] : memref<512x64xbf16, #tpu.memory_space<vmem>>, vector<512x64xbf16>
    %cst = arith.constant dense<0.000000e+00> : vector<176x64xf32>
    %2 = tpu.matmul %0, %1, %cst {dimension_numbers = #tpu.dot_dimension_numbers<[1], [0], [0], [1], [0, 0, 1, 1], [], []>} : vector<176x512xbf16>, vector<512x64xbf16>, vector<176x64xf32> -> vector<176x64xf32>
    %c0_3 = arith.constant 0 : index
    %c0_4 = arith.constant 0 : index
    %3 = vector.load %arg3[%c0_3, %c0_4] : memref<1x64xf32, #tpu.memory_space<vmem>>, vector<1x64xf32>
    %4 = vector.broadcast %3 : vector<1x64xf32> to vector<176x64xf32>
    %5 = arith.addf %2, %4 : vector<176x64xf32>
    %cst_5 = arith.constant 0.000000e+00 : f32
    %6 = vector.broadcast %cst_5 : f32 to vector<176x64xf32>
    %7 = arith.maximumf %5, %6 : vector<176x64xf32>
    %8 = arith.truncf %7 : vector<176x64xf32> to vector<176x64xbf16>
    %c0_6 = arith.constant 0 : index
    %c0_7 = arith.constant 0 : index
    %9 = vector.load %arg4[%c0_6, %c0_7] : memref<176x64xbf16, #tpu.memory_space<vmem>>, vector<176x64xbf16>
    tpu.vector_store %arg4[%c0_6, %c0_7], %8 {strides = array<i32>} : memref<176x64xbf16, #tpu.memory_space<vmem>>, vector<176x64xbf16>,
    return
  }
  func.func @transform_0(%arg0: i32) -> (i32, i32) {
    %c0_i32 = arith.constant 0 : i32
    %c0_i32_0 = arith.constant 0 : i32
    return %arg0, %c0_i32 : i32, i32
  }
  func.func @transform_1(%arg0: i32) -> (i32, i32) {
    %c0_i32 = arith.constant 0 : i32
    %c0_i32_0 = arith.constant 0 : i32
    %c0_i32_1 = arith.constant 0 : i32
    return %c0_i32, %c0_i32_0 : i32, i32
  }
  func.func @transform_2(%arg0: i32) -> (i32, i32) {
    %c0_i32 = arith.constant 0 : i32
    %c0_i32_0 = arith.constant 0 : i32
    %c0_i32_1 = arith.constant 0 : i32
    return %c0_i32, %c0_i32_0 : i32, i32
  }
  func.func @transform_3(%arg0: i32) -> (i32, i32) {
    %c0_i32 = arith.constant 0 : i32
    %c0_i32_0 = arith.constant 0 : i32
    return %arg0, %c0_i32 : i32, i32
  }
}

module attributes {stable_mosaic.version = 11 : i64} {
  func.func @_linear_kernel(%arg0: i32, %arg1: memref<112x576xbf16, #tpu.memory_space<vmem>>, %arg2: memref<576x32xbf16, #tpu.memory_space<vmem>>, %arg3: memref<1x32xf32, #tpu.memory_space<vmem>>, %arg4: memref<112x32xbf16, #tpu.memory_space<vmem>>) attributes {dimension_semantics = [#tpu.dimension_semantics<parallel>], iteration_bounds = array<i64: 1>, scalar_prefetch = 0 : i64, scratch_operands = 0 : i64, tpu.core_type = #tpu.core_type<tc>, window_params = [{transform_indices = @transform_0, window_bounds = array<i64: 112, 576>}, {pipeline_mode = #tpu.pipeline_mode<synchronous>, transform_indices = @transform_1, window_bounds = array<i64: 576, 32>}, {pipeline_mode = #tpu.pipeline_mode<synchronous>, transform_indices = @transform_2, window_bounds = array<i64: 1, 32>}, {transform_indices = @transform_3, window_bounds = array<i64: 112, 32>}]} {
    %c0 = arith.constant 0 : index
    %c0_0 = arith.constant 0 : index
    %0 = vector.load %arg1[%c0, %c0_0] : memref<112x576xbf16, #tpu.memory_space<vmem>>, vector<112x576xbf16>
    %c0_1 = arith.constant 0 : index
    %c0_2 = arith.constant 0 : index
    %1 = vector.load %arg2[%c0_1, %c0_2] : memref<576x32xbf16, #tpu.memory_space<vmem>>, vector<576x32xbf16>
    %cst = arith.constant dense<0.000000e+00> : vector<112x32xf32>
    %2 = tpu.matmul %0, %1, %cst {dimension_numbers = #tpu.dot_dimension_numbers<[1], [0], [0], [1], [0, 0, 1, 1], [], []>} : vector<112x576xbf16>, vector<576x32xbf16>, vector<112x32xf32> -> vector<112x32xf32>
    %c0_3 = arith.constant 0 : index
    %c0_4 = arith.constant 0 : index
    %3 = vector.load %arg3[%c0_3, %c0_4] : memref<1x32xf32, #tpu.memory_space<vmem>>, vector<1x32xf32>
    %4 = vector.broadcast %3 : vector<1x32xf32> to vector<112x32xf32>
    %5 = arith.addf %2, %4 : vector<112x32xf32>
    %cst_5 = arith.constant 0.000000e+00 : f32
    %6 = vector.broadcast %cst_5 : f32 to vector<112x32xf32>
    %7 = arith.maximumf %5, %6 : vector<112x32xf32>
    %8 = arith.truncf %7 : vector<112x32xf32> to vector<112x32xbf16>
    %c0_6 = arith.constant 0 : index
    %c0_7 = arith.constant 0 : index
    %9 = vector.load %arg4[%c0_6, %c0_7] : memref<112x32xbf16, #tpu.memory_space<vmem>>, vector<112x32xbf16>
    tpu.vector_store %arg4[%c0_6, %c0_7], %8 {strides = array<i32>} : memref<112x32xbf16, #tpu.memory_space<vmem>>, vector<112x32xbf16>,
    return
  }
  func.func @transform_0(%arg0: i32) -> (i32, i32) {
    %c0_i32 = arith.constant 0 : i32
    %c0_i32_0 = arith.constant 0 : i32
    return %arg0, %c0_i32 : i32, i32
  }
  func.func @transform_1(%arg0: i32) -> (i32, i32) {
    %c0_i32 = arith.constant 0 : i32
    %c0_i32_0 = arith.constant 0 : i32
    %c0_i32_1 = arith.constant 0 : i32
    return %c0_i32, %c0_i32_0 : i32, i32
  }
  func.func @transform_2(%arg0: i32) -> (i32, i32) {
    %c0_i32 = arith.constant 0 : i32
    %c0_i32_0 = arith.constant 0 : i32
    %c0_i32_1 = arith.constant 0 : i32
    return %c0_i32, %c0_i32_0 : i32, i32
  }
  func.func @transform_3(%arg0: i32) -> (i32, i32) {
    %c0_i32 = arith.constant 0 : i32
    %c0_i32_0 = arith.constant 0 : i32
    return %arg0, %c0_i32 : i32, i32
  }
}

module attributes {stable_mosaic.version = 11 : i64} {
  func.func @_fc_critic_kernel(%arg0: i32, %arg1: memref<16x1568xbf16, #tpu.memory_space<vmem>>, %arg2: memref<1568x512xbf16, #tpu.memory_space<vmem>>, %arg3: memref<1x512xf32, #tpu.memory_space<vmem>>, %arg4: memref<1x512xf32, #tpu.memory_space<vmem>>, %arg5: memref<1x1xf32, #tpu.memory_space<vmem>>, %arg6: memref<16x512xf32, #tpu.memory_space<vmem>>, %arg7: memref<16x1xf32, #tpu.memory_space<vmem>>) attributes {dimension_semantics = [#tpu.dimension_semantics<parallel>], iteration_bounds = array<i64: 1>, scalar_prefetch = 0 : i64, scratch_operands = 0 : i64, tpu.core_type = #tpu.core_type<tc>, window_params = [{transform_indices = @transform_0, window_bounds = array<i64: 16, 1568>}, {pipeline_mode = #tpu.pipeline_mode<synchronous>, transform_indices = @transform_1, window_bounds = array<i64: 1568, 512>}, {pipeline_mode = #tpu.pipeline_mode<synchronous>, transform_indices = @transform_2, window_bounds = array<i64: 1, 512>}, {pipeline_mode = #tpu.pipeline_mode<synchronous>, transform_indices = @transform_3, window_bounds = array<i64: 1, 512>}, {pipeline_mode = #tpu.pipeline_mode<synchronous>, transform_indices = @transform_4, window_bounds = array<i64: 1, 1>}, {transform_indices = @transform_5, window_bounds = array<i64: 16, 512>}, {transform_indices = @transform_6, window_bounds = array<i64: 16, 1>}]} {
    %c0 = arith.constant 0 : index
    %c0_0 = arith.constant 0 : index
    %0 = vector.load %arg1[%c0, %c0_0] : memref<16x1568xbf16, #tpu.memory_space<vmem>>, vector<16x1568xbf16>
    %c0_1 = arith.constant 0 : index
    %c0_2 = arith.constant 0 : index
    %1 = vector.load %arg2[%c0_1, %c0_2] : memref<1568x512xbf16, #tpu.memory_space<vmem>>, vector<1568x512xbf16>
    %cst = arith.constant dense<0.000000e+00> : vector<16x512xf32>
    %2 = tpu.matmul %0, %1, %cst {dimension_numbers = #tpu.dot_dimension_numbers<[1], [0], [0], [1], [0, 0, 1, 1], [], []>} : vector<16x1568xbf16>, vector<1568x512xbf16>, vector<16x512xf32> -> vector<16x512xf32>
    %c0_3 = arith.constant 0 : index
    %c0_4 = arith.constant 0 : index
    %3 = vector.load %arg3[%c0_3, %c0_4] : memref<1x512xf32, #tpu.memory_space<vmem>>, vector<1x512xf32>
    %4 = vector.broadcast %3 : vector<1x512xf32> to vector<16x512xf32>
    %5 = arith.addf %2, %4 : vector<16x512xf32>
    %cst_5 = arith.constant 0.000000e+00 : f32
    %6 = vector.broadcast %cst_5 : f32 to vector<16x512xf32>
    %7 = arith.maximumf %5, %6 : vector<16x512xf32>
    %c0_6 = arith.constant 0 : index
    %c0_7 = arith.constant 0 : index
    %8 = vector.load %arg4[%c0_6, %c0_7] : memref<1x512xf32, #tpu.memory_space<vmem>>, vector<1x512xf32>
    %9 = vector.broadcast %8 : vector<1x512xf32> to vector<16x512xf32>
    %10 = arith.mulf %7, %9 : vector<16x512xf32>
    %cst_8 = arith.constant dense<0.000000e+00> : vector<16xf32>
    %11 = vector.multi_reduction <add>, %10, %cst_8 [1] : vector<16x512xf32> to vector<16xf32>
    %12 = vector.shape_cast %11 : vector<16xf32> to vector<16x1xf32>
    %c0_9 = arith.constant 0 : index
    %c0_10 = arith.constant 0 : index
    %13 = vector.load %arg5[%c0_9, %c0_10] : memref<1x1xf32, #tpu.memory_space<vmem>>, vector<1x1xf32>
    %14 = vector.broadcast %13 : vector<1x1xf32> to vector<16x1xf32>
    %15 = arith.addf %12, %14 : vector<16x1xf32>
    %c0_11 = arith.constant 0 : index
    %c0_12 = arith.constant 0 : index
    %16 = vector.load %arg6[%c0_11, %c0_12] : memref<16x512xf32, #tpu.memory_space<vmem>>, vector<16x512xf32>
    tpu.vector_store %arg6[%c0_11, %c0_12], %7 {strides = array<i32>} : memref<16x512xf32, #tpu.memory_space<vmem>>, vector<16x512xf32>,
    %c0_13 = arith.constant 0 : index
    %c0_14 = arith.constant 0 : index
    %17 = vector.load %arg7[%c0_13, %c0_14] : memref<16x1xf32, #tpu.memory_space<vmem>>, vector<16x1xf32>
    tpu.vector_store %arg7[%c0_13, %c0_14], %15 {strides = array<i32>} : memref<16x1xf32, #tpu.memory_space<vmem>>, vector<16x1xf32>,
    return
  }
  func.func @transform_0(%arg0: i32) -> (i32, i32) {
    %c0_i32 = arith.constant 0 : i32
    %c0_i32_0 = arith.constant 0 : i32
    return %arg0, %c0_i32 : i32, i32
  }
  func.func @transform_1(%arg0: i32) -> (i32, i32) {
    %c0_i32 = arith.constant 0 : i32
    %c0_i32_0 = arith.constant 0 : i32
    %c0_i32_1 = arith.constant 0 : i32
    return %c0_i32, %c0_i32_0 : i32, i32
  }
  func.func @transform_2(%arg0: i32) -> (i32, i32) {
    %c0_i32 = arith.constant 0 : i32
    %c0_i32_0 = arith.constant 0 : i32
    %c0_i32_1 = arith.constant 0 : i32
    return %c0_i32, %c0_i32_0 : i32, i32
  }
  func.func @transform_3(%arg0: i32) -> (i32, i32) {
    %c0_i32 = arith.constant 0 : i32
    %c0_i32_0 = arith.constant 0 : i32
    %c0_i32_1 = arith.constant 0 : i32
    return %c0_i32, %c0_i32_0 : i32, i32
  }
  func.func @transform_4(%arg0: i32) -> (i32, i32) {
    %c0_i32 = arith.constant 0 : i32
    %c0_i32_0 = arith.constant 0 : i32
    %c0_i32_1 = arith.constant 0 : i32
    return %c0_i32, %c0_i32_0 : i32, i32
  }
  func.func @transform_5(%arg0: i32) -> (i32, i32) {
    %c0_i32 = arith.constant 0 : i32
    %c0_i32_0 = arith.constant 0 : i32
    return %arg0, %c0_i32 : i32, i32
  }
  func.func @transform_6(%arg0: i32) -> (i32, i32) {
    %c0_i32 = arith.constant 0 : i32
    %c0_i32_0 = arith.constant 0 : i32
    return %arg0, %c0_i32 : i32, i32
  }
}

</mosaic_0001>

<llo_original>
// kernel: cnn_base_forward.4
$region0: #{cnn_base_forward.4}
  #allocation0 [shape = 'u32[]', space=smem, size = 0x4, offset = 0x4, fixed_abs, tag = 'smem constant byte address 0x4 - core index']
  #allocation1 [shape = 'u32[72,128]{1,0:T(1,128)}', space=vmem, size = 0x9000, scoped, tag = 'internal scratch']
  %s0 = inlined_call_operand.vmem [shape: bf16[800,256], index: 0, kind: input, shape index: {}]
  %s1 = inlined_call_operand.vmem [shape: bf16[256,32], index: 1, kind: input, shape index: {}]
  %s2 = inlined_call_operand.vmem [shape: f32[1,32], index: 2, kind: input, shape index: {}]
  %s3 = inlined_call_operand.vmem [shape: bf16[800,32], index: 3, kind: output, shape index: {}]
  %s4 = sld [smem:[#allocation0]]
  $region45: #{cnn_base_forward.4} parent=0
    _
  %s6 = ssub.s32 1, %s4
  %s7 = scalar_select 0, %s6, %s4
  loop: start=0, step=1, limit=4
  $region2: #{cnn_base_forward.4} parent=0 // loop_pre_header
    _
  $region3: #{cnn_base_forward.4} parent=0 // loop_header
    %s9 = sphi 0, %s13
    %p10 = scmp.ge.s32.totalorder %s9, 4
    %s19 = sphi 0, %s21
    %s22 = sphi 0, %s19
    %s23 = sphi 0, %s22
    %s39 = sphi 0, %s23
    %s43 = sphi 0, %s43
    %s45 = sphi 0, %s43
    %s46 = sphi 0, %s45
    %s60 = sphi 0, %s46
    %s64 = sphi 0, %s64
    %s66 = sphi 0, %s64
    %s67 = sphi 0, %s66
    %s81 = sphi 0, %s67
    %s87 = sphi 0, %s89
    %s90 = sphi 0, %s87
    %s91 = sphi 0, %s90
    %s107 = sphi 0, %s91
  $region4: #{cnn_base_forward.4} parent=0 // loop_header_branch
    %12 = sbr.rel (%p10) target = $region8
  $region5: #{cnn_base_forward.4} parent=0 // loop_body
    %s14 = ssub.s32 %s9, 1
    %s15 = ssub.s32 %s9, 2
    %s16 = sadd.s32 %s9, 1
    %s17 = ssub.s32 %s9, %s16
    %p18 = scmp.eq.s32.totalorder %s17, 0
    %s20 = sadd.s32 %s19, 1
    %s21 = scalar_select %p18, %s19, %s20
    %p24 = pneg %p18
    %p25 = scmp.eq.s32.totalorder %s9, 1
    %p26 = por %p24, %p25
    %p27 = scmp.ne.s32.totalorder %s19, %s22
    %p28 = scmp.eq.s32.totalorder %s9, 0
    %p29 = por %p27, %p28
    %p30 = scmp.ne.s32.totalorder %s19, %s22
    %p31 = scmp.eq.s32.totalorder %s14, 1
    %p32 = por %p30, %p31
    %p33 = scmp.ne.s32.totalorder %s22, %s23
    %p34 = scmp.eq.s32.totalorder %s14, 0
    %p35 = por %p33, %p34
    %p36 = scmp.ne.s32.totalorder %s22, %s23
    %p37 = scmp.eq.s32.totalorder %s15, 1
    %p38 = por %p36, %p37
    %p40 = scmp.ne.s32.totalorder %s23, %s39
    %p41 = scmp.eq.s32.totalorder %s15, 0
    %p42 = por %p40, %p41
    %s44 = sadd.s32 %s43, 1
    %p47 = scmp.eq.s32.totalorder %s9, 1
    %p48 = scmp.ne.s32.totalorder %s43, %s45
    %p49 = scmp.eq.s32.totalorder %s9, 0
    %p50 = por %p48, %p49
    %p51 = scmp.ne.s32.totalorder %s43, %s45
    %p52 = scmp.eq.s32.totalorder %s14, 1
    %p53 = por %p51, %p52
    %p54 = scmp.ne.s32.totalorder %s45, %s46
    %p55 = scmp.eq.s32.totalorder %s14, 0
    %p56 = por %p54, %p55
    %p57 = scmp.ne.s32.totalorder %s45, %s46
    %p58 = scmp.eq.s32.totalorder %s15, 1
    %p59 = por %p57, %p58
    %p61 = scmp.ne.s32.totalorder %s46, %s60
    %p62 = scmp.eq.s32.totalorder %s15, 0
    %p63 = por %p61, %p62
    %s65 = sadd.s32 %s64, 1
    %p68 = scmp.eq.s32.totalorder %s9, 1
    %p69 = scmp.ne.s32.totalorder %s64, %s66
    %p70 = scmp.eq.s32.totalorder %s9, 0
    %p71 = por %p69, %p70
    %p72 = scmp.ne.s32.totalorder %s64, %s66
    %p73 = scmp.eq.s32.totalorder %s14, 1
    %p74 = por %p72, %p73
    %p75 = scmp.ne.s32.totalorder %s66, %s67
    %p76 = scmp.eq.s32.totalorder %s14, 0
    %p77 = por %p75, %p76
    %p78 = scmp.ne.s32.totalorder %s66, %s67
    %p79 = scmp.eq.s32.totalorder %s15, 1
    %p80 = por %p78, %p79
    %p82 = scmp.ne.s32.totalorder %s67, %s81
    %p83 = scmp.eq.s32.totalorder %s15, 0
    %p84 = por %p82, %p83
    %s85 = ssub.s32 %s9, %s16
    %p86 = scmp.eq.s32.totalorder %s85, 0
    %s88 = sadd.s32 %s87, 1
    %s89 = scalar_select %p86, %s87, %s88
    %p92 = pneg %p86
    %p93 = scmp.eq.s32.totalorder %s9, 1
    %p94 = por %p92, %p93
    %p95 = scmp.ne.s32.totalorder %s87, %s90
    %p96 = scmp.eq.s32.totalorder %s9, 0
    %p97 = por %p95, %p96
    %p98 = scmp.ne.s32.totalorder %s87, %s90
    %p99 = scmp.eq.s32.totalorder %s14, 1
    %p100 = por %p98, %p99
    %p101 = scmp.ne.s32.totalorder %s90, %s91
    %p102 = scmp.eq.s32.totalorder %s14, 0
    %p103 = por %p101, %p102
    %p104 = scmp.ne.s32.totalorder %s90, %s91
    %p105 = scmp.eq.s32.totalorder %s15, 1
    %p106 = por %p104, %p105
    %p108 = scmp.ne.s32.totalorder %s91, %s107
    %p109 = scmp.eq.s32.totalorder %s15, 0
    %p110 = por %p108, %p109
    %p111 = scmp.le.s32.totalorder 1, %s9
    %p112 = scmp.lt.s32.totalorder %s9, 3
    %p113 = pnand %p111, %p112
    %p114 = pneg %p113
    // Predicated region
    $region9: #{cnn_base_forward.4} parent=5 // pred_check
      _
    $region10: #{cnn_base_forward.4} parent=5 // pred_check_branch
      %116 = sbr.rel (%p113) target = $region12
    $region11: #{cnn_base_forward.4} parent=5 // pred_region
      %s117 = ssub.s32 %s9, 1
      // Predicated region
      $region13: #{cnn_base_forward.4} parent=11 // pred_check
        %p118 = pneg %p56
      $region14: #{cnn_base_forward.4} parent=11 // pred_check_branch
        %120 = sbr.rel (%p118) target = $region16
      $region15: #{cnn_base_forward.4} parent=11 // pred_region
        _
      $region16: #{cnn_base_forward.4} parent=11 // pred_fallthru
        _
      // Predicated region
      $region17: #{cnn_base_forward.4} parent=11 // pred_check
        %p121 = pneg %p77
      $region18: #{cnn_base_forward.4} parent=11 // pred_check_branch
        %123 = sbr.rel (%p121) target = $region20
      $region19: #{cnn_base_forward.4} parent=11 // pred_region
        _
      $region20: #{cnn_base_forward.4} parent=11 // pred_fallthru
        _
    $region12: #{cnn_base_forward.4} parent=5 // pred_fallthru
      _
    %p124 = scmp.lt.s32.totalorder %s9, 2
    // Predicated region
    $region21: #{cnn_base_forward.4} parent=5 // pred_check
      %p125 = pneg %p124
    $region22: #{cnn_base_forward.4} parent=5 // pred_check_branch
      %127 = sbr.rel (%p125) target = $region24
    $region23: #{cnn_base_forward.4} parent=5 // pred_region
      // Predicated region
      $region25: #{cnn_base_forward.4} parent=23 // pred_check
        %p128 = pneg %p29
      $region26: #{cnn_base_forward.4} parent=23 // pred_check_branch
        %130 = sbr.rel (%p128) target = $region28
      $region27: #{cnn_base_forward.4} parent=23 // pred_region
        %s131 = smul.u32 50, %s9
        %p132 = scmp.lt.s32.totalorder %s131, 99
        %s133 = scalar_select %p132, %s131, 99
        %s134 = smul.addr %s133, 2
        %s135 = smul.addr %s134, 4
        %s136 = scalar_lea.vmem %s0, %s135
        %s137 = smul.u32 50, %s9
      $region28: #{cnn_base_forward.4} parent=23 // pred_fallthru
        _
    $region24: #{cnn_base_forward.4} parent=5 // pred_fallthru
      _
    %p138 = scmp.le.s32.totalorder 1, %s9
    %p139 = scmp.lt.s32.totalorder %s9, 3
    %p140 = pnand %p138, %p139
    %p141 = pneg %p140
    // Predicated region
    $region29: #{cnn_base_forward.4} parent=5 // pred_check
      _
    $region30: #{cnn_base_forward.4} parent=5 // pred_check_branch
      %143 = sbr.rel (%p140) target = $region32
    $region31: #{cnn_base_forward.4} parent=5 // pred_region
      %s144 = ssub.s32 %s9, 1
      %s145 = smul.u32 50, %s14
      %p146 = scmp.lt.s32.totalorder %s145, 99
      %s147 = scalar_select %p146, %s145, 99
      %s148 = smul.addr %s147, 2
      %s149 = smul.addr %s148, 4
      %s150 = scalar_lea.vmem %s0, %s149
      %p151 = pneg %p35
      %p152 = pneg %p32
      %p153 = pneg %p56
      %p154 = pneg %p53
      %p155 = pneg %p77
      %p156 = pneg %p74
      %p157 = pneg %p103
      %p158 = pneg %p100
      %s159 = smul.u32 50, %s14
      %p160 = scmp.lt.s32.totalorder %s159, 99
      %s161 = scalar_select %p160, %s159, 99
      %s162 = smul.addr %s161, 4
      %s163 = scalar_lea.vmem %s3, %s162
      %s164 = smul.u32 50, %s14
      %p165 = scmp.lt.s32.totalorder %s164, 99
      %s166 = scalar_select %p165, %s164, 99
      %s167 = smul.addr %s166, 2
      %s168 = smul.addr %s167, 4
      %s169 = scalar_lea.vmem %s0, %s168
      %s170 = smul.u32 50, %s14
      %s171 = smul.u32 50, %s14
      %p172 = scmp.lt.s32.totalorder %s171, 99
      %s173 = scalar_select %p172, %s171, 99
      %s174 = smul.addr %s173, 4
      %s175 = scalar_lea.vmem %s3, %s174
      %s176 = smul.u32 50, %s14
      %v177 = vld [vmem:[%s169] sm:$0xff]
      %v178 = vld [vmem:[%s169 + $0x8] sm:$0xff]
      %v179 = vld [vmem:[%s169 + $0x10] sm:$0xff]
      %v180 = vld [vmem:[%s169 + $0x18] sm:$0xff]
      %v181 = vld [vmem:[%s169 + $0x20] sm:$0xff]
      %v182 = vld [vmem:[%s169 + $0x28] sm:$0xff]
      %v183 = vld [vmem:[%s169 + $0x30] sm:$0xff]
      %v184 = vld [vmem:[%s169 + $0x38] sm:$0xff]
      %v185 = vld [vmem:[%s169 + $0x40] sm:$0xff]
      %v186 = vld [vmem:[%s169 + $0x48] sm:$0xff]
      %v187 = vld [vmem:[%s169 + $0x50] sm:$0xff]
      %v188 = vld [vmem:[%s169 + $0x58] sm:$0xff]
      %v189 = vld [vmem:[%s169 + $0x60] sm:$0xff]
      %v190 = vld [vmem:[%s169 + $0x68] sm:$0xff]
      %v191 = vld [vmem:[%s169 + $0x70] sm:$0xff]
      %v192 = vld [vmem:[%s169 + $0x78] sm:$0xff]
      %v193 = vld [vmem:[%s169 + $0x80] sm:$0xff]
      %v194 = vld [vmem:[%s169 + $0x88] sm:$0xff]
      %v195 = vld [vmem:[%s169 + $0x90] sm:$0xff]
      %v196 = vld [vmem:[%s169 + $0x98] sm:$0xff]
      %v197 = vld [vmem:[%s169 + $0xa0] sm:$0xff]
      %v198 = vld [vmem:[%s169 + $0xa8] sm:$0xff]
      %v199 = vld [vmem:[%s169 + $0xb0] sm:$0xff]
      %v200 = vld [vmem:[%s169 + $0xb8] sm:$0xff]
      %v201 = vld [vmem:[%s169 + $0xc0] sm:$0xff]
      %v202 = vld [vmem:[%s169 + $0xc8] sm:$0xff]
      %v203 = vld [vmem:[%s169 + $0xd0] sm:$0xff]
      %v204 = vld [vmem:[%s169 + $0xd8] sm:$0xff]
      %v205 = vld [vmem:[%s169 + $0xe0] sm:$0xff]
      %v206 = vld [vmem:[%s169 + $0xe8] sm:$0xff]
      %v207 = vld [vmem:[%s169 + $0xf0] sm:$0xff]
      %v208 = vld [vmem:[%s169 + $0xf8] sm:$0xff]
      %v209 = vld [vmem:[%s169 + $0x100] sm:$0xff]
      %v210 = vld [vmem:[%s169 + $0x108] sm:$0xff]
      %v211 = vld [vmem:[%s169 + $0x110] sm:$0xff]
      %v212 = vld [vmem:[%s169 + $0x118] sm:$0xff]
      %v213 = vld [vmem:[%s169 + $0x120] sm:$0xff]
      %v214 = vld [vmem:[%s169 + $0x128] sm:$0xff]
      %v215 = vld [vmem:[%s169 + $0x130] sm:$0xff]
      %v216 = vld [vmem:[%s169 + $0x138] sm:$0xff]
      %v217 = vld [vmem:[%s169 + $0x140] sm:$0xff]
      %v218 = vld [vmem:[%s169 + $0x148] sm:$0xff]
      %v219 = vld [vmem:[%s169 + $0x150] sm:$0xff]
      %v220 = vld [vmem:[%s169 + $0x158] sm:$0xff]
      %v221 = vld [vmem:[%s169 + $0x160] sm:$0xff]
      %v222 = vld [vmem:[%s169 + $0x168] sm:$0xff]
      %v223 = vld [vmem:[%s169 + $0x170] sm:$0xff]
      %v224 = vld [vmem:[%s169 + $0x178] sm:$0xff]
      %v225 = vld [vmem:[%s169 + $0x180] sm:$0xff]
      %v226 = vld [vmem:[%s169 + $0x188] sm:$0xff]
      %v227 = vld [vmem:[%s1] sm:$0xf]
      %v228 = vld [vmem:[%s1 + $0x4] sm:$0xf]
      %v229 = vld [vmem:[%s1 + $0x8] sm:$0xf]
      %v230 = vld [vmem:[%s1 + $0xc] sm:$0xf]
      %v231 = vld [vmem:[%s1 + $0x10] sm:$0xf]
      %v232 = vld [vmem:[%s1 + $0x14] sm:$0xf]
      %v233 = vld [vmem:[%s1 + $0x18] sm:$0xf]
      %v234 = vld [vmem:[%s1 + $0x1c] sm:$0xf]
      %v235 = vld [vmem:[%s1 + $0x20] sm:$0xf]
      %v236 = vld [vmem:[%s1 + $0x24] sm:$0xf]
      %v237 = vld [vmem:[%s1 + $0x28] sm:$0xf]
      %v238 = vld [vmem:[%s1 + $0x2c] sm:$0xf]
      %v239 = vld [vmem:[%s1 + $0x30] sm:$0xf]
      %v240 = vld [vmem:[%s1 + $0x34] sm:$0xf]
      %v241 = vld [vmem:[%s1 + $0x38] sm:$0xf]
      %v242 = vld [vmem:[%s1 + $0x3c] sm:$0xf]
      %v243 = vld [vmem:[%s1 + $0x40] sm:$0xf]
      %v244 = vld [vmem:[%s1 + $0x44] sm:$0xf]
      %v245 = vld [vmem:[%s1 + $0x48] sm:$0xf]
      %v246 = vld [vmem:[%s1 + $0x4c] sm:$0xf]
      %v247 = vld [vmem:[%s1 + $0x50] sm:$0xf]
      %v248 = vld [vmem:[%s1 + $0x54] sm:$0xf]
      %v249 = vld [vmem:[%s1 + $0x58] sm:$0xf]
      %v250 = vld [vmem:[%s1 + $0x5c] sm:$0xf]
      %v251 = vld [vmem:[%s1 + $0x60] sm:$0xf]
      %v252 = vld [vmem:[%s1 + $0x64] sm:$0xf]
      %v253 = vld [vmem:[%s1 + $0x68] sm:$0xf]
      %v254 = vld [vmem:[%s1 + $0x6c] sm:$0xf]
      %v255 = vld [vmem:[%s1 + $0x70] sm:$0xf]
      %v256 = vld [vmem:[%s1 + $0x74] sm:$0xf]
      %v257 = vld [vmem:[%s1 + $0x78] sm:$0xf]
      %v258 = vld [vmem:[%s1 + $0x7c] sm:$0xf]
      %v259 = vld [vmem:[%s2] sm:$0x1]
      %v261 = vperm.slane %v259, 0
      %v313 = vunpack.c.l.b16 %v177
      %v314 = vunpack.c.h.b16 %v177
      %v315 = vunpack.c.l.b16 %v178
      %v316 = vunpack.c.h.b16 %v178
      %v317 = vunpack.c.l.b16 %v179
      %v318 = vunpack.c.h.b16 %v179
      %v319 = vunpack.c.l.b16 %v180
      %v320 = vunpack.c.h.b16 %v180
      %v321 = vunpack.c.l.b16 %v181
      %v322 = vunpack.c.h.b16 %v181
      %v323 = vunpack.c.l.b16 %v182
      %v324 = vunpack.c.h.b16 %v182
      %v325 = vunpack.c.l.b16 %v183
      %v326 = vunpack.c.h.b16 %v183
      %v327 = vunpack.c.l.b16 %v184
      %v328 = vunpack.c.h.b16 %v184
      %v329 = vunpack.c.l.b16 %v185
      %v330 = vunpack.c.h.b16 %v185
      %v331 = vunpack.c.l.b16 %v186
      %v332 = vunpack.c.h.b16 %v186
      %v333 = vunpack.c.l.b16 %v187
      %v334 = vunpack.c.h.b16 %v187
      %v335 = vunpack.c.l.b16 %v188
      %v336 = vunpack.c.h.b16 %v188
      %v337 = vunpack.c.l.b16 %v189
      %v338 = vunpack.c.h.b16 %v189
      %v339 = vunpack.c.l.b16 %v190
      %v340 = vunpack.c.h.b16 %v190
      %v341 = vunpack.c.l.b16 %v191
      %v342 = vunpack.c.h.b16 %v191
      %v343 = vunpack.c.l.b16 %v192
      %v344 = vunpack.c.h.b16 %v192
      %v345 = vunpack.c.l.b16 %v193
      %v346 = vunpack.c.h.b16 %v193
      %v347 = vunpack.c.l.b16 %v194
      %v348 = vunpack.c.h.b16 %v194
      %v349 = vunpack.c.l.b16 %v195
      %v350 = vunpack.c.h.b16 %v195
      %v351 = vunpack.c.l.b16 %v196
      %v352 = vunpack.c.h.b16 %v196
      %v353 = vunpack.c.l.b16 %v197
      %v354 = vunpack.c.h.b16 %v197
      %v355 = vunpack.c.l.b16 %v198
      %v356 = vunpack.c.h.b16 %v198
      %v357 = vunpack.c.l.b16 %v199
      %v358 = vunpack.c.h.b16 %v199
      %v359 = vunpack.c.l.b16 %v200
      %v360 = vunpack.c.h.b16 %v200
      %v361 = vunpack.c.l.b16 %v201
      %v362 = vunpack.c.h.b16 %v201
      %v363 = vunpack.c.l.b16 %v202
      %v364 = vunpack.c.h.b16 %v202
      %v365 = vunpack.c.l.b16 %v203
      %v366 = vunpack.c.h.b16 %v203
      %v367 = vunpack.c.l.b16 %v204
      %v368 = vunpack.c.h.b16 %v204
      %v369 = vunpack.c.l.b16 %v205
      %v370 = vunpack.c.h.b16 %v205
      %v371 = vunpack.c.l.b16 %v206
      %v372 = vunpack.c.h.b16 %v206
      %v373 = vunpack.c.l.b16 %v207
      %v374 = vunpack.c.h.b16 %v207
      %v375 = vunpack.c.l.b16 %v208
      %v376 = vunpack.c.h.b16 %v208
      %v377 = vunpack.c.l.b16 %v209
      %v378 = vunpack.c.h.b16 %v209
      %v379 = vunpack.c.l.b16 %v210
      %v380 = vunpack.c.h.b16 %v210
      %v381 = vunpack.c.l.b16 %v211
      %v382 = vunpack.c.h.b16 %v211
      %v383 = vunpack.c.l.b16 %v212
      %v384 = vunpack.c.h.b16 %v212
      %v385 = vunpack.c.l.b16 %v213
      %v386 = vunpack.c.h.b16 %v213
      %v387 = vunpack.c.l.b16 %v214
      %v388 = vunpack.c.h.b16 %v214
      %v389 = vunpack.c.l.b16 %v215
      %v390 = vunpack.c.h.b16 %v215
      %v391 = vunpack.c.l.b16 %v216
      %v392 = vunpack.c.h.b16 %v216
      %v393 = vunpack.c.l.b16 %v217
      %v394 = vunpack.c.h.b16 %v217
      %v395 = vunpack.c.l.b16 %v218
      %v396 = vunpack.c.h.b16 %v218
      %v397 = vunpack.c.l.b16 %v219
      %v398 = vunpack.c.h.b16 %v219
      %v399 = vunpack.c.l.b16 %v220
      %v400 = vunpack.c.h.b16 %v220
      %v401 = vunpack.c.l.b16 %v221
      %v402 = vunpack.c.h.b16 %v221
      %v403 = vunpack.c.l.b16 %v222
      %v404 = vunpack.c.h.b16 %v222
      %v405 = vunpack.c.l.b16 %v223
      %v406 = vunpack.c.h.b16 %v223
      %v407 = vunpack.c.l.b16 %v224
      %v408 = vunpack.c.h.b16 %v224
      %v409 = vunpack.c.l.b16 %v225
      %v410 = vunpack.c.h.b16 %v225
      %v411 = vunpack.c.l.b16 %v226
      %v412 = vunpack.c.h.b16 %v226
      %v413 = vpack.c.b16 %v315, %v313
      %v414 = vpack.c.b16 %v316, %v314
      %v415 = vpack.c.b16 %v319, %v317
      %v416 = vpack.c.b16 %v320, %v318
      %v417 = vpack.c.b16 %v323, %v321
      %v418 = vpack.c.b16 %v324, %v322
      %v419 = vpack.c.b16 %v327, %v325
      %v420 = vpack.c.b16 %v328, %v326
      %v421 = vpack.c.b16 %v331, %v329
      %v422 = vpack.c.b16 %v332, %v330
      %v423 = vpack.c.b16 %v335, %v333
      %v424 = vpack.c.b16 %v336, %v334
      %v425 = vpack.c.b16 %v339, %v337
      %v426 = vpack.c.b16 %v340, %v338
      %v427 = vpack.c.b16 %v343, %v341
      %v428 = vpack.c.b16 %v344, %v342
      %v429 = vpack.c.b16 %v347, %v345
      %v430 = vpack.c.b16 %v348, %v346
      %v431 = vpack.c.b16 %v351, %v349
      %v432 = vpack.c.b16 %v352, %v350
      %v433 = vpack.c.b16 %v355, %v353
      %v434 = vpack.c.b16 %v356, %v354
      %v435 = vpack.c.b16 %v359, %v357
      %v436 = vpack.c.b16 %v360, %v358
      %v437 = vpack.c.b16 %v363, %v361
      %v438 = vpack.c.b16 %v364, %v362
      %v439 = vpack.c.b16 %v367, %v365
      %v440 = vpack.c.b16 %v368, %v366
      %v441 = vpack.c.b16 %v371, %v369
      %v442 = vpack.c.b16 %v372, %v370
      %v443 = vpack.c.b16 %v375, %v373
      %v444 = vpack.c.b16 %v376, %v374
      %v445 = vpack.c.b16 %v379, %v377
      %v446 = vpack.c.b16 %v380, %v378
      %v447 = vpack.c.b16 %v383, %v381
      %v448 = vpack.c.b16 %v384, %v382
      %v449 = vpack.c.b16 %v387, %v385
      %v450 = vpack.c.b16 %v388, %v386
      %v451 = vpack.c.b16 %v391, %v389
      %v452 = vpack.c.b16 %v392, %v390
      %v453 = vpack.c.b16 %v395, %v393
      %v454 = vpack.c.b16 %v396, %v394
      %v455 = vpack.c.b16 %v399, %v397
      %v456 = vpack.c.b16 %v400, %v398
      %v457 = vpack.c.b16 %v403, %v401
      %v458 = vpack.c.b16 %v404, %v402
      %v459 = vpack.c.b16 %v407, %v405
      %v460 = vpack.c.b16 %v408, %v406
      %v461 = vpack.c.b16 %v411, %v409
      %v462 = vpack.c.b16 %v412, %v410
      %v545 = vunpack.c.l.b16 %v227
      %v546 = vunpack.c.l.b16 %v228
      %v547 = vunpack.c.l.b16 %v229
      %v548 = vunpack.c.l.b16 %v230
      %v549 = vunpack.c.l.b16 %v231
      %v550 = vunpack.c.l.b16 %v232
      %v551 = vunpack.c.l.b16 %v233
      %v552 = vunpack.c.l.b16 %v234
      %v553 = vunpack.c.l.b16 %v235
      %v554 = vunpack.c.l.b16 %v236
      %v555 = vunpack.c.l.b16 %v237
      %v556 = vunpack.c.l.b16 %v238
      %v557 = vunpack.c.l.b16 %v239
      %v558 = vunpack.c.l.b16 %v240
      %v559 = vunpack.c.l.b16 %v241
      %v560 = vunpack.c.l.b16 %v242
      %v561 = vunpack.c.l.b16 %v243
      %v562 = vunpack.c.l.b16 %v244
      %v563 = vunpack.c.l.b16 %v245
      %v564 = vunpack.c.l.b16 %v246
      %v565 = vunpack.c.l.b16 %v247
      %v566 = vunpack.c.l.b16 %v248
      %v567 = vunpack.c.l.b16 %v249
      %v568 = vunpack.c.l.b16 %v250
      %v569 = vunpack.c.l.b16 %v251
      %v570 = vunpack.c.l.b16 %v252
      %v571 = vunpack.c.l.b16 %v253
      %v572 = vunpack.c.l.b16 %v254
      %v573 = vunpack.c.l.b16 %v255
      %v574 = vunpack.c.l.b16 %v256
      %v575 = vunpack.c.l.b16 %v257
      %v576 = vunpack.c.l.b16 %v258
      %v577 = vpack.c.b16 %v546, %v545
      %v578 = vpack.c.b16 %v548, %v547
      %v579 = vpack.c.b16 %v550, %v549
      %v580 = vpack.c.b16 %v552, %v551
      %v581 = vpack.c.b16 %v554, %v553
      %v582 = vpack.c.b16 %v556, %v555
      %v583 = vpack.c.b16 %v558, %v557
      %v584 = vpack.c.b16 %v560, %v559
      %v585 = vpack.c.b16 %v562, %v561
      %v586 = vpack.c.b16 %v564, %v563
      %v587 = vpack.c.b16 %v566, %v565
      %v588 = vpack.c.b16 %v568, %v567
      %v589 = vpack.c.b16 %v570, %v569
      %v590 = vpack.c.b16 %v572, %v571
      %v591 = vpack.c.b16 %v574, %v573
      %v592 = vpack.c.b16 %v576, %v575
      %609 = vmatpush.bf16.msra.mxu0 %v584
      %610 = vmatpush.bf16.msra.mxu0 %v583
      %611 = vmatpush.bf16.msra.mxu0 %v582
      %612 = vmatpush.bf16.msra.mxu0 %v581
      %613 = vmatpush.bf16.msra.mxu0 %v580
      %614 = vmatpush.bf16.msra.mxu0 %v579
      %615 = vmatpush.bf16.msra.mxu0 %v578
      %616 = vmatpush.bf16.msra.mxu0 %v577
      %617 = vmatmul.bf16.gmra.mxu0 %v413
      %v618 = vpop.f32.mrf.mxu0
      %v619 = vadd.f32 %v261, %v618
      %v620 = vpop.f32.mrf.mxu0
      %v621 = vadd.f32 %v261, %v620
      %622 = vmatmul.bf16.gmra.mxu0 %v415
      %v623 = vpop.f32.mrf.mxu0
      %v624 = vadd.f32 %v261, %v623
      %v625 = vpop.f32.mrf.mxu0
      %v626 = vadd.f32 %v261, %v625
      %627 = vmatmul.bf16.gmra.mxu0 %v417
      %v628 = vpop.f32.mrf.mxu0
      %v629 = vadd.f32 %v261, %v628
      %v630 = vpop.f32.mrf.mxu0
      %v631 = vadd.f32 %v261, %v630
      %632 = vmatmul.bf16.gmra.mxu0 %v419
      %v633 = vpop.f32.mrf.mxu0
      %v634 = vadd.f32 %v261, %v633
      %v635 = vpop.f32.mrf.mxu0
      %v636 = vadd.f32 %v261, %v635
      %637 = vmatmul.bf16.gmra.mxu0 %v421
      %v638 = vpop.f32.mrf.mxu0
      %v639 = vadd.f32 %v261, %v638
      %v640 = vpop.f32.mrf.mxu0
      %v641 = vadd.f32 %v261, %v640
      %642 = vmatmul.bf16.gmra.mxu0 %v423
      %v643 = vpop.f32.mrf.mxu0
      %v644 = vadd.f32 %v261, %v643
      %v645 = vpop.f32.mrf.mxu0
      %v646 = vadd.f32 %v261, %v645
      %647 = vmatmul.bf16.gmra.mxu0 %v425
      %v648 = vpop.f32.mrf.mxu0
      %v649 = vadd.f32 %v261, %v648
      %v650 = vpop.f32.mrf.mxu0
      %v651 = vadd.f32 %v261, %v650
      %652 = vmatmul.bf16.gmra.mxu0 %v427
      %v653 = vpop.f32.mrf.mxu0
      %v654 = vadd.f32 %v261, %v653
      %v655 = vpop.f32.mrf.mxu0
      %v656 = vadd.f32 %v261, %v655
      %657 = vmatmul.bf16.gmra.mxu0 %v429
      %v658 = vpop.f32.mrf.mxu0
      %v659 = vadd.f32 %v261, %v658
      %v660 = vpop.f32.mrf.mxu0
      %v661 = vadd.f32 %v261, %v660
      %662 = vmatmul.bf16.gmra.mxu0 %v431
      %v663 = vpop.f32.mrf.mxu0
      %v664 = vadd.f32 %v261, %v663
      %v665 = vpop.f32.mrf.mxu0
      %v666 = vadd.f32 %v261, %v665
      %667 = vmatmul.bf16.gmra.mxu0 %v433
      %v668 = vpop.f32.mrf.mxu0
      %v669 = vadd.f32 %v261, %v668
      %v670 = vpop.f32.mrf.mxu0
      %v671 = vadd.f32 %v261, %v670
      %672 = vmatmul.bf16.gmra.mxu0 %v435
      %v673 = vpop.f32.mrf.mxu0
      %v674 = vadd.f32 %v261, %v673
      %v675 = vpop.f32.mrf.mxu0
      %v676 = vadd.f32 %v261, %v675
      %677 = vmatmul.bf16.gmra.mxu0 %v437
      %v678 = vpop.f32.mrf.mxu0
      %v679 = vadd.f32 %v261, %v678
      %v680 = vpop.f32.mrf.mxu0
      %v681 = vadd.f32 %v261, %v680
      %682 = vmatmul.bf16.gmra.mxu0 %v439
      %v683 = vpop.f32.mrf.mxu0
      %v684 = vadd.f32 %v261, %v683
      %v685 = vpop.f32.mrf.mxu0
      %v686 = vadd.f32 %v261, %v685
      %687 = vmatmul.bf16.gmra.mxu0 %v441
      %v688 = vpop.f32.mrf.mxu0
      %v689 = vadd.f32 %v261, %v688
      %v690 = vpop.f32.mrf.mxu0
      %v691 = vadd.f32 %v261, %v690
      %692 = vmatmul.bf16.gmra.mxu0 %v443
      %v693 = vpop.f32.mrf.mxu0
      %v694 = vadd.f32 %v261, %v693
      %v695 = vpop.f32.mrf.mxu0
      %v696 = vadd.f32 %v261, %v695
      %697 = vmatmul.bf16.gmra.mxu0 %v445
      %v698 = vpop.f32.mrf.mxu0
      %v699 = vadd.f32 %v261, %v698
      %v700 = vpop.f32.mrf.mxu0
      %v701 = vadd.f32 %v261, %v700
      %702 = vmatmul.bf16.gmra.mxu0 %v447
      %v703 = vpop.f32.mrf.mxu0
      %v704 = vadd.f32 %v261, %v703
      %v705 = vpop.f32.mrf.mxu0
      %v706 = vadd.f32 %v261, %v705
      %707 = vmatmul.bf16.gmra.mxu0 %v449
      %v708 = vpop.f32.mrf.mxu0
      %v709 = vadd.f32 %v261, %v708
      %v710 = vpop.f32.mrf.mxu0
      %v711 = vadd.f32 %v261, %v710
      %712 = vmatmul.bf16.gmra.mxu0 %v451
      %v713 = vpop.f32.mrf.mxu0
      %v714 = vadd.f32 %v261, %v713
      %v715 = vpop.f32.mrf.mxu0
      %v716 = vadd.f32 %v261, %v715
      %717 = vmatmul.bf16.gmra.mxu0 %v453
      %v718 = vpop.f32.mrf.mxu0
      %v719 = vadd.f32 %v261, %v718
      %v720 = vpop.f32.mrf.mxu0
      %v721 = vadd.f32 %v261, %v720
      %722 = vmatmul.bf16.gmra.mxu0 %v455
      %v723 = vpop.f32.mrf.mxu0
      %v724 = vadd.f32 %v261, %v723
      %v725 = vpop.f32.mrf.mxu0
      %v726 = vadd.f32 %v261, %v725
      %727 = vmatmul.bf16.gmra.mxu0 %v457
      %v728 = vpop.f32.mrf.mxu0
      %v729 = vadd.f32 %v261, %v728
      %v730 = vpop.f32.mrf.mxu0
      %v731 = vadd.f32 %v261, %v730
      %732 = vmatmul.bf16.gmra.mxu0 %v459
      %v733 = vpop.f32.mrf.mxu0
      %v734 = vadd.f32 %v261, %v733
      %v735 = vpop.f32.mrf.mxu0
      %v736 = vadd.f32 %v261, %v735
      %737 = vmatmul.bf16.gmra.mxu0 %v461
      %v738 = vpop.f32.mrf.mxu0
      %v739 = vadd.f32 %v261, %v738
      %v740 = vpop.f32.mrf.mxu0
      %v741 = vadd.f32 %v261, %v740
      %742 = vdwg.mxu0
      %743 = vmatpush.bf16.msra.mxu0 %v592
      %744 = vmatpush.bf16.msra.mxu0 %v591
      %745 = vmatpush.bf16.msra.mxu0 %v590
      %746 = vmatpush.bf16.msra.mxu0 %v589
      %747 = vmatpush.bf16.msra.mxu0 %v588
      %748 = vmatpush.bf16.msra.mxu0 %v587
      %749 = vmatpush.bf16.msra.mxu0 %v586
      %750 = vmatpush.bf16.msra.mxu0 %v585
      %751 = vmatmul.bf16.gmra.mxu0 %v414
      %v752 = vpop.f32.mrf.mxu0
      %v753 = vadd.f32 %v619, %v752
      %v754 = vpop.f32.mrf.mxu0
      %v755 = vadd.f32 %v621, %v754
      %756 = vmatmul.bf16.gmra.mxu0 %v416
      %v757 = vpop.f32.mrf.mxu0
      %v758 = vadd.f32 %v624, %v757
      %v759 = vpop.f32.mrf.mxu0
      %v760 = vadd.f32 %v626, %v759
      %761 = vmatmul.bf16.gmra.mxu0 %v418
      %v762 = vpop.f32.mrf.mxu0
      %v763 = vadd.f32 %v629, %v762
      %v764 = vpop.f32.mrf.mxu0
      %v765 = vadd.f32 %v631, %v764
      %766 = vmatmul.bf16.gmra.mxu0 %v420
      %v767 = vpop.f32.mrf.mxu0
      %v768 = vadd.f32 %v634, %v767
      %v769 = vpop.f32.mrf.mxu0
      %v770 = vadd.f32 %v636, %v769
      %771 = vmatmul.bf16.gmra.mxu0 %v422
      %v772 = vpop.f32.mrf.mxu0
      %v773 = vadd.f32 %v639, %v772
      %v774 = vpop.f32.mrf.mxu0
      %v775 = vadd.f32 %v641, %v774
      %776 = vmatmul.bf16.gmra.mxu0 %v424
      %v777 = vpop.f32.mrf.mxu0
      %v778 = vadd.f32 %v644, %v777
      %v779 = vpop.f32.mrf.mxu0
      %v780 = vadd.f32 %v646, %v779
      %781 = vmatmul.bf16.gmra.mxu0 %v426
      %v782 = vpop.f32.mrf.mxu0
      %v783 = vadd.f32 %v649, %v782
      %v784 = vpop.f32.mrf.mxu0
      %v785 = vadd.f32 %v651, %v784
      %786 = vmatmul.bf16.gmra.mxu0 %v428
      %v787 = vpop.f32.mrf.mxu0
      %v788 = vadd.f32 %v654, %v787
      %v789 = vpop.f32.mrf.mxu0
      %v790 = vadd.f32 %v656, %v789
      %791 = vmatmul.bf16.gmra.mxu0 %v430
      %v792 = vpop.f32.mrf.mxu0
      %v793 = vadd.f32 %v659, %v792
      %v794 = vpop.f32.mrf.mxu0
      %v795 = vadd.f32 %v661, %v794
      %796 = vmatmul.bf16.gmra.mxu0 %v432
      %v797 = vpop.f32.mrf.mxu0
      %v798 = vadd.f32 %v664, %v797
      %v799 = vpop.f32.mrf.mxu0
      %v800 = vadd.f32 %v666, %v799
      %801 = vmatmul.bf16.gmra.mxu0 %v434
      %v802 = vpop.f32.mrf.mxu0
      %v803 = vadd.f32 %v669, %v802
      %v804 = vpop.f32.mrf.mxu0
      %v805 = vadd.f32 %v671, %v804
      %806 = vmatmul.bf16.gmra.mxu0 %v436
      %v807 = vpop.f32.mrf.mxu0
      %v808 = vadd.f32 %v674, %v807
      %v809 = vpop.f32.mrf.mxu0
      %v810 = vadd.f32 %v676, %v809
      %811 = vmatmul.bf16.gmra.mxu0 %v438
      %v812 = vpop.f32.mrf.mxu0
      %v813 = vadd.f32 %v679, %v812
      %v814 = vpop.f32.mrf.mxu0
      %v815 = vadd.f32 %v681, %v814
      %816 = vmatmul.bf16.gmra.mxu0 %v440
      %v817 = vpop.f32.mrf.mxu0
      %v818 = vadd.f32 %v684, %v817
      %v819 = vpop.f32.mrf.mxu0
      %v820 = vadd.f32 %v686, %v819
      %821 = vmatmul.bf16.gmra.mxu0 %v442
      %v822 = vpop.f32.mrf.mxu0
      %v823 = vadd.f32 %v689, %v822
      %v824 = vpop.f32.mrf.mxu0
      %v825 = vadd.f32 %v691, %v824
      %826 = vmatmul.bf16.gmra.mxu0 %v444
      %v827 = vpop.f32.mrf.mxu0
      %v828 = vadd.f32 %v694, %v827
      %v829 = vpop.f32.mrf.mxu0
      %v830 = vadd.f32 %v696, %v829
      %831 = vmatmul.bf16.gmra.mxu0 %v446
      %v832 = vpop.f32.mrf.mxu0
      %v833 = vadd.f32 %v699, %v832
      %v834 = vpop.f32.mrf.mxu0
      %v835 = vadd.f32 %v701, %v834
      %836 = vmatmul.bf16.gmra.mxu0 %v448
      %v837 = vpop.f32.mrf.mxu0
      %v838 = vadd.f32 %v704, %v837
      %v839 = vpop.f32.mrf.mxu0
      %v840 = vadd.f32 %v706, %v839
      %841 = vmatmul.bf16.gmra.mxu0 %v450
      %v842 = vpop.f32.mrf.mxu0
      %v843 = vadd.f32 %v709, %v842
      %v844 = vpop.f32.mrf.mxu0
      %v845 = vadd.f32 %v711, %v844
      %846 = vmatmul.bf16.gmra.mxu0 %v452
      %v847 = vpop.f32.mrf.mxu0
      %v848 = vadd.f32 %v714, %v847
      %v849 = vpop.f32.mrf.mxu0
      %v850 = vadd.f32 %v716, %v849
      %851 = vmatmul.bf16.gmra.mxu0 %v454
      %v852 = vpop.f32.mrf.mxu0
      %v853 = vadd.f32 %v719, %v852
      %v854 = vpop.f32.mrf.mxu0
      %v855 = vadd.f32 %v721, %v854
      %856 = vmatmul.bf16.gmra.mxu0 %v456
      %v857 = vpop.f32.mrf.mxu0
      %v858 = vadd.f32 %v724, %v857
      %v859 = vpop.f32.mrf.mxu0
      %v860 = vadd.f32 %v726, %v859
      %861 = vmatmul.bf16.gmra.mxu0 %v458
      %v862 = vpop.f32.mrf.mxu0
      %v863 = vadd.f32 %v729, %v862
      %v864 = vpop.f32.mrf.mxu0
      %v865 = vadd.f32 %v731, %v864
      %866 = vmatmul.bf16.gmra.mxu0 %v460
      %v867 = vpop.f32.mrf.mxu0
      %v868 = vadd.f32 %v734, %v867
      %v869 = vpop.f32.mrf.mxu0
      %v870 = vadd.f32 %v736, %v869
      %871 = vmatmul.bf16.gmra.mxu0 %v462
      %v872 = vpop.f32.mrf.mxu0
      %v873 = vadd.f32 %v739, %v872
      %v874 = vpop.f32.mrf.mxu0
      %v875 = vadd.f32 %v741, %v874
      %876 = vdwg.mxu0
      %v877 = vmax.f32 %v753, 0.0
      %v878 = vmax.f32 %v755, 0.0
      %v879 = vmax.f32 %v758, 0.0
      %v880 = vmax.f32 %v760, 0.0
      %v881 = vmax.f32 %v763, 0.0
      %v882 = vmax.f32 %v765, 0.0
      %v883 = vmax.f32 %v768, 0.0
      %v884 = vmax.f32 %v770, 0.0
      %v885 = vmax.f32 %v773, 0.0
      %v886 = vmax.f32 %v775, 0.0
      %v887 = vmax.f32 %v778, 0.0
      %v888 = vmax.f32 %v780, 0.0
      %v889 = vmax.f32 %v783, 0.0
      %v890 = vmax.f32 %v785, 0.0
      %v891 = vmax.f32 %v788, 0.0
      %v892 = vmax.f32 %v790, 0.0
      %v893 = vmax.f32 %v793, 0.0
      %v894 = vmax.f32 %v795, 0.0
      %v895 = vmax.f32 %v798, 0.0
      %v896 = vmax.f32 %v800, 0.0
      %v897 = vmax.f32 %v803, 0.0
      %v898 = vmax.f32 %v805, 0.0
      %v899 = vmax.f32 %v808, 0.0
      %v900 = vmax.f32 %v810, 0.0
      %v901 = vmax.f32 %v813, 0.0
      %v902 = vmax.f32 %v815, 0.0
      %v903 = vmax.f32 %v818, 0.0
      %v904 = vmax.f32 %v820, 0.0
      %v905 = vmax.f32 %v823, 0.0
      %v906 = vmax.f32 %v825, 0.0
      %v907 = vmax.f32 %v828, 0.0
      %v908 = vmax.f32 %v830, 0.0
      %v909 = vmax.f32 %v833, 0.0
      %v910 = vmax.f32 %v835, 0.0
      %v911 = vmax.f32 %v838, 0.0
      %v912 = vmax.f32 %v840, 0.0
      %v913 = vmax.f32 %v843, 0.0
      %v914 = vmax.f32 %v845, 0.0
      %v915 = vmax.f32 %v848, 0.0
      %v916 = vmax.f32 %v850, 0.0
      %v917 = vmax.f32 %v853, 0.0
      %v918 = vmax.f32 %v855, 0.0
      %v919 = vmax.f32 %v858, 0.0
      %v920 = vmax.f32 %v860, 0.0
      %v921 = vmax.f32 %v863, 0.0
      %v922 = vmax.f32 %v865, 0.0
      %v923 = vmax.f32 %v868, 0.0
      %v924 = vmax.f32 %v870, 0.0
      %v925 = vmax.f32 %v873, 0.0
      %v926 = vmax.f32 %v875, 0.0
      %v927 = vpack.c.bf16 %v877, %v877
      %v928 = vpack.c.bf16 %v878, %v878
      %v929 = vpack.c.bf16 %v879, %v879
      %v930 = vpack.c.bf16 %v880, %v880
      %v931 = vpack.c.bf16 %v881, %v881
      %v932 = vpack.c.bf16 %v882, %v882
      %v933 = vpack.c.bf16 %v883, %v883
      %v934 = vpack.c.bf16 %v884, %v884
      %v935 = vpack.c.bf16 %v885, %v885
      %v936 = vpack.c.bf16 %v886, %v886
      %v937 = vpack.c.bf16 %v887, %v887
      %v938 = vpack.c.bf16 %v888, %v888
      %v939 = vpack.c.bf16 %v889, %v889
      %v940 = vpack.c.bf16 %v890, %v890
      %v941 = vpack.c.bf16 %v891, %v891
      %v942 = vpack.c.bf16 %v892, %v892
      %v943 = vpack.c.bf16 %v893, %v893
      %v944 = vpack.c.bf16 %v894, %v894
      %v945 = vpack.c.bf16 %v895, %v895
      %v946 = vpack.c.bf16 %v896, %v896
      %v947 = vpack.c.bf16 %v897, %v897
      %v948 = vpack.c.bf16 %v898, %v898
      %v949 = vpack.c.bf16 %v899, %v899
      %v950 = vpack.c.bf16 %v900, %v900
      %v951 = vpack.c.bf16 %v901, %v901
      %v952 = vpack.c.bf16 %v902, %v902
      %v953 = vpack.c.bf16 %v903, %v903
      %v954 = vpack.c.bf16 %v904, %v904
      %v955 = vpack.c.bf16 %v905, %v905
      %v956 = vpack.c.bf16 %v906, %v906
      %v957 = vpack.c.bf16 %v907, %v907
      %v958 = vpack.c.bf16 %v908, %v908
      %v959 = vpack.c.bf16 %v909, %v909
      %v960 = vpack.c.bf16 %v910, %v910
      %v961 = vpack.c.bf16 %v911, %v911
      %v962 = vpack.c.bf16 %v912, %v912
      %v963 = vpack.c.bf16 %v913, %v913
      %v964 = vpack.c.bf16 %v914, %v914
      %v965 = vpack.c.bf16 %v915, %v915
      %v966 = vpack.c.bf16 %v916, %v916
      %v967 = vpack.c.bf16 %v917, %v917
      %v968 = vpack.c.bf16 %v918, %v918
      %v969 = vpack.c.bf16 %v919, %v919
      %v970 = vpack.c.bf16 %v920, %v920
      %v971 = vpack.c.bf16 %v921, %v921
      %v972 = vpack.c.bf16 %v922, %v922
      %v973 = vpack.c.bf16 %v923, %v923
      %v974 = vpack.c.bf16 %v924, %v924
      %v975 = vpack.c.bf16 %v925, %v925
      %v976 = vpack.c.bf16 %v926, %v926
      %vm977 = vcmask 257024
      %978 = vst.msk [vmem:[%s175] sm:$0xf] %vm977, %v927
      %979 = vst.msk [vmem:[%s175 + $0x4] sm:$0xf] %vm977, %v928
      %980 = vst.msk [vmem:[%s175 + $0x8] sm:$0xf] %vm977, %v929
      %981 = vst.msk [vmem:[%s175 + $0xc] sm:$0xf] %vm977, %v930
      %982 = vst.msk [vmem:[%s175 + $0x10] sm:$0xf] %vm977, %v931
      %983 = vst.msk [vmem:[%s175 + $0x14] sm:$0xf] %vm977, %v932
      %984 = vst.msk [vmem:[%s175 + $0x18] sm:$0xf] %vm977, %v933
      %985 = vst.msk [vmem:[%s175 + $0x1c] sm:$0xf] %vm977, %v934
      %986 = vst.msk [vmem:[%s175 + $0x20] sm:$0xf] %vm977, %v935
      %987 = vst.msk [vmem:[%s175 + $0x24] sm:$0xf] %vm977, %v936
      %988 = vst.msk [vmem:[%s175 + $0x28] sm:$0xf] %vm977, %v937
      %989 = vst.msk [vmem:[%s175 + $0x2c] sm:$0xf] %vm977, %v938
      %990 = vst.msk [vmem:[%s175 + $0x30] sm:$0xf] %vm977, %v939
      %991 = vst.msk [vmem:[%s175 + $0x34] sm:$0xf] %vm977, %v940
      %992 = vst.msk [vmem:[%s175 + $0x38] sm:$0xf] %vm977, %v941
      %993 = vst.msk [vmem:[%s175 + $0x3c] sm:$0xf] %vm977, %v942
      %994 = vst.msk [vmem:[%s175 + $0x40] sm:$0xf] %vm977, %v943
      %995 = vst.msk [vmem:[%s175 + $0x44] sm:$0xf] %vm977, %v944
      %996 = vst.msk [vmem:[%s175 + $0x48] sm:$0xf] %vm977, %v945
      %997 = vst.msk [vmem:[%s175 + $0x4c] sm:$0xf] %vm977, %v946
      %998 = vst.msk [vmem:[%s175 + $0x50] sm:$0xf] %vm977, %v947
      %999 = vst.msk [vmem:[%s175 + $0x54] sm:$0xf] %vm977, %v948
      %1000 = vst.msk [vmem:[%s175 + $0x58] sm:$0xf] %vm977, %v949
      %1001 = vst.msk [vmem:[%s175 + $0x5c] sm:$0xf] %vm977, %v950
      %1002 = vst.msk [vmem:[%s175 + $0x60] sm:$0xf] %vm977, %v951
      %1003 = vst.msk [vmem:[%s175 + $0x64] sm:$0xf] %vm977, %v952
      %1004 = vst.msk [vmem:[%s175 + $0x68] sm:$0xf] %vm977, %v953
      %1005 = vst.msk [vmem:[%s175 + $0x6c] sm:$0xf] %vm977, %v954
      %1006 = vst.msk [vmem:[%s175 + $0x70] sm:$0xf] %vm977, %v955
      %1007 = vst.msk [vmem:[%s175 + $0x74] sm:$0xf] %vm977, %v956
      %1008 = vst.msk [vmem:[%s175 + $0x78] sm:$0xf] %vm977, %v957
      %1009 = vst.msk [vmem:[%s175 + $0x7c] sm:$0xf] %vm977, %v958
      %1010 = vst.msk [vmem:[%s175 + $0x80] sm:$0xf] %vm977, %v959
      %1011 = vst.msk [vmem:[%s175 + $0x84] sm:$0xf] %vm977, %v960
      %1012 = vst.msk [vmem:[%s175 + $0x88] sm:$0xf] %vm977, %v961
      %1013 = vst.msk [vmem:[%s175 + $0x8c] sm:$0xf] %vm977, %v962
      %1014 = vst.msk [vmem:[%s175 + $0x90] sm:$0xf] %vm977, %v963
      %1015 = vst.msk [vmem:[%s175 + $0x94] sm:$0xf] %vm977, %v964
      %1016 = vst.msk [vmem:[%s175 + $0x98] sm:$0xf] %vm977, %v965
      %1017 = vst.msk [vmem:[%s175 + $0x9c] sm:$0xf] %vm977, %v966
      %1018 = vst.msk [vmem:[%s175 + $0xa0] sm:$0xf] %vm977, %v967
      %1019 = vst.msk [vmem:[%s175 + $0xa4] sm:$0xf] %vm977, %v968
      %1020 = vst.msk [vmem:[%s175 + $0xa8] sm:$0xf] %vm977, %v969
      %1021 = vst.msk [vmem:[%s175 + $0xac] sm:$0xf] %vm977, %v970
      %1022 = vst.msk [vmem:[%s175 + $0xb0] sm:$0xf] %vm977, %v971
      %1023 = vst.msk [vmem:[%s175 + $0xb4] sm:$0xf] %vm977, %v972
      %1024 = vst.msk [vmem:[%s175 + $0xb8] sm:$0xf] %vm977, %v973
      %1025 = vst.msk [vmem:[%s175 + $0xbc] sm:$0xf] %vm977, %v974
      %1026 = vst.msk [vmem:[%s175 + $0xc0] sm:$0xf] %vm977, %v975
      %1027 = vst.msk [vmem:[%s175 + $0xc4] sm:$0xf] %vm977, %v976
      %s1028 = smul.u32 50, %s14
      %p1029 = scmp.lt.s32.totalorder %s1028, 99
      %s1030 = scalar_select %p1029, %s1028, 99
      %s1031 = smul.addr %s1030, 4
      %s1032 = scalar_lea.vmem %s3, %s1031
      // Predicated region
      $region33: #{cnn_base_forward.4} parent=31 // pred_check
        %p1033 = pneg %p100
      $region34: #{cnn_base_forward.4} parent=31 // pred_check_branch
        %1035 = sbr.rel (%p1033) target = $region36
      $region35: #{cnn_base_forward.4} parent=31 // pred_region
        %s1036 = smul.u32 50, %s14
      $region36: #{cnn_base_forward.4} parent=31 // pred_fallthru
        _
    $region32: #{cnn_base_forward.4} parent=5 // pred_fallthru
      _
    %p1037 = scmp.le.s32.totalorder 2, %s9
    // Predicated region
    $region37: #{cnn_base_forward.4} parent=5 // pred_check
      %p1038 = pneg %p1037
    $region38: #{cnn_base_forward.4} parent=5 // pred_check_branch
      %1040 = sbr.rel (%p1038) target = $region40
    $region39: #{cnn_base_forward.4} parent=5 // pred_region
      %s1041 = ssub.s32 %s9, 2
      // Predicated region
      $region41: #{cnn_base_forward.4} parent=39 // pred_check
        %p1042 = pneg %p106
      $region42: #{cnn_base_forward.4} parent=39 // pred_check_branch
        %1044 = sbr.rel (%p1042) target = $region44
      $region43: #{cnn_base_forward.4} parent=39 // pred_region
        %s1045 = smul.u32 50, %s15
        %p1046 = scmp.lt.s32.totalorder %s1045, 99
        %s1047 = scalar_select %p1046, %s1045, 99
        %s1048 = smul.addr %s1047, 4
        %s1049 = scalar_lea.vmem %s3, %s1048
      $region44: #{cnn_base_forward.4} parent=39 // pred_fallthru
        _
    $region40: #{cnn_base_forward.4} parent=5 // pred_fallthru
      _
  $region6: #{cnn_base_forward.4} parent=0 // loop_footer
    %s13 = sadd.s32 1, %s9
  $region7: #{cnn_base_forward.4} parent=0 // loop_footer_branch
    %8 = sbr.rel target = $region3
  $region8: #{cnn_base_forward.4} parent=0 // loop_exit
    _

// kernel: cnn_base_forward.5
$region0: #{cnn_base_forward.5}
  #allocation0 [shape = 'u32[]', space=smem, size = 0x4, offset = 0x4, fixed_abs, tag = 'smem constant byte address 0x4 - core index']
  #allocation1 [shape = 'u32[72,128]{1,0:T(1,128)}', space=vmem, size = 0x9000, scoped, tag = 'internal scratch']
  %s0 = inlined_call_operand.vmem [shape: bf16[176,512], index: 0, kind: input, shape index: {}]
  %s1 = inlined_call_operand.vmem [shape: bf16[512,64], index: 1, kind: input, shape index: {}]
  %s2 = inlined_call_operand.vmem [shape: f32[1,64], index: 2, kind: input, shape index: {}]
  %s3 = inlined_call_operand.vmem [shape: bf16[176,64], index: 3, kind: output, shape index: {}]
  %s4 = sld [smem:[#allocation0]]
  $region22: #{cnn_base_forward.5} parent=0
    _
  %s6 = ssub.s32 1, %s4
  %s7 = scalar_select 0, %s6, %s4
  // Predicated region
  $region2: #{cnn_base_forward.5} parent=0 // pred_check
    _
  $region3: #{cnn_base_forward.5} parent=0 // pred_check_branch
    %9 = sbr.rel (0) target = $region5
  $region4: #{cnn_base_forward.5} parent=0 // pred_region
    _
  $region5: #{cnn_base_forward.5} parent=0 // pred_fallthru
    _
  // Predicated region
  $region6: #{cnn_base_forward.5} parent=0 // pred_check
    _
  $region7: #{cnn_base_forward.5} parent=0 // pred_check_branch
    %11 = sbr.rel (0) target = $region9
  $region8: #{cnn_base_forward.5} parent=0 // pred_region
    _
  $region9: #{cnn_base_forward.5} parent=0 // pred_fallthru
    _
  // Predicated region
  $region10: #{cnn_base_forward.5} parent=0 // pred_check
    _
  $region11: #{cnn_base_forward.5} parent=0 // pred_check_branch
    %13 = sbr.rel (0) target = $region13
  $region12: #{cnn_base_forward.5} parent=0 // pred_region
    _
  $region13: #{cnn_base_forward.5} parent=0 // pred_fallthru
    _
  %v14 = vld [vmem:[%s0] sm:$0xff]
  %v15 = vld [vmem:[%s0 + $0x8] sm:$0xff]
  %v16 = vld [vmem:[%s0 + $0x10] sm:$0xff]
  %v17 = vld [vmem:[%s0 + $0x18] sm:$0xff]
  %v18 = vld [vmem:[%s0 + $0x20] sm:$0xff]
  %v19 = vld [vmem:[%s0 + $0x28] sm:$0xff]
  %v20 = vld [vmem:[%s0 + $0x30] sm:$0xff]
  %v21 = vld [vmem:[%s0 + $0x38] sm:$0xff]
  %v22 = vld [vmem:[%s0 + $0x40] sm:$0xff]
  %v23 = vld [vmem:[%s0 + $0x48] sm:$0xff]
  %v24 = vld [vmem:[%s0 + $0x50] sm:$0xff]
  %v25 = vld [vmem:[%s0 + $0x58] sm:$0xff]
  %v26 = vld [vmem:[%s0 + $0x60] sm:$0xff]
  %v27 = vld [vmem:[%s0 + $0x68] sm:$0xff]
  %v28 = vld [vmem:[%s0 + $0x70] sm:$0xff]
  %v29 = vld [vmem:[%s0 + $0x78] sm:$0xff]
  %v30 = vld [vmem:[%s0 + $0x80] sm:$0xff]
  %v31 = vld [vmem:[%s0 + $0x88] sm:$0xff]
  %v32 = vld [vmem:[%s0 + $0x90] sm:$0xff]
  %v33 = vld [vmem:[%s0 + $0x98] sm:$0xff]
  %v34 = vld [vmem:[%s0 + $0xa0] sm:$0xff]
  %v35 = vld [vmem:[%s0 + $0xa8] sm:$0xff]
  %v36 = vld [vmem:[%s0 + $0xb0] sm:$0xff]
  %v37 = vld [vmem:[%s0 + $0xb8] sm:$0xff]
  %v38 = vld [vmem:[%s0 + $0xc0] sm:$0xff]
  %v39 = vld [vmem:[%s0 + $0xc8] sm:$0xff]
  %v40 = vld [vmem:[%s0 + $0xd0] sm:$0xff]
  %v41 = vld [vmem:[%s0 + $0xd8] sm:$0xff]
  %v42 = vld [vmem:[%s0 + $0xe0] sm:$0xff]
  %v43 = vld [vmem:[%s0 + $0xe8] sm:$0xff]
  %v44 = vld [vmem:[%s0 + $0xf0] sm:$0xff]
  %v45 = vld [vmem:[%s0 + $0xf8] sm:$0xff]
  %v46 = vld [vmem:[%s0 + $0x100] sm:$0xff]
  %v47 = vld [vmem:[%s0 + $0x108] sm:$0xff]
  %v48 = vld [vmem:[%s0 + $0x110] sm:$0xff]
  %v49 = vld [vmem:[%s0 + $0x118] sm:$0xff]
  %v50 = vld [vmem:[%s0 + $0x120] sm:$0xff]
  %v51 = vld [vmem:[%s0 + $0x128] sm:$0xff]
  %v52 = vld [vmem:[%s0 + $0x130] sm:$0xff]
  %v53 = vld [vmem:[%s0 + $0x138] sm:$0xff]
  %v54 = vld [vmem:[%s0 + $0x140] sm:$0xff]
  %v55 = vld [vmem:[%s0 + $0x148] sm:$0xff]
  %v56 = vld [vmem:[%s0 + $0x150] sm:$0xff]
  %v57 = vld [vmem:[%s0 + $0x158] sm:$0xff]
  %v58 = vld [vmem:[%s1] sm:$0xf]
  %v59 = vld [vmem:[%s1 + $0x4] sm:$0xf]
  %v60 = vld [vmem:[%s1 + $0x8] sm:$0xf]
  %v61 = vld [vmem:[%s1 + $0xc] sm:$0xf]
  %v62 = vld [vmem:[%s1 + $0x10] sm:$0xf]
  %v63 = vld [vmem:[%s1 + $0x14] sm:$0xf]
  %v64 = vld [vmem:[%s1 + $0x18] sm:$0xf]
  %v65 = vld [vmem:[%s1 + $0x1c] sm:$0xf]
  %v66 = vld [vmem:[%s1 + $0x20] sm:$0xf]
  %v67 = vld [vmem:[%s1 + $0x24] sm:$0xf]
  %v68 = vld [vmem:[%s1 + $0x28] sm:$0xf]
  %v69 = vld [vmem:[%s1 + $0x2c] sm:$0xf]
  %v70 = vld [vmem:[%s1 + $0x30] sm:$0xf]
  %v71 = vld [vmem:[%s1 + $0x34] sm:$0xf]
  %v72 = vld [vmem:[%s1 + $0x38] sm:$0xf]
  %v73 = vld [vmem:[%s1 + $0x3c] sm:$0xf]
  %v74 = vld [vmem:[%s1 + $0x40] sm:$0xf]
  %v75 = vld [vmem:[%s1 + $0x44] sm:$0xf]
  %v76 = vld [vmem:[%s1 + $0x48] sm:$0xf]
  %v77 = vld [vmem:[%s1 + $0x4c] sm:$0xf]
  %v78 = vld [vmem:[%s1 + $0x50] sm:$0xf]
  %v79 = vld [vmem:[%s1 + $0x54] sm:$0xf]
  %v80 = vld [vmem:[%s1 + $0x58] sm:$0xf]
  %v81 = vld [vmem:[%s1 + $0x5c] sm:$0xf]
  %v82 = vld [vmem:[%s1 + $0x60] sm:$0xf]
  %v83 = vld [vmem:[%s1 + $0x64] sm:$0xf]
  %v84 = vld [vmem:[%s1 + $0x68] sm:$0xf]
  %v85 = vld [vmem:[%s1 + $0x6c] sm:$0xf]
  %v86 = vld [vmem:[%s1 + $0x70] sm:$0xf]
  %v87 = vld [vmem:[%s1 + $0x74] sm:$0xf]
  %v88 = vld [vmem:[%s1 + $0x78] sm:$0xf]
  %v89 = vld [vmem:[%s1 + $0x7c] sm:$0xf]
  %v90 = vld [vmem:[%s1 + $0x80] sm:$0xf]
  %v91 = vld [vmem:[%s1 + $0x84] sm:$0xf]
  %v92 = vld [vmem:[%s1 + $0x88] sm:$0xf]
  %v93 = vld [vmem:[%s1 + $0x8c] sm:$0xf]
  %v94 = vld [vmem:[%s1 + $0x90] sm:$0xf]
  %v95 = vld [vmem:[%s1 + $0x94] sm:$0xf]
  %v96 = vld [vmem:[%s1 + $0x98] sm:$0xf]
  %v97 = vld [vmem:[%s1 + $0x9c] sm:$0xf]
  %v98 = vld [vmem:[%s1 + $0xa0] sm:$0xf]
  %v99 = vld [vmem:[%s1 + $0xa4] sm:$0xf]
  %v100 = vld [vmem:[%s1 + $0xa8] sm:$0xf]
  %v101 = vld [vmem:[%s1 + $0xac] sm:$0xf]
  %v102 = vld [vmem:[%s1 + $0xb0] sm:$0xf]
  %v103 = vld [vmem:[%s1 + $0xb4] sm:$0xf]
  %v104 = vld [vmem:[%s1 + $0xb8] sm:$0xf]
  %v105 = vld [vmem:[%s1 + $0xbc] sm:$0xf]
  %v106 = vld [vmem:[%s1 + $0xc0] sm:$0xf]
  %v107 = vld [vmem:[%s1 + $0xc4] sm:$0xf]
  %v108 = vld [vmem:[%s1 + $0xc8] sm:$0xf]
  %v109 = vld [vmem:[%s1 + $0xcc] sm:$0xf]
  %v110 = vld [vmem:[%s1 + $0xd0] sm:$0xf]
  %v111 = vld [vmem:[%s1 + $0xd4] sm:$0xf]
  %v112 = vld [vmem:[%s1 + $0xd8] sm:$0xf]
  %v113 = vld [vmem:[%s1 + $0xdc] sm:$0xf]
  %v114 = vld [vmem:[%s1 + $0xe0] sm:$0xf]
  %v115 = vld [vmem:[%s1 + $0xe4] sm:$0xf]
  %v116 = vld [vmem:[%s1 + $0xe8] sm:$0xf]
  %v117 = vld [vmem:[%s1 + $0xec] sm:$0xf]
  %v118 = vld [vmem:[%s1 + $0xf0] sm:$0xf]
  %v119 = vld [vmem:[%s1 + $0xf4] sm:$0xf]
  %v120 = vld [vmem:[%s1 + $0xf8] sm:$0xf]
  %v121 = vld [vmem:[%s1 + $0xfc] sm:$0xf]
  %v122 = vld [vmem:[%s2] sm:$0x1]
  %v124 = vperm.slane %v122, 0
  %v170 = vunpack.c.l.b16 %v14
  %v171 = vunpack.c.h.b16 %v14
  %v172 = vunpack.c.l.b16 %v15
  %v173 = vunpack.c.h.b16 %v15
  %v174 = vunpack.c.l.b16 %v16
  %v175 = vunpack.c.h.b16 %v16
  %v176 = vunpack.c.l.b16 %v17
  %v177 = vunpack.c.h.b16 %v17
  %v178 = vunpack.c.l.b16 %v18
  %v179 = vunpack.c.h.b16 %v18
  %v180 = vunpack.c.l.b16 %v19
  %v181 = vunpack.c.h.b16 %v19
  %v182 = vunpack.c.l.b16 %v20
  %v183 = vunpack.c.h.b16 %v20
  %v184 = vunpack.c.l.b16 %v21
  %v185 = vunpack.c.h.b16 %v21
  %v186 = vunpack.c.l.b16 %v22
  %v187 = vunpack.c.h.b16 %v22
  %v188 = vunpack.c.l.b16 %v23
  %v189 = vunpack.c.h.b16 %v23
  %v190 = vunpack.c.l.b16 %v24
  %v191 = vunpack.c.h.b16 %v24
  %v192 = vunpack.c.l.b16 %v25
  %v193 = vunpack.c.h.b16 %v25
  %v194 = vunpack.c.l.b16 %v26
  %v195 = vunpack.c.h.b16 %v26
  %v196 = vunpack.c.l.b16 %v27
  %v197 = vunpack.c.h.b16 %v27
  %v198 = vunpack.c.l.b16 %v28
  %v199 = vunpack.c.h.b16 %v28
  %v200 = vunpack.c.l.b16 %v29
  %v201 = vunpack.c.h.b16 %v29
  %v202 = vunpack.c.l.b16 %v30
  %v203 = vunpack.c.h.b16 %v30
  %v204 = vunpack.c.l.b16 %v31
  %v205 = vunpack.c.h.b16 %v31
  %v206 = vunpack.c.l.b16 %v32
  %v207 = vunpack.c.h.b16 %v32
  %v208 = vunpack.c.l.b16 %v33
  %v209 = vunpack.c.h.b16 %v33
  %v210 = vunpack.c.l.b16 %v34
  %v211 = vunpack.c.h.b16 %v34
  %v212 = vunpack.c.l.b16 %v35
  %v213 = vunpack.c.h.b16 %v35
  %v214 = vunpack.c.l.b16 %v36
  %v215 = vunpack.c.h.b16 %v36
  %v216 = vunpack.c.l.b16 %v37
  %v217 = vunpack.c.h.b16 %v37
  %v218 = vunpack.c.l.b16 %v38
  %v219 = vunpack.c.h.b16 %v38
  %v220 = vunpack.c.l.b16 %v39
  %v221 = vunpack.c.h.b16 %v39
  %v222 = vunpack.c.l.b16 %v40
  %v223 = vunpack.c.h.b16 %v40
  %v224 = vunpack.c.l.b16 %v41
  %v225 = vunpack.c.h.b16 %v41
  %v226 = vunpack.c.l.b16 %v42
  %v227 = vunpack.c.h.b16 %v42
  %v228 = vunpack.c.l.b16 %v43
  %v229 = vunpack.c.h.b16 %v43
  %v230 = vunpack.c.l.b16 %v44
  %v231 = vunpack.c.h.b16 %v44
  %v232 = vunpack.c.l.b16 %v45
  %v233 = vunpack.c.h.b16 %v45
  %v234 = vunpack.c.l.b16 %v46
  %v235 = vunpack.c.h.b16 %v46
  %v236 = vunpack.c.l.b16 %v47
  %v237 = vunpack.c.h.b16 %v47
  %v238 = vunpack.c.l.b16 %v48
  %v239 = vunpack.c.h.b16 %v48
  %v240 = vunpack.c.l.b16 %v49
  %v241 = vunpack.c.h.b16 %v49
  %v242 = vunpack.c.l.b16 %v50
  %v243 = vunpack.c.h.b16 %v50
  %v244 = vunpack.c.l.b16 %v51
  %v245 = vunpack.c.h.b16 %v51
  %v246 = vunpack.c.l.b16 %v52
  %v247 = vunpack.c.h.b16 %v52
  %v248 = vunpack.c.l.b16 %v53
  %v249 = vunpack.c.h.b16 %v53
  %v250 = vunpack.c.l.b16 %v54
  %v251 = vunpack.c.h.b16 %v54
  %v252 = vunpack.c.l.b16 %v55
  %v253 = vunpack.c.h.b16 %v55
  %v254 = vunpack.c.l.b16 %v56
  %v255 = vunpack.c.h.b16 %v56
  %v256 = vunpack.c.l.b16 %v57
  %v257 = vunpack.c.h.b16 %v57
  %v258 = vpack.c.b16 %v174, %v170
  %v259 = vpack.c.b16 %v175, %v171
  %v260 = vpack.c.b16 %v176, %v172
  %v261 = vpack.c.b16 %v177, %v173
  %v262 = vpack.c.b16 %v182, %v178
  %v263 = vpack.c.b16 %v183, %v179
  %v264 = vpack.c.b16 %v184, %v180
  %v265 = vpack.c.b16 %v185, %v181
  %v266 = vpack.c.b16 %v190, %v186
  %v267 = vpack.c.b16 %v191, %v187
  %v268 = vpack.c.b16 %v192, %v188
  %v269 = vpack.c.b16 %v193, %v189
  %v270 = vpack.c.b16 %v198, %v194
  %v271 = vpack.c.b16 %v199, %v195
  %v272 = vpack.c.b16 %v200, %v196
  %v273 = vpack.c.b16 %v201, %v197
  %v274 = vpack.c.b16 %v206, %v202
  %v275 = vpack.c.b16 %v207, %v203
  %v276 = vpack.c.b16 %v208, %v204
  %v277 = vpack.c.b16 %v209, %v205
  %v278 = vpack.c.b16 %v214, %v210
  %v279 = vpack.c.b16 %v215, %v211
  %v280 = vpack.c.b16 %v216, %v212
  %v281 = vpack.c.b16 %v217, %v213
  %v282 = vpack.c.b16 %v222, %v218
  %v283 = vpack.c.b16 %v223, %v219
  %v284 = vpack.c.b16 %v224, %v220
  %v285 = vpack.c.b16 %v225, %v221
  %v286 = vpack.c.b16 %v230, %v226
  %v287 = vpack.c.b16 %v231, %v227
  %v288 = vpack.c.b16 %v232, %v228
  %v289 = vpack.c.b16 %v233, %v229
  %v290 = vpack.c.b16 %v238, %v234
  %v291 = vpack.c.b16 %v239, %v235
  %v292 = vpack.c.b16 %v240, %v236
  %v293 = vpack.c.b16 %v241, %v237
  %v294 = vpack.c.b16 %v246, %v242
  %v295 = vpack.c.b16 %v247, %v243
  %v296 = vpack.c.b16 %v248, %v244
  %v297 = vpack.c.b16 %v249, %v245
  %v298 = vpack.c.b16 %v254, %v250
  %v299 = vpack.c.b16 %v255, %v251
  %v300 = vpack.c.b16 %v256, %v252
  %v301 = vpack.c.b16 %v257, %v253
  %v410 = vunpack.c.l.b16 %v58
  %v411 = vunpack.c.l.b16 %v59
  %v412 = vunpack.c.l.b16 %v60
  %v413 = vunpack.c.l.b16 %v61
  %v414 = vunpack.c.l.b16 %v62
  %v415 = vunpack.c.l.b16 %v63
  %v416 = vunpack.c.l.b16 %v64
  %v417 = vunpack.c.l.b16 %v65
  %v418 = vunpack.c.l.b16 %v66
  %v419 = vunpack.c.l.b16 %v67
  %v420 = vunpack.c.l.b16 %v68
  %v421 = vunpack.c.l.b16 %v69
  %v422 = vunpack.c.l.b16 %v70
  %v423 = vunpack.c.l.b16 %v71
  %v424 = vunpack.c.l.b16 %v72
  %v425 = vunpack.c.l.b16 %v73
  %v426 = vunpack.c.l.b16 %v74
  %v427 = vunpack.c.l.b16 %v75
  %v428 = vunpack.c.l.b16 %v76
  %v429 = vunpack.c.l.b16 %v77
  %v430 = vunpack.c.l.b16 %v78
  %v431 = vunpack.c.l.b16 %v79
  %v432 = vunpack.c.l.b16 %v80
  %v433 = vunpack.c.l.b16 %v81
  %v434 = vunpack.c.l.b16 %v82
  %v435 = vunpack.c.l.b16 %v83
  %v436 = vunpack.c.l.b16 %v84
  %v437 = vunpack.c.l.b16 %v85
  %v438 = vunpack.c.l.b16 %v86
  %v439 = vunpack.c.l.b16 %v87
  %v440 = vunpack.c.l.b16 %v88
  %v441 = vunpack.c.l.b16 %v89
  %v442 = vunpack.c.l.b16 %v90
  %v443 = vunpack.c.l.b16 %v91
  %v444 = vunpack.c.l.b16 %v92
  %v445 = vunpack.c.l.b16 %v93
  %v446 = vunpack.c.l.b16 %v94
  %v447 = vunpack.c.l.b16 %v95
  %v448 = vunpack.c.l.b16 %v96
  %v449 = vunpack.c.l.b16 %v97
  %v450 = vunpack.c.l.b16 %v98
  %v451 = vunpack.c.l.b16 %v99
  %v452 = vunpack.c.l.b16 %v100
  %v453 = vunpack.c.l.b16 %v101
  %v454 = vunpack.c.l.b16 %v102
  %v455 = vunpack.c.l.b16 %v103
  %v456 = vunpack.c.l.b16 %v104
  %v457 = vunpack.c.l.b16 %v105
  %v458 = vunpack.c.l.b16 %v106
  %v459 = vunpack.c.l.b16 %v107
  %v460 = vunpack.c.l.b16 %v108
  %v461 = vunpack.c.l.b16 %v109
  %v462 = vunpack.c.l.b16 %v110
  %v463 = vunpack.c.l.b16 %v111
  %v464 = vunpack.c.l.b16 %v112
  %v465 = vunpack.c.l.b16 %v113
  %v466 = vunpack.c.l.b16 %v114
  %v467 = vunpack.c.l.b16 %v115
  %v468 = vunpack.c.l.b16 %v116
  %v469 = vunpack.c.l.b16 %v117
  %v470 = vunpack.c.l.b16 %v118
  %v471 = vunpack.c.l.b16 %v119
  %v472 = vunpack.c.l.b16 %v120
  %v473 = vunpack.c.l.b16 %v121
  %v474 = vpack.c.b16 %v411, %v410
  %v475 = vpack.c.b16 %v413, %v412
  %v476 = vpack.c.b16 %v415, %v414
  %v477 = vpack.c.b16 %v417, %v416
  %v478 = vpack.c.b16 %v419, %v418
  %v479 = vpack.c.b16 %v421, %v420
  %v480 = vpack.c.b16 %v423, %v422
  %v481 = vpack.c.b16 %v425, %v424
  %v482 = vpack.c.b16 %v427, %v426
  %v483 = vpack.c.b16 %v429, %v428
  %v484 = vpack.c.b16 %v431, %v430
  %v485 = vpack.c.b16 %v433, %v432
  %v486 = vpack.c.b16 %v435, %v434
  %v487 = vpack.c.b16 %v437, %v436
  %v488 = vpack.c.b16 %v439, %v438
  %v489 = vpack.c.b16 %v441, %v440
  %v490 = vpack.c.b16 %v443, %v442
  %v491 = vpack.c.b16 %v445, %v444
  %v492 = vpack.c.b16 %v447, %v446
  %v493 = vpack.c.b16 %v449, %v448
  %v494 = vpack.c.b16 %v451, %v450
  %v495 = vpack.c.b16 %v453, %v452
  %v496 = vpack.c.b16 %v455, %v454
  %v497 = vpack.c.b16 %v457, %v456
  %v498 = vpack.c.b16 %v459, %v458
  %v499 = vpack.c.b16 %v461, %v460
  %v500 = vpack.c.b16 %v463, %v462
  %v501 = vpack.c.b16 %v465, %v464
  %v502 = vpack.c.b16 %v467, %v466
  %v503 = vpack.c.b16 %v469, %v468
  %v504 = vpack.c.b16 %v471, %v470
  %v505 = vpack.c.b16 %v473, %v472
  %538 = vmatpush.bf16.msra.mxu0 %v481
  %539 = vmatpush.bf16.msra.mxu0 %v480
  %540 = vmatpush.bf16.msra.mxu0 %v479
  %541 = vmatpush.bf16.msra.mxu0 %v478
  %542 = vmatpush.bf16.msra.mxu0 %v477
  %543 = vmatpush.bf16.msra.mxu0 %v476
  %544 = vmatpush.bf16.msra.mxu0 %v475
  %545 = vmatpush.bf16.msra.mxu0 %v474
  %546 = vmatmul.bf16.gmra.mxu0 %v258
  %v547 = vpop.f32.mrf.mxu0
  %v548 = vadd.f32 %v124, %v547
  %v549 = vpop.f32.mrf.mxu0
  %v550 = vadd.f32 %v124, %v549
  %551 = vmatmul.bf16.gmra.mxu0 %v262
  %v552 = vpop.f32.mrf.mxu0
  %v553 = vadd.f32 %v124, %v552
  %v554 = vpop.f32.mrf.mxu0
  %v555 = vadd.f32 %v124, %v554
  %556 = vmatmul.bf16.gmra.mxu0 %v266
  %v557 = vpop.f32.mrf.mxu0
  %v558 = vadd.f32 %v124, %v557
  %v559 = vpop.f32.mrf.mxu0
  %v560 = vadd.f32 %v124, %v559
  %561 = vmatmul.bf16.gmra.mxu0 %v270
  %v562 = vpop.f32.mrf.mxu0
  %v563 = vadd.f32 %v124, %v562
  %v564 = vpop.f32.mrf.mxu0
  %v565 = vadd.f32 %v124, %v564
  %566 = vmatmul.bf16.gmra.mxu0 %v274
  %v567 = vpop.f32.mrf.mxu0
  %v568 = vadd.f32 %v124, %v567
  %v569 = vpop.f32.mrf.mxu0
  %v570 = vadd.f32 %v124, %v569
  %571 = vmatmul.bf16.gmra.mxu0 %v278
  %v572 = vpop.f32.mrf.mxu0
  %v573 = vadd.f32 %v124, %v572
  %v574 = vpop.f32.mrf.mxu0
  %v575 = vadd.f32 %v124, %v574
  %576 = vmatmul.bf16.gmra.mxu0 %v282
  %v577 = vpop.f32.mrf.mxu0
  %v578 = vadd.f32 %v124, %v577
  %v579 = vpop.f32.mrf.mxu0
  %v580 = vadd.f32 %v124, %v579
  %581 = vmatmul.bf16.gmra.mxu0 %v286
  %v582 = vpop.f32.mrf.mxu0
  %v583 = vadd.f32 %v124, %v582
  %v584 = vpop.f32.mrf.mxu0
  %v585 = vadd.f32 %v124, %v584
  %586 = vmatmul.bf16.gmra.mxu0 %v290
  %v587 = vpop.f32.mrf.mxu0
  %v588 = vadd.f32 %v124, %v587
  %v589 = vpop.f32.mrf.mxu0
  %v590 = vadd.f32 %v124, %v589
  %591 = vmatmul.bf16.gmra.mxu0 %v294
  %v592 = vpop.f32.mrf.mxu0
  %v593 = vadd.f32 %v124, %v592
  %v594 = vpop.f32.mrf.mxu0
  %v595 = vadd.f32 %v124, %v594
  %596 = vmatmul.bf16.gmra.mxu0 %v298
  %v597 = vpop.f32.mrf.mxu0
  %v598 = vadd.f32 %v124, %v597
  %v599 = vpop.f32.mrf.mxu0
  %v600 = vadd.f32 %v124, %v599
  %601 = vdwg.mxu0
  %602 = vmatpush.bf16.msra.mxu0 %v489
  %603 = vmatpush.bf16.msra.mxu0 %v488
  %604 = vmatpush.bf16.msra.mxu0 %v487
  %605 = vmatpush.bf16.msra.mxu0 %v486
  %606 = vmatpush.bf16.msra.mxu0 %v485
  %607 = vmatpush.bf16.msra.mxu0 %v484
  %608 = vmatpush.bf16.msra.mxu0 %v483
  %609 = vmatpush.bf16.msra.mxu0 %v482
  %610 = vmatmul.bf16.gmra.mxu0 %v259
  %v611 = vpop.f32.mrf.mxu0
  %v612 = vadd.f32 %v548, %v611
  %v613 = vpop.f32.mrf.mxu0
  %v614 = vadd.f32 %v550, %v613
  %615 = vmatmul.bf16.gmra.mxu0 %v263
  %v616 = vpop.f32.mrf.mxu0
  %v617 = vadd.f32 %v553, %v616
  %v618 = vpop.f32.mrf.mxu0
  %v619 = vadd.f32 %v555, %v618
  %620 = vmatmul.bf16.gmra.mxu0 %v267
  %v621 = vpop.f32.mrf.mxu0
  %v622 = vadd.f32 %v558, %v621
  %v623 = vpop.f32.mrf.mxu0
  %v624 = vadd.f32 %v560, %v623
  %625 = vmatmul.bf16.gmra.mxu0 %v271
  %v626 = vpop.f32.mrf.mxu0
  %v627 = vadd.f32 %v563, %v626
  %v628 = vpop.f32.mrf.mxu0
  %v629 = vadd.f32 %v565, %v628
  %630 = vmatmul.bf16.gmra.mxu0 %v275
  %v631 = vpop.f32.mrf.mxu0
  %v632 = vadd.f32 %v568, %v631
  %v633 = vpop.f32.mrf.mxu0
  %v634 = vadd.f32 %v570, %v633
  %635 = vmatmul.bf16.gmra.mxu0 %v279
  %v636 = vpop.f32.mrf.mxu0
  %v637 = vadd.f32 %v573, %v636
  %v638 = vpop.f32.mrf.mxu0
  %v639 = vadd.f32 %v575, %v638
  %640 = vmatmul.bf16.gmra.mxu0 %v283
  %v641 = vpop.f32.mrf.mxu0
  %v642 = vadd.f32 %v578, %v641
  %v643 = vpop.f32.mrf.mxu0
  %v644 = vadd.f32 %v580, %v643
  %645 = vmatmul.bf16.gmra.mxu0 %v287
  %v646 = vpop.f32.mrf.mxu0
  %v647 = vadd.f32 %v583, %v646
  %v648 = vpop.f32.mrf.mxu0
  %v649 = vadd.f32 %v585, %v648
  %650 = vmatmul.bf16.gmra.mxu0 %v291
  %v651 = vpop.f32.mrf.mxu0
  %v652 = vadd.f32 %v588, %v651
  %v653 = vpop.f32.mrf.mxu0
  %v654 = vadd.f32 %v590, %v653
  %655 = vmatmul.bf16.gmra.mxu0 %v295
  %v656 = vpop.f32.mrf.mxu0
  %v657 = vadd.f32 %v593, %v656
  %v658 = vpop.f32.mrf.mxu0
  %v659 = vadd.f32 %v595, %v658
  %660 = vmatmul.bf16.gmra.mxu0 %v299
  %v661 = vpop.f32.mrf.mxu0
  %v662 = vadd.f32 %v598, %v661
  %v663 = vpop.f32.mrf.mxu0
  %v664 = vadd.f32 %v600, %v663
  %665 = vdwg.mxu0
  %666 = vmatpush.bf16.msra.mxu0 %v497
  %667 = vmatpush.bf16.msra.mxu0 %v496
  %668 = vmatpush.bf16.msra.mxu0 %v495
  %669 = vmatpush.bf16.msra.mxu0 %v494
  %670 = vmatpush.bf16.msra.mxu0 %v493
  %671 = vmatpush.bf16.msra.mxu0 %v492
  %672 = vmatpush.bf16.msra.mxu0 %v491
  %673 = vmatpush.bf16.msra.mxu0 %v490
  %674 = vmatmul.bf16.gmra.mxu0 %v260
  %v675 = vpop.f32.mrf.mxu0
  %v676 = vadd.f32 %v612, %v675
  %v677 = vpop.f32.mrf.mxu0
  %v678 = vadd.f32 %v614, %v677
  %679 = vmatmul.bf16.gmra.mxu0 %v264
  %v680 = vpop.f32.mrf.mxu0
  %v681 = vadd.f32 %v617, %v680
  %v682 = vpop.f32.mrf.mxu0
  %v683 = vadd.f32 %v619, %v682
  %684 = vmatmul.bf16.gmra.mxu0 %v268
  %v685 = vpop.f32.mrf.mxu0
  %v686 = vadd.f32 %v622, %v685
  %v687 = vpop.f32.mrf.mxu0
  %v688 = vadd.f32 %v624, %v687
  %689 = vmatmul.bf16.gmra.mxu0 %v272
  %v690 = vpop.f32.mrf.mxu0
  %v691 = vadd.f32 %v627, %v690
  %v692 = vpop.f32.mrf.mxu0
  %v693 = vadd.f32 %v629, %v692
  %694 = vmatmul.bf16.gmra.mxu0 %v276
  %v695 = vpop.f32.mrf.mxu0
  %v696 = vadd.f32 %v632, %v695
  %v697 = vpop.f32.mrf.mxu0
  %v698 = vadd.f32 %v634, %v697
  %699 = vmatmul.bf16.gmra.mxu0 %v280
  %v700 = vpop.f32.mrf.mxu0
  %v701 = vadd.f32 %v637, %v700
  %v702 = vpop.f32.mrf.mxu0
  %v703 = vadd.f32 %v639, %v702
  %704 = vmatmul.bf16.gmra.mxu0 %v284
  %v705 = vpop.f32.mrf.mxu0
  %v706 = vadd.f32 %v642, %v705
  %v707 = vpop.f32.mrf.mxu0
  %v708 = vadd.f32 %v644, %v707
  %709 = vmatmul.bf16.gmra.mxu0 %v288
  %v710 = vpop.f32.mrf.mxu0
  %v711 = vadd.f32 %v647, %v710
  %v712 = vpop.f32.mrf.mxu0
  %v713 = vadd.f32 %v649, %v712
  %714 = vmatmul.bf16.gmra.mxu0 %v292
  %v715 = vpop.f32.mrf.mxu0
  %v716 = vadd.f32 %v652, %v715
  %v717 = vpop.f32.mrf.mxu0
  %v718 = vadd.f32 %v654, %v717
  %719 = vmatmul.bf16.gmra.mxu0 %v296
  %v720 = vpop.f32.mrf.mxu0
  %v721 = vadd.f32 %v657, %v720
  %v722 = vpop.f32.mrf.mxu0
  %v723 = vadd.f32 %v659, %v722
  %724 = vmatmul.bf16.gmra.mxu0 %v300
  %v725 = vpop.f32.mrf.mxu0
  %v726 = vadd.f32 %v662, %v725
  %v727 = vpop.f32.mrf.mxu0
  %v728 = vadd.f32 %v664, %v727
  %729 = vdwg.mxu0
  %730 = vmatpush.bf16.msra.mxu0 %v505
  %731 = vmatpush.bf16.msra.mxu0 %v504
  %732 = vmatpush.bf16.msra.mxu0 %v503
  %733 = vmatpush.bf16.msra.mxu0 %v502
  %734 = vmatpush.bf16.msra.mxu0 %v501
  %735 = vmatpush.bf16.msra.mxu0 %v500
  %736 = vmatpush.bf16.msra.mxu0 %v499
  %737 = vmatpush.bf16.msra.mxu0 %v498
  %738 = vmatmul.bf16.gmra.mxu0 %v261
  %v739 = vpop.f32.mrf.mxu0
  %v740 = vadd.f32 %v676, %v739
  %v741 = vpop.f32.mrf.mxu0
  %v742 = vadd.f32 %v678, %v741
  %743 = vmatmul.bf16.gmra.mxu0 %v265
  %v744 = vpop.f32.mrf.mxu0
  %v745 = vadd.f32 %v681, %v744
  %v746 = vpop.f32.mrf.mxu0
  %v747 = vadd.f32 %v683, %v746
  %748 = vmatmul.bf16.gmra.mxu0 %v269
  %v749 = vpop.f32.mrf.mxu0
  %v750 = vadd.f32 %v686, %v749
  %v751 = vpop.f32.mrf.mxu0
  %v752 = vadd.f32 %v688, %v751
  %753 = vmatmul.bf16.gmra.mxu0 %v273
  %v754 = vpop.f32.mrf.mxu0
  %v755 = vadd.f32 %v691, %v754
  %v756 = vpop.f32.mrf.mxu0
  %v757 = vadd.f32 %v693, %v756
  %758 = vmatmul.bf16.gmra.mxu0 %v277
  %v759 = vpop.f32.mrf.mxu0
  %v760 = vadd.f32 %v696, %v759
  %v761 = vpop.f32.mrf.mxu0
  %v762 = vadd.f32 %v698, %v761
  %763 = vmatmul.bf16.gmra.mxu0 %v281
  %v764 = vpop.f32.mrf.mxu0
  %v765 = vadd.f32 %v701, %v764
  %v766 = vpop.f32.mrf.mxu0
  %v767 = vadd.f32 %v703, %v766
  %768 = vmatmul.bf16.gmra.mxu0 %v285
  %v769 = vpop.f32.mrf.mxu0
  %v770 = vadd.f32 %v706, %v769
  %v771 = vpop.f32.mrf.mxu0
  %v772 = vadd.f32 %v708, %v771
  %773 = vmatmul.bf16.gmra.mxu0 %v289
  %v774 = vpop.f32.mrf.mxu0
  %v775 = vadd.f32 %v711, %v774
  %v776 = vpop.f32.mrf.mxu0
  %v777 = vadd.f32 %v713, %v776
  %778 = vmatmul.bf16.gmra.mxu0 %v293
  %v779 = vpop.f32.mrf.mxu0
  %v780 = vadd.f32 %v716, %v779
  %v781 = vpop.f32.mrf.mxu0
  %v782 = vadd.f32 %v718, %v781
  %783 = vmatmul.bf16.gmra.mxu0 %v297
  %v784 = vpop.f32.mrf.mxu0
  %v785 = vadd.f32 %v721, %v784
  %v786 = vpop.f32.mrf.mxu0
  %v787 = vadd.f32 %v723, %v786
  %788 = vmatmul.bf16.gmra.mxu0 %v301
  %v789 = vpop.f32.mrf.mxu0
  %v790 = vadd.f32 %v726, %v789
  %v791 = vpop.f32.mrf.mxu0
  %v792 = vadd.f32 %v728, %v791
  %793 = vdwg.mxu0
  %v794 = vmax.f32 %v740, 0.0
  %v795 = vmax.f32 %v742, 0.0
  %v796 = vmax.f32 %v745, 0.0
  %v797 = vmax.f32 %v747, 0.0
  %v798 = vmax.f32 %v750, 0.0
  %v799 = vmax.f32 %v752, 0.0
  %v800 = vmax.f32 %v755, 0.0
  %v801 = vmax.f32 %v757, 0.0
  %v802 = vmax.f32 %v760, 0.0
  %v803 = vmax.f32 %v762, 0.0
  %v804 = vmax.f32 %v765, 0.0
  %v805 = vmax.f32 %v767, 0.0
  %v806 = vmax.f32 %v770, 0.0
  %v807 = vmax.f32 %v772, 0.0
  %v808 = vmax.f32 %v775, 0.0
  %v809 = vmax.f32 %v777, 0.0
  %v810 = vmax.f32 %v780, 0.0
  %v811 = vmax.f32 %v782, 0.0
  %v812 = vmax.f32 %v785, 0.0
  %v813 = vmax.f32 %v787, 0.0
  %v814 = vmax.f32 %v790, 0.0
  %v815 = vmax.f32 %v792, 0.0
  %v816 = vpack.c.bf16 %v794, %v794
  %v817 = vpack.c.bf16 %v795, %v795
  %v818 = vpack.c.bf16 %v796, %v796
  %v819 = vpack.c.bf16 %v797, %v797
  %v820 = vpack.c.bf16 %v798, %v798
  %v821 = vpack.c.bf16 %v799, %v799
  %v822 = vpack.c.bf16 %v800, %v800
  %v823 = vpack.c.bf16 %v801, %v801
  %v824 = vpack.c.bf16 %v802, %v802
  %v825 = vpack.c.bf16 %v803, %v803
  %v826 = vpack.c.bf16 %v804, %v804
  %v827 = vpack.c.bf16 %v805, %v805
  %v828 = vpack.c.bf16 %v806, %v806
  %v829 = vpack.c.bf16 %v807, %v807
  %v830 = vpack.c.bf16 %v808, %v808
  %v831 = vpack.c.bf16 %v809, %v809
  %v832 = vpack.c.bf16 %v810, %v810
  %v833 = vpack.c.bf16 %v811, %v811
  %v834 = vpack.c.bf16 %v812, %v812
  %v835 = vpack.c.bf16 %v813, %v813
  %v836 = vpack.c.bf16 %v814, %v814
  %v837 = vpack.c.bf16 %v815, %v815
  %vm838 = vcmask 519168
  %839 = vst.msk [vmem:[%s3] sm:$0xf] %vm838, %v816
  %840 = vst.msk [vmem:[%s3 + $0x4] sm:$0xf] %vm838, %v817
  %841 = vst.msk [vmem:[%s3 + $0x8] sm:$0xf] %vm838, %v818
  %842 = vst.msk [vmem:[%s3 + $0xc] sm:$0xf] %vm838, %v819
  %843 = vst.msk [vmem:[%s3 + $0x10] sm:$0xf] %vm838, %v820
  %844 = vst.msk [vmem:[%s3 + $0x14] sm:$0xf] %vm838, %v821
  %845 = vst.msk [vmem:[%s3 + $0x18] sm:$0xf] %vm838, %v822
  %846 = vst.msk [vmem:[%s3 + $0x1c] sm:$0xf] %vm838, %v823
  %847 = vst.msk [vmem:[%s3 + $0x20] sm:$0xf] %vm838, %v824
  %848 = vst.msk [vmem:[%s3 + $0x24] sm:$0xf] %vm838, %v825
  %849 = vst.msk [vmem:[%s3 + $0x28] sm:$0xf] %vm838, %v826
  %850 = vst.msk [vmem:[%s3 + $0x2c] sm:$0xf] %vm838, %v827
  %851 = vst.msk [vmem:[%s3 + $0x30] sm:$0xf] %vm838, %v828
  %852 = vst.msk [vmem:[%s3 + $0x34] sm:$0xf] %vm838, %v829
  %853 = vst.msk [vmem:[%s3 + $0x38] sm:$0xf] %vm838, %v830
  %854 = vst.msk [vmem:[%s3 + $0x3c] sm:$0xf] %vm838, %v831
  %855 = vst.msk [vmem:[%s3 + $0x40] sm:$0xf] %vm838, %v832
  %856 = vst.msk [vmem:[%s3 + $0x44] sm:$0xf] %vm838, %v833
  %857 = vst.msk [vmem:[%s3 + $0x48] sm:$0xf] %vm838, %v834
  %858 = vst.msk [vmem:[%s3 + $0x4c] sm:$0xf] %vm838, %v835
  %859 = vst.msk [vmem:[%s3 + $0x50] sm:$0xf] %vm838, %v836
  %860 = vst.msk [vmem:[%s3 + $0x54] sm:$0xf] %vm838, %v837
  // Predicated region
  $region14: #{cnn_base_forward.5} parent=0 // pred_check
    _
  $region15: #{cnn_base_forward.5} parent=0 // pred_check_branch
    %862 = sbr.rel (0) target = $region17
  $region16: #{cnn_base_forward.5} parent=0 // pred_region
    _
  $region17: #{cnn_base_forward.5} parent=0 // pred_fallthru
    _
  // Predicated region
  $region18: #{cnn_base_forward.5} parent=0 // pred_check
    _
  $region19: #{cnn_base_forward.5} parent=0 // pred_check_branch
    %864 = sbr.rel (0) target = $region21
  $region20: #{cnn_base_forward.5} parent=0 // pred_region
    _
  $region21: #{cnn_base_forward.5} parent=0 // pred_fallthru
    _

// kernel: cnn_base_forward.6
$region0: #{cnn_base_forward.6}
  #allocation0 [shape = 'u32[]', space=smem, size = 0x4, offset = 0x4, fixed_abs, tag = 'smem constant byte address 0x4 - core index']
  #allocation1 [shape = 'u32[72,128]{1,0:T(1,128)}', space=vmem, size = 0x9000, scoped, tag = 'internal scratch']
  %s0 = inlined_call_operand.vmem [shape: bf16[112,576], index: 0, kind: input, shape index: {}]
  %s1 = inlined_call_operand.vmem [shape: bf16[576,32], index: 1, kind: input, shape index: {}]
  %s2 = inlined_call_operand.vmem [shape: f32[1,32], index: 2, kind: input, shape index: {}]
  %s3 = inlined_call_operand.vmem [shape: bf16[112,32], index: 3, kind: output, shape index: {}]
  %s4 = sld [smem:[#allocation0]]
  $region22: #{cnn_base_forward.6} parent=0
    _
  %s6 = ssub.s32 1, %s4
  %s7 = scalar_select 0, %s6, %s4
  // Predicated region
  $region2: #{cnn_base_forward.6} parent=0 // pred_check
    _
  $region3: #{cnn_base_forward.6} parent=0 // pred_check_branch
    %9 = sbr.rel (0) target = $region5
  $region4: #{cnn_base_forward.6} parent=0 // pred_region
    _
  $region5: #{cnn_base_forward.6} parent=0 // pred_fallthru
    _
  // Predicated region
  $region6: #{cnn_base_forward.6} parent=0 // pred_check
    _
  $region7: #{cnn_base_forward.6} parent=0 // pred_check_branch
    %11 = sbr.rel (0) target = $region9
  $region8: #{cnn_base_forward.6} parent=0 // pred_region
    _
  $region9: #{cnn_base_forward.6} parent=0 // pred_fallthru
    _
  // Predicated region
  $region10: #{cnn_base_forward.6} parent=0 // pred_check
    _
  $region11: #{cnn_base_forward.6} parent=0 // pred_check_branch
    %13 = sbr.rel (0) target = $region13
  $region12: #{cnn_base_forward.6} parent=0 // pred_region
    _
  $region13: #{cnn_base_forward.6} parent=0 // pred_fallthru
    _
  %v15 = vld [vmem:[%s0] sm:$0xff]
  %v16 = vld [vmem:[%s0 + $0x8] sm:$0xff]
  %v17 = vld [vmem:[%s0 + $0x10] sm:$0xf]
  %v18 = vld [vmem:[%s0 + $0x14] sm:$0xff]
  %v19 = vld [vmem:[%s0 + $0x1c] sm:$0xff]
  %v20 = vld [vmem:[%s0 + $0x24] sm:$0xf]
  %v21 = vld [vmem:[%s0 + $0x28] sm:$0xff]
  %v22 = vld [vmem:[%s0 + $0x30] sm:$0xff]
  %v23 = vld [vmem:[%s0 + $0x38] sm:$0xf]
  %v24 = vld [vmem:[%s0 + $0x3c] sm:$0xff]
  %v25 = vld [vmem:[%s0 + $0x44] sm:$0xff]
  %v26 = vld [vmem:[%s0 + $0x4c] sm:$0xf]
  %v27 = vld [vmem:[%s0 + $0x50] sm:$0xff]
  %v28 = vld [vmem:[%s0 + $0x58] sm:$0xff]
  %v29 = vld [vmem:[%s0 + $0x60] sm:$0xf]
  %v30 = vld [vmem:[%s0 + $0x64] sm:$0xff]
  %v31 = vld [vmem:[%s0 + $0x6c] sm:$0xff]
  %v32 = vld [vmem:[%s0 + $0x74] sm:$0xf]
  %v33 = vld [vmem:[%s0 + $0x78] sm:$0xff]
  %v34 = vld [vmem:[%s0 + $0x80] sm:$0xff]
  %v35 = vld [vmem:[%s0 + $0x88] sm:$0xf]
  %v36 = vld [vmem:[%s0 + $0x8c] sm:$0xff]
  %v37 = vld [vmem:[%s0 + $0x94] sm:$0xff]
  %v38 = vld [vmem:[%s0 + $0x9c] sm:$0xf]
  %v39 = vld [vmem:[%s0 + $0xa0] sm:$0xff]
  %v40 = vld [vmem:[%s0 + $0xa8] sm:$0xff]
  %v41 = vld [vmem:[%s0 + $0xb0] sm:$0xf]
  %v42 = vld [vmem:[%s0 + $0xb4] sm:$0xff]
  %v43 = vld [vmem:[%s0 + $0xbc] sm:$0xff]
  %v44 = vld [vmem:[%s0 + $0xc4] sm:$0xf]
  %v45 = vld [vmem:[%s0 + $0xc8] sm:$0xff]
  %v46 = vld [vmem:[%s0 + $0xd0] sm:$0xff]
  %v47 = vld [vmem:[%s0 + $0xd8] sm:$0xf]
  %v48 = vld [vmem:[%s0 + $0xdc] sm:$0xff]
  %v49 = vld [vmem:[%s0 + $0xe4] sm:$0xff]
  %v50 = vld [vmem:[%s0 + $0xec] sm:$0xf]
  %v51 = vld [vmem:[%s0 + $0xf0] sm:$0xff]
  %v52 = vld [vmem:[%s0 + $0xf8] sm:$0xff]
  %v53 = vld [vmem:[%s0 + $0x100] sm:$0xf]
  %v54 = vld [vmem:[%s0 + $0x104] sm:$0xff]
  %v55 = vld [vmem:[%s0 + $0x10c] sm:$0xff]
  %v56 = vld [vmem:[%s0 + $0x114] sm:$0xf]
  %v57 = vld [vmem:[%s1] sm:$0xf]
  %v58 = vld [vmem:[%s1 + $0x4] sm:$0xf]
  %v59 = vld [vmem:[%s1 + $0x8] sm:$0xf]
  %v60 = vld [vmem:[%s1 + $0xc] sm:$0xf]
  %v61 = vld [vmem:[%s1 + $0x10] sm:$0xf]
  %v62 = vld [vmem:[%s1 + $0x14] sm:$0xf]
  %v63 = vld [vmem:[%s1 + $0x18] sm:$0xf]
  %v64 = vld [vmem:[%s1 + $0x1c] sm:$0xf]
  %v65 = vld [vmem:[%s1 + $0x20] sm:$0xf]
  %v66 = vld [vmem:[%s1 + $0x24] sm:$0xf]
  %v67 = vld [vmem:[%s1 + $0x28] sm:$0xf]
  %v68 = vld [vmem:[%s1 + $0x2c] sm:$0xf]
  %v69 = vld [vmem:[%s1 + $0x30] sm:$0xf]
  %v70 = vld [vmem:[%s1 + $0x34] sm:$0xf]
  %v71 = vld [vmem:[%s1 + $0x38] sm:$0xf]
  %v72 = vld [vmem:[%s1 + $0x3c] sm:$0xf]
  %v73 = vld [vmem:[%s1 + $0x40] sm:$0xf]
  %v74 = vld [vmem:[%s1 + $0x44] sm:$0xf]
  %v75 = vld [vmem:[%s1 + $0x48] sm:$0xf]
  %v76 = vld [vmem:[%s1 + $0x4c] sm:$0xf]
  %v77 = vld [vmem:[%s1 + $0x50] sm:$0xf]
  %v78 = vld [vmem:[%s1 + $0x54] sm:$0xf]
  %v79 = vld [vmem:[%s1 + $0x58] sm:$0xf]
  %v80 = vld [vmem:[%s1 + $0x5c] sm:$0xf]
  %v81 = vld [vmem:[%s1 + $0x60] sm:$0xf]
  %v82 = vld [vmem:[%s1 + $0x64] sm:$0xf]
  %v83 = vld [vmem:[%s1 + $0x68] sm:$0xf]
  %v84 = vld [vmem:[%s1 + $0x6c] sm:$0xf]
  %v85 = vld [vmem:[%s1 + $0x70] sm:$0xf]
  %v86 = vld [vmem:[%s1 + $0x74] sm:$0xf]
  %v87 = vld [vmem:[%s1 + $0x78] sm:$0xf]
  %v88 = vld [vmem:[%s1 + $0x7c] sm:$0xf]
  %v89 = vld [vmem:[%s1 + $0x80] sm:$0xf]
  %v90 = vld [vmem:[%s1 + $0x84] sm:$0xf]
  %v91 = vld [vmem:[%s1 + $0x88] sm:$0xf]
  %v92 = vld [vmem:[%s1 + $0x8c] sm:$0xf]
  %v93 = vld [vmem:[%s1 + $0x90] sm:$0xf]
  %v94 = vld [vmem:[%s1 + $0x94] sm:$0xf]
  %v95 = vld [vmem:[%s1 + $0x98] sm:$0xf]
  %v96 = vld [vmem:[%s1 + $0x9c] sm:$0xf]
  %v97 = vld [vmem:[%s1 + $0xa0] sm:$0xf]
  %v98 = vld [vmem:[%s1 + $0xa4] sm:$0xf]
  %v99 = vld [vmem:[%s1 + $0xa8] sm:$0xf]
  %v100 = vld [vmem:[%s1 + $0xac] sm:$0xf]
  %v101 = vld [vmem:[%s1 + $0xb0] sm:$0xf]
  %v102 = vld [vmem:[%s1 + $0xb4] sm:$0xf]
  %v103 = vld [vmem:[%s1 + $0xb8] sm:$0xf]
  %v104 = vld [vmem:[%s1 + $0xbc] sm:$0xf]
  %v105 = vld [vmem:[%s1 + $0xc0] sm:$0xf]
  %v106 = vld [vmem:[%s1 + $0xc4] sm:$0xf]
  %v107 = vld [vmem:[%s1 + $0xc8] sm:$0xf]
  %v108 = vld [vmem:[%s1 + $0xcc] sm:$0xf]
  %v109 = vld [vmem:[%s1 + $0xd0] sm:$0xf]
  %v110 = vld [vmem:[%s1 + $0xd4] sm:$0xf]
  %v111 = vld [vmem:[%s1 + $0xd8] sm:$0xf]
  %v112 = vld [vmem:[%s1 + $0xdc] sm:$0xf]
  %v113 = vld [vmem:[%s1 + $0xe0] sm:$0xf]
  %v114 = vld [vmem:[%s1 + $0xe4] sm:$0xf]
  %v115 = vld [vmem:[%s1 + $0xe8] sm:$0xf]
  %v116 = vld [vmem:[%s1 + $0xec] sm:$0xf]
  %v117 = vld [vmem:[%s1 + $0xf0] sm:$0xf]
  %v118 = vld [vmem:[%s1 + $0xf4] sm:$0xf]
  %v119 = vld [vmem:[%s1 + $0xf8] sm:$0xf]
  %v120 = vld [vmem:[%s1 + $0xfc] sm:$0xf]
  %v121 = vld [vmem:[%s1 + $0x100] sm:$0xf]
  %v122 = vld [vmem:[%s1 + $0x104] sm:$0xf]
  %v123 = vld [vmem:[%s1 + $0x108] sm:$0xf]
  %v124 = vld [vmem:[%s1 + $0x10c] sm:$0xf]
  %v125 = vld [vmem:[%s1 + $0x110] sm:$0xf]
  %v126 = vld [vmem:[%s1 + $0x114] sm:$0xf]
  %v127 = vld [vmem:[%s1 + $0x118] sm:$0xf]
  %v128 = vld [vmem:[%s1 + $0x11c] sm:$0xf]
  %v129 = vld [vmem:[%s2] sm:$0x1]
  %v131 = vperm.slane %v129, 0
  %v175 = vunpack.c.l.b16 %v15
  %v176 = vunpack.c.h.b16 %v15
  %v177 = vunpack.c.l.b16 %v16
  %v178 = vunpack.c.h.b16 %v16
  %v179 = vunpack.c.l.b16 %v17
  %v180 = vunpack.c.l.b16 %v18
  %v181 = vunpack.c.h.b16 %v18
  %v182 = vunpack.c.l.b16 %v19
  %v183 = vunpack.c.h.b16 %v19
  %v184 = vunpack.c.l.b16 %v20
  %v185 = vunpack.c.l.b16 %v21
  %v186 = vunpack.c.h.b16 %v21
  %v187 = vunpack.c.l.b16 %v22
  %v188 = vunpack.c.h.b16 %v22
  %v189 = vunpack.c.l.b16 %v23
  %v190 = vunpack.c.l.b16 %v24
  %v191 = vunpack.c.h.b16 %v24
  %v192 = vunpack.c.l.b16 %v25
  %v193 = vunpack.c.h.b16 %v25
  %v194 = vunpack.c.l.b16 %v26
  %v195 = vunpack.c.l.b16 %v27
  %v196 = vunpack.c.h.b16 %v27
  %v197 = vunpack.c.l.b16 %v28
  %v198 = vunpack.c.h.b16 %v28
  %v199 = vunpack.c.l.b16 %v29
  %v200 = vunpack.c.l.b16 %v30
  %v201 = vunpack.c.h.b16 %v30
  %v202 = vunpack.c.l.b16 %v31
  %v203 = vunpack.c.h.b16 %v31
  %v204 = vunpack.c.l.b16 %v32
  %v205 = vunpack.c.l.b16 %v33
  %v206 = vunpack.c.h.b16 %v33
  %v207 = vunpack.c.l.b16 %v34
  %v208 = vunpack.c.h.b16 %v34
  %v209 = vunpack.c.l.b16 %v35
  %v210 = vunpack.c.l.b16 %v36
  %v211 = vunpack.c.h.b16 %v36
  %v212 = vunpack.c.l.b16 %v37
  %v213 = vunpack.c.h.b16 %v37
  %v214 = vunpack.c.l.b16 %v38
  %v215 = vunpack.c.l.b16 %v39
  %v216 = vunpack.c.h.b16 %v39
  %v217 = vunpack.c.l.b16 %v40
  %v218 = vunpack.c.h.b16 %v40
  %v219 = vunpack.c.l.b16 %v41
  %v220 = vunpack.c.l.b16 %v42
  %v221 = vunpack.c.h.b16 %v42
  %v222 = vunpack.c.l.b16 %v43
  %v223 = vunpack.c.h.b16 %v43
  %v224 = vunpack.c.l.b16 %v44
  %v225 = vunpack.c.l.b16 %v45
  %v226 = vunpack.c.h.b16 %v45
  %v227 = vunpack.c.l.b16 %v46
  %v228 = vunpack.c.h.b16 %v46
  %v229 = vunpack.c.l.b16 %v47
  %v230 = vunpack.c.l.b16 %v48
  %v231 = vunpack.c.h.b16 %v48
  %v232 = vunpack.c.l.b16 %v49
  %v233 = vunpack.c.h.b16 %v49
  %v234 = vunpack.c.l.b16 %v50
  %v235 = vunpack.c.l.b16 %v51
  %v236 = vunpack.c.h.b16 %v51
  %v237 = vunpack.c.l.b16 %v52
  %v238 = vunpack.c.h.b16 %v52
  %v239 = vunpack.c.l.b16 %v53
  %v240 = vunpack.c.l.b16 %v54
  %v241 = vunpack.c.h.b16 %v54
  %v242 = vunpack.c.l.b16 %v55
  %v243 = vunpack.c.h.b16 %v55
  %v244 = vunpack.c.l.b16 %v56
  %v245 = vpack.c.b16 %v180, %v175
  %v246 = vpack.c.b16 %v181, %v176
  %v247 = vpack.c.b16 %v182, %v177
  %v248 = vpack.c.b16 %v183, %v178
  %v249 = vpack.c.b16 %v184, %v179
  %v250 = vpack.c.b16 %v190, %v185
  %v251 = vpack.c.b16 %v191, %v186
  %v252 = vpack.c.b16 %v192, %v187
  %v253 = vpack.c.b16 %v193, %v188
  %v254 = vpack.c.b16 %v194, %v189
  %v255 = vpack.c.b16 %v200, %v195
  %v256 = vpack.c.b16 %v201, %v196
  %v257 = vpack.c.b16 %v202, %v197
  %v258 = vpack.c.b16 %v203, %v198
  %v259 = vpack.c.b16 %v204, %v199
  %v260 = vpack.c.b16 %v210, %v205
  %v261 = vpack.c.b16 %v211, %v206
  %v262 = vpack.c.b16 %v212, %v207
  %v263 = vpack.c.b16 %v213, %v208
  %v264 = vpack.c.b16 %v214, %v209
  %v265 = vpack.c.b16 %v220, %v215
  %v266 = vpack.c.b16 %v221, %v216
  %v267 = vpack.c.b16 %v222, %v217
  %v268 = vpack.c.b16 %v223, %v218
  %v269 = vpack.c.b16 %v224, %v219
  %v270 = vpack.c.b16 %v230, %v225
  %v271 = vpack.c.b16 %v231, %v226
  %v272 = vpack.c.b16 %v232, %v227
  %v273 = vpack.c.b16 %v233, %v228
  %v274 = vpack.c.b16 %v234, %v229
  %v275 = vpack.c.b16 %v240, %v235
  %v276 = vpack.c.b16 %v241, %v236
  %v277 = vpack.c.b16 %v242, %v237
  %v278 = vpack.c.b16 %v243, %v238
  %v279 = vpack.c.b16 %v244, %v239
  %v380 = vunpack.c.l.b16 %v57
  %v381 = vunpack.c.l.b16 %v58
  %v382 = vunpack.c.l.b16 %v59
  %v383 = vunpack.c.l.b16 %v60
  %v384 = vunpack.c.l.b16 %v61
  %v385 = vunpack.c.l.b16 %v62
  %v386 = vunpack.c.l.b16 %v63
  %v387 = vunpack.c.l.b16 %v64
  %v388 = vunpack.c.l.b16 %v65
  %v389 = vunpack.c.l.b16 %v66
  %v390 = vunpack.c.l.b16 %v67
  %v391 = vunpack.c.l.b16 %v68
  %v392 = vunpack.c.l.b16 %v69
  %v393 = vunpack.c.l.b16 %v70
  %v394 = vunpack.c.l.b16 %v71
  %v395 = vunpack.c.l.b16 %v72
  %v396 = vunpack.c.l.b16 %v73
  %v397 = vunpack.c.l.b16 %v74
  %v398 = vunpack.c.l.b16 %v75
  %v399 = vunpack.c.l.b16 %v76
  %v400 = vunpack.c.l.b16 %v77
  %v401 = vunpack.c.l.b16 %v78
  %v402 = vunpack.c.l.b16 %v79
  %v403 = vunpack.c.l.b16 %v80
  %v404 = vunpack.c.l.b16 %v81
  %v405 = vunpack.c.l.b16 %v82
  %v406 = vunpack.c.l.b16 %v83
  %v407 = vunpack.c.l.b16 %v84
  %v408 = vunpack.c.l.b16 %v85
  %v409 = vunpack.c.l.b16 %v86
  %v410 = vunpack.c.l.b16 %v87
  %v411 = vunpack.c.l.b16 %v88
  %v412 = vunpack.c.l.b16 %v89
  %v413 = vunpack.c.l.b16 %v90
  %v414 = vunpack.c.l.b16 %v91
  %v415 = vunpack.c.l.b16 %v92
  %v416 = vunpack.c.l.b16 %v93
  %v417 = vunpack.c.l.b16 %v94
  %v418 = vunpack.c.l.b16 %v95
  %v419 = vunpack.c.l.b16 %v96
  %v420 = vunpack.c.l.b16 %v97
  %v421 = vunpack.c.l.b16 %v98
  %v422 = vunpack.c.l.b16 %v99
  %v423 = vunpack.c.l.b16 %v100
  %v424 = vunpack.c.l.b16 %v101
  %v425 = vunpack.c.l.b16 %v102
  %v426 = vunpack.c.l.b16 %v103
  %v427 = vunpack.c.l.b16 %v104
  %v428 = vunpack.c.l.b16 %v105
  %v429 = vunpack.c.l.b16 %v106
  %v430 = vunpack.c.l.b16 %v107
  %v431 = vunpack.c.l.b16 %v108
  %v432 = vunpack.c.l.b16 %v109
  %v433 = vunpack.c.l.b16 %v110
  %v434 = vunpack.c.l.b16 %v111
  %v435 = vunpack.c.l.b16 %v112
  %v436 = vunpack.c.l.b16 %v113
  %v437 = vunpack.c.l.b16 %v114
  %v438 = vunpack.c.l.b16 %v115
  %v439 = vunpack.c.l.b16 %v116
  %v440 = vunpack.c.l.b16 %v117
  %v441 = vunpack.c.l.b16 %v118
  %v442 = vunpack.c.l.b16 %v119
  %v443 = vunpack.c.l.b16 %v120
  %v444 = vunpack.c.l.b16 %v121
  %v445 = vunpack.c.l.b16 %v122
  %v446 = vunpack.c.l.b16 %v123
  %v447 = vunpack.c.l.b16 %v124
  %v448 = vunpack.c.l.b16 %v125
  %v449 = vunpack.c.l.b16 %v126
  %v450 = vunpack.c.l.b16 %v127
  %v451 = vunpack.c.l.b16 %v128
  %v452 = vpack.c.b16 %v381, %v380
  %v453 = vpack.c.b16 %v383, %v382
  %v454 = vpack.c.b16 %v385, %v384
  %v455 = vpack.c.b16 %v387, %v386
  %v456 = vpack.c.b16 %v389, %v388
  %v457 = vpack.c.b16 %v391, %v390
  %v458 = vpack.c.b16 %v393, %v392
  %v459 = vpack.c.b16 %v395, %v394
  %v460 = vpack.c.b16 %v397, %v396
  %v461 = vpack.c.b16 %v399, %v398
  %v462 = vpack.c.b16 %v401, %v400
  %v463 = vpack.c.b16 %v403, %v402
  %v464 = vpack.c.b16 %v405, %v404
  %v465 = vpack.c.b16 %v407, %v406
  %v466 = vpack.c.b16 %v409, %v408
  %v467 = vpack.c.b16 %v411, %v410
  %v468 = vpack.c.b16 %v413, %v412
  %v469 = vpack.c.b16 %v415, %v414
  %v470 = vpack.c.b16 %v417, %v416
  %v471 = vpack.c.b16 %v419, %v418
  %v472 = vpack.c.b16 %v421, %v420
  %v473 = vpack.c.b16 %v423, %v422
  %v474 = vpack.c.b16 %v425, %v424
  %v475 = vpack.c.b16 %v427, %v426
  %v476 = vpack.c.b16 %v429, %v428
  %v477 = vpack.c.b16 %v431, %v430
  %v478 = vpack.c.b16 %v433, %v432
  %v479 = vpack.c.b16 %v435, %v434
  %v480 = vpack.c.b16 %v437, %v436
  %v481 = vpack.c.b16 %v439, %v438
  %v482 = vpack.c.b16 %v441, %v440
  %v483 = vpack.c.b16 %v443, %v442
  %v484 = vpack.c.b16 %v445, %v444
  %v485 = vpack.c.b16 %v447, %v446
  %v486 = vpack.c.b16 %v449, %v448
  %v487 = vpack.c.b16 %v451, %v450
  %vm524 = vcmask 523264
  %v526 = vsel %vm524, %v249, 0
  %v529 = vsel %vm524, %v254, 0
  %v532 = vsel %vm524, %v259, 0
  %v535 = vsel %vm524, %v264, 0
  %v538 = vsel %vm524, %v269, 0
  %v541 = vsel %vm524, %v274, 0
  %v544 = vsel %vm524, %v279, 0
  %546 = vmatpush.bf16.msra.mxu0 %v459
  %547 = vmatpush.bf16.msra.mxu0 %v458
  %548 = vmatpush.bf16.msra.mxu0 %v457
  %549 = vmatpush.bf16.msra.mxu0 %v456
  %550 = vmatpush.bf16.msra.mxu0 %v455
  %551 = vmatpush.bf16.msra.mxu0 %v454
  %552 = vmatpush.bf16.msra.mxu0 %v453
  %553 = vmatpush.bf16.msra.mxu0 %v452
  %554 = vmatmul.bf16.gmra.mxu0 %v245
  %v555 = vpop.f32.mrf.mxu0
  %v556 = vadd.f32 %v131, %v555
  %v557 = vpop.f32.mrf.mxu0
  %v558 = vadd.f32 %v131, %v557
  %559 = vmatmul.bf16.gmra.mxu0 %v250
  %v560 = vpop.f32.mrf.mxu0
  %v561 = vadd.f32 %v131, %v560
  %v562 = vpop.f32.mrf.mxu0
  %v563 = vadd.f32 %v131, %v562
  %564 = vmatmul.bf16.gmra.mxu0 %v255
  %v565 = vpop.f32.mrf.mxu0
  %v566 = vadd.f32 %v131, %v565
  %v567 = vpop.f32.mrf.mxu0
  %v568 = vadd.f32 %v131, %v567
  %569 = vmatmul.bf16.gmra.mxu0 %v260
  %v570 = vpop.f32.mrf.mxu0
  %v571 = vadd.f32 %v131, %v570
  %v572 = vpop.f32.mrf.mxu0
  %v573 = vadd.f32 %v131, %v572
  %574 = vmatmul.bf16.gmra.mxu0 %v265
  %v575 = vpop.f32.mrf.mxu0
  %v576 = vadd.f32 %v131, %v575
  %v577 = vpop.f32.mrf.mxu0
  %v578 = vadd.f32 %v131, %v577
  %579 = vmatmul.bf16.gmra.mxu0 %v270
  %v580 = vpop.f32.mrf.mxu0
  %v581 = vadd.f32 %v131, %v580
  %v582 = vpop.f32.mrf.mxu0
  %v583 = vadd.f32 %v131, %v582
  %584 = vmatmul.bf16.gmra.mxu0 %v275
  %v585 = vpop.f32.mrf.mxu0
  %v586 = vadd.f32 %v131, %v585
  %v587 = vpop.f32.mrf.mxu0
  %v588 = vadd.f32 %v131, %v587
  %589 = vdwg.mxu0
  %590 = vmatpush.bf16.msra.mxu0 %v467
  %591 = vmatpush.bf16.msra.mxu0 %v466
  %592 = vmatpush.bf16.msra.mxu0 %v465
  %593 = vmatpush.bf16.msra.mxu0 %v464
  %594 = vmatpush.bf16.msra.mxu0 %v463
  %595 = vmatpush.bf16.msra.mxu0 %v462
  %596 = vmatpush.bf16.msra.mxu0 %v461
  %597 = vmatpush.bf16.msra.mxu0 %v460
  %598 = vmatmul.bf16.gmra.mxu0 %v246
  %v599 = vpop.f32.mrf.mxu0
  %v600 = vadd.f32 %v556, %v599
  %v601 = vpop.f32.mrf.mxu0
  %v602 = vadd.f32 %v558, %v601
  %603 = vmatmul.bf16.gmra.mxu0 %v251
  %v604 = vpop.f32.mrf.mxu0
  %v605 = vadd.f32 %v561, %v604
  %v606 = vpop.f32.mrf.mxu0
  %v607 = vadd.f32 %v563, %v606
  %608 = vmatmul.bf16.gmra.mxu0 %v256
  %v609 = vpop.f32.mrf.mxu0
  %v610 = vadd.f32 %v566, %v609
  %v611 = vpop.f32.mrf.mxu0
  %v612 = vadd.f32 %v568, %v611
  %613 = vmatmul.bf16.gmra.mxu0 %v261
  %v614 = vpop.f32.mrf.mxu0
  %v615 = vadd.f32 %v571, %v614
  %v616 = vpop.f32.mrf.mxu0
  %v617 = vadd.f32 %v573, %v616
  %618 = vmatmul.bf16.gmra.mxu0 %v266
  %v619 = vpop.f32.mrf.mxu0
  %v620 = vadd.f32 %v576, %v619
  %v621 = vpop.f32.mrf.mxu0
  %v622 = vadd.f32 %v578, %v621
  %623 = vmatmul.bf16.gmra.mxu0 %v271
  %v624 = vpop.f32.mrf.mxu0
  %v625 = vadd.f32 %v581, %v624
  %v626 = vpop.f32.mrf.mxu0
  %v627 = vadd.f32 %v583, %v626
  %628 = vmatmul.bf16.gmra.mxu0 %v276
  %v629 = vpop.f32.mrf.mxu0
  %v630 = vadd.f32 %v586, %v629
  %v631 = vpop.f32.mrf.mxu0
  %v632 = vadd.f32 %v588, %v631
  %633 = vdwg.mxu0
  %634 = vmatpush.bf16.msra.mxu0 %v475
  %635 = vmatpush.bf16.msra.mxu0 %v474
  %636 = vmatpush.bf16.msra.mxu0 %v473
  %637 = vmatpush.bf16.msra.mxu0 %v472
  %638 = vmatpush.bf16.msra.mxu0 %v471
  %639 = vmatpush.bf16.msra.mxu0 %v470
  %640 = vmatpush.bf16.msra.mxu0 %v469
  %641 = vmatpush.bf16.msra.mxu0 %v468
  %642 = vmatmul.bf16.gmra.mxu0 %v247
  %v643 = vpop.f32.mrf.mxu0
  %v644 = vadd.f32 %v600, %v643
  %v645 = vpop.f32.mrf.mxu0
  %v646 = vadd.f32 %v602, %v645
  %647 = vmatmul.bf16.gmra.mxu0 %v252
  %v648 = vpop.f32.mrf.mxu0
  %v649 = vadd.f32 %v605, %v648
  %v650 = vpop.f32.mrf.mxu0
  %v651 = vadd.f32 %v607, %v650
  %652 = vmatmul.bf16.gmra.mxu0 %v257
  %v653 = vpop.f32.mrf.mxu0
  %v654 = vadd.f32 %v610, %v653
  %v655 = vpop.f32.mrf.mxu0
  %v656 = vadd.f32 %v612, %v655
  %657 = vmatmul.bf16.gmra.mxu0 %v262
  %v658 = vpop.f32.mrf.mxu0
  %v659 = vadd.f32 %v615, %v658
  %v660 = vpop.f32.mrf.mxu0
  %v661 = vadd.f32 %v617, %v660
  %662 = vmatmul.bf16.gmra.mxu0 %v267
  %v663 = vpop.f32.mrf.mxu0
  %v664 = vadd.f32 %v620, %v663
  %v665 = vpop.f32.mrf.mxu0
  %v666 = vadd.f32 %v622, %v665
  %667 = vmatmul.bf16.gmra.mxu0 %v272
  %v668 = vpop.f32.mrf.mxu0
  %v669 = vadd.f32 %v625, %v668
  %v670 = vpop.f32.mrf.mxu0
  %v671 = vadd.f32 %v627, %v670
  %672 = vmatmul.bf16.gmra.mxu0 %v277
  %v673 = vpop.f32.mrf.mxu0
  %v674 = vadd.f32 %v630, %v673
  %v675 = vpop.f32.mrf.mxu0
  %v676 = vadd.f32 %v632, %v675
  %677 = vdwg.mxu0
  %678 = vmatpush.bf16.msra.mxu0 %v483
  %679 = vmatpush.bf16.msra.mxu0 %v482
  %680 = vmatpush.bf16.msra.mxu0 %v481
  %681 = vmatpush.bf16.msra.mxu0 %v480
  %682 = vmatpush.bf16.msra.mxu0 %v479
  %683 = vmatpush.bf16.msra.mxu0 %v478
  %684 = vmatpush.bf16.msra.mxu0 %v477
  %685 = vmatpush.bf16.msra.mxu0 %v476
  %686 = vmatmul.bf16.gmra.mxu0 %v248
  %v687 = vpop.f32.mrf.mxu0
  %v688 = vadd.f32 %v644, %v687
  %v689 = vpop.f32.mrf.mxu0
  %v690 = vadd.f32 %v646, %v689
  %691 = vmatmul.bf16.gmra.mxu0 %v253
  %v692 = vpop.f32.mrf.mxu0
  %v693 = vadd.f32 %v649, %v692
  %v694 = vpop.f32.mrf.mxu0
  %v695 = vadd.f32 %v651, %v694
  %696 = vmatmul.bf16.gmra.mxu0 %v258
  %v697 = vpop.f32.mrf.mxu0
  %v698 = vadd.f32 %v654, %v697
  %v699 = vpop.f32.mrf.mxu0
  %v700 = vadd.f32 %v656, %v699
  %701 = vmatmul.bf16.gmra.mxu0 %v263
  %v702 = vpop.f32.mrf.mxu0
  %v703 = vadd.f32 %v659, %v702
  %v704 = vpop.f32.mrf.mxu0
  %v705 = vadd.f32 %v661, %v704
  %706 = vmatmul.bf16.gmra.mxu0 %v268
  %v707 = vpop.f32.mrf.mxu0
  %v708 = vadd.f32 %v664, %v707
  %v709 = vpop.f32.mrf.mxu0
  %v710 = vadd.f32 %v666, %v709
  %711 = vmatmul.bf16.gmra.mxu0 %v273
  %v712 = vpop.f32.mrf.mxu0
  %v713 = vadd.f32 %v669, %v712
  %v714 = vpop.f32.mrf.mxu0
  %v715 = vadd.f32 %v671, %v714
  %716 = vmatmul.bf16.gmra.mxu0 %v278
  %v717 = vpop.f32.mrf.mxu0
  %v718 = vadd.f32 %v674, %v717
  %v719 = vpop.f32.mrf.mxu0
  %v720 = vadd.f32 %v676, %v719
  %721 = vdwg.mxu0
  %722 = vmatpush.bf16.msra.mxu0 0
  %723 = vmatpush.bf16.msra.mxu0 0
  %724 = vmatpush.bf16.msra.mxu0 0
  %725 = vmatpush.bf16.msra.mxu0 0
  %726 = vmatpush.bf16.msra.mxu0 %v487
  %727 = vmatpush.bf16.msra.mxu0 %v486
  %728 = vmatpush.bf16.msra.mxu0 %v485
  %729 = vmatpush.bf16.msra.mxu0 %v484
  %730 = vmatmul.bf16.gmra.mxu0 %v526
  %v731 = vpop.f32.mrf.mxu0
  %v732 = vadd.f32 %v688, %v731
  %v733 = vpop.f32.mrf.mxu0
  %v734 = vadd.f32 %v690, %v733
  %735 = vmatmul.bf16.gmra.mxu0 %v529
  %v736 = vpop.f32.mrf.mxu0
  %v737 = vadd.f32 %v693, %v736
  %v738 = vpop.f32.mrf.mxu0
  %v739 = vadd.f32 %v695, %v738
  %740 = vmatmul.bf16.gmra.mxu0 %v532
  %v741 = vpop.f32.mrf.mxu0
  %v742 = vadd.f32 %v698, %v741
  %v743 = vpop.f32.mrf.mxu0
  %v744 = vadd.f32 %v700, %v743
  %745 = vmatmul.bf16.gmra.mxu0 %v535
  %v746 = vpop.f32.mrf.mxu0
  %v747 = vadd.f32 %v703, %v746
  %v748 = vpop.f32.mrf.mxu0
  %v749 = vadd.f32 %v705, %v748
  %750 = vmatmul.bf16.gmra.mxu0 %v538
  %v751 = vpop.f32.mrf.mxu0
  %v752 = vadd.f32 %v708, %v751
  %v753 = vpop.f32.mrf.mxu0
  %v754 = vadd.f32 %v710, %v753
  %755 = vmatmul.bf16.gmra.mxu0 %v541
  %v756 = vpop.f32.mrf.mxu0
  %v757 = vadd.f32 %v713, %v756
  %v758 = vpop.f32.mrf.mxu0
  %v759 = vadd.f32 %v715, %v758
  %760 = vmatmul.bf16.gmra.mxu0 %v544
  %v761 = vpop.f32.mrf.mxu0
  %v762 = vadd.f32 %v718, %v761
  %v763 = vpop.f32.mrf.mxu0
  %v764 = vadd.f32 %v720, %v763
  %765 = vdwg.mxu0
  %v766 = vmax.f32 %v732, 0.0
  %v767 = vmax.f32 %v734, 0.0
  %v768 = vmax.f32 %v737, 0.0
  %v769 = vmax.f32 %v739, 0.0
  %v770 = vmax.f32 %v742, 0.0
  %v771 = vmax.f32 %v744, 0.0
  %v772 = vmax.f32 %v747, 0.0
  %v773 = vmax.f32 %v749, 0.0
  %v774 = vmax.f32 %v752, 0.0
  %v775 = vmax.f32 %v754, 0.0
  %v776 = vmax.f32 %v757, 0.0
  %v777 = vmax.f32 %v759, 0.0
  %v778 = vmax.f32 %v762, 0.0
  %v779 = vmax.f32 %v764, 0.0
  %v780 = vpack.c.bf16 %v766, %v766
  %v781 = vpack.c.bf16 %v767, %v767
  %v782 = vpack.c.bf16 %v768, %v768
  %v783 = vpack.c.bf16 %v769, %v769
  %v784 = vpack.c.bf16 %v770, %v770
  %v785 = vpack.c.bf16 %v771, %v771
  %v786 = vpack.c.bf16 %v772, %v772
  %v787 = vpack.c.bf16 %v773, %v773
  %v788 = vpack.c.bf16 %v774, %v774
  %v789 = vpack.c.bf16 %v775, %v775
  %v790 = vpack.c.bf16 %v776, %v776
  %v791 = vpack.c.bf16 %v777, %v777
  %v792 = vpack.c.bf16 %v778, %v778
  %v793 = vpack.c.bf16 %v779, %v779
  %vm794 = vcmask 257024
  %795 = vst.msk [vmem:[%s3] sm:$0xf] %vm794, %v780
  %796 = vst.msk [vmem:[%s3 + $0x4] sm:$0xf] %vm794, %v781
  %797 = vst.msk [vmem:[%s3 + $0x8] sm:$0xf] %vm794, %v782
  %798 = vst.msk [vmem:[%s3 + $0xc] sm:$0xf] %vm794, %v783
  %799 = vst.msk [vmem:[%s3 + $0x10] sm:$0xf] %vm794, %v784
  %800 = vst.msk [vmem:[%s3 + $0x14] sm:$0xf] %vm794, %v785
  %801 = vst.msk [vmem:[%s3 + $0x18] sm:$0xf] %vm794, %v786
  %802 = vst.msk [vmem:[%s3 + $0x1c] sm:$0xf] %vm794, %v787
  %803 = vst.msk [vmem:[%s3 + $0x20] sm:$0xf] %vm794, %v788
  %804 = vst.msk [vmem:[%s3 + $0x24] sm:$0xf] %vm794, %v789
  %805 = vst.msk [vmem:[%s3 + $0x28] sm:$0xf] %vm794, %v790
  %806 = vst.msk [vmem:[%s3 + $0x2c] sm:$0xf] %vm794, %v791
  %807 = vst.msk [vmem:[%s3 + $0x30] sm:$0xf] %vm794, %v792
  %808 = vst.msk [vmem:[%s3 + $0x34] sm:$0xf] %vm794, %v793
  // Predicated region
  $region14: #{cnn_base_forward.6} parent=0 // pred_check
    _
  $region15: #{cnn_base_forward.6} parent=0 // pred_check_branch
    %810 = sbr.rel (0) target = $region17
  $region16: #{cnn_base_forward.6} parent=0 // pred_region
    _
  $region17: #{cnn_base_forward.6} parent=0 // pred_fallthru
    _
  // Predicated region
  $region18: #{cnn_base_forward.6} parent=0 // pred_check
    _
  $region19: #{cnn_base_forward.6} parent=0 // pred_check_branch
    %812 = sbr.rel (0) target = $region21
  $region20: #{cnn_base_forward.6} parent=0 // pred_region
    _
  $region21: #{cnn_base_forward.6} parent=0 // pred_fallthru
    _

// kernel: cnn_base_forward.7
$region0: #{cnn_base_forward.7}
  #allocation0 [shape = 'u32[]', space=smem, size = 0x4, offset = 0x4, fixed_abs, tag = 'smem constant byte address 0x4 - core index']
  #allocation1 [shape = 'u32[72,128]{1,0:T(1,128)}', space=vmem, size = 0x9000, scoped, tag = 'internal scratch']
  #allocation2 [shape = 'f32[1,1]{1,0:T(1,128)S(1)}', space=vmem, size = 0x200, scoped, tag = 'scoped memory for cnn_base_forward.7']
  %s0 = inlined_call_operand.vmem [shape: bf16[16,1568], index: 0, kind: input, shape index: {}]
  %s1 = inlined_call_operand.vmem [shape: bf16[1568,512], index: 1, kind: input, shape index: {}]
  %s2 = inlined_call_operand.vmem [shape: f32[1,512], index: 2, kind: input, shape index: {}]
  %s3 = inlined_call_operand.vmem [shape: f32[1,512], index: 3, kind: input, shape index: {}]
  %s4 = inlined_call_operand.<no memory space> [shape: f32[1,1], index: 4, kind: input, shape index: {}]
  %s5 = inlined_call_operand.vmem [shape: f32[16,512], index: 5, kind: output, shape index: {0}]
  %s6 = inlined_call_operand.vmem [shape: f32[16,1], index: 6, kind: output, shape index: {1}]
  %7 = xla_tuple %s5, %s6
  %s8 = sld [smem:[#allocation0]]
  $region38: #{cnn_base_forward.7} parent=0
    _
  %s10 = ssub.s32 1, %s8
  %s11 = scalar_select 0, %s10, %s8
  %v12 = vstv %s4
  %13 = vst [vmem:[#allocation2] sm:$0x1] %v12
  // Predicated region
  $region2: #{cnn_base_forward.7} parent=0 // pred_check
    _
  $region3: #{cnn_base_forward.7} parent=0 // pred_check_branch
    %15 = sbr.rel (0) target = $region5
  $region4: #{cnn_base_forward.7} parent=0 // pred_region
    _
  $region5: #{cnn_base_forward.7} parent=0 // pred_fallthru
    _
  // Predicated region
  $region6: #{cnn_base_forward.7} parent=0 // pred_check
    _
  $region7: #{cnn_base_forward.7} parent=0 // pred_check_branch
    %17 = sbr.rel (0) target = $region9
  $region8: #{cnn_base_forward.7} parent=0 // pred_region
    _
  $region9: #{cnn_base_forward.7} parent=0 // pred_fallthru
    _
  // Predicated region
  $region10: #{cnn_base_forward.7} parent=0 // pred_check
    _
  $region11: #{cnn_base_forward.7} parent=0 // pred_check_branch
    %19 = sbr.rel (0) target = $region13
  $region12: #{cnn_base_forward.7} parent=0 // pred_region
    _
  $region13: #{cnn_base_forward.7} parent=0 // pred_fallthru
    _
  // Predicated region
  $region14: #{cnn_base_forward.7} parent=0 // pred_check
    _
  $region15: #{cnn_base_forward.7} parent=0 // pred_check_branch
    %21 = sbr.rel (0) target = $region17
  $region16: #{cnn_base_forward.7} parent=0 // pred_region
    _
  $region17: #{cnn_base_forward.7} parent=0 // pred_fallthru
    _
  // Predicated region
  $region18: #{cnn_base_forward.7} parent=0 // pred_check
    _
  $region19: #{cnn_base_forward.7} parent=0 // pred_check_branch
    %23 = sbr.rel (0) target = $region21
  $region20: #{cnn_base_forward.7} parent=0 // pred_region
    _
  $region21: #{cnn_base_forward.7} parent=0 // pred_fallthru
    _
  %v25 = vld [vmem:[%s0] sm:$0xff]
  %v26 = vld [vmem:[%s0 + $0x8] sm:$0xff]
  %v27 = vld [vmem:[%s0 + $0x10] sm:$0xff]
  %v28 = vld [vmem:[%s0 + $0x18] sm:$0xff]
  %v29 = vld [vmem:[%s0 + $0x20] sm:$0xff]
  %v30 = vld [vmem:[%s0 + $0x28] sm:$0xff]
  %v31 = vld [vmem:[%s0 + $0x30] sm:$0xf]
  %v32 = vld [vmem:[%s0 + $0x34] sm:$0xff]
  %v33 = vld [vmem:[%s0 + $0x3c] sm:$0xff]
  %v34 = vld [vmem:[%s0 + $0x44] sm:$0xff]
  %v35 = vld [vmem:[%s0 + $0x4c] sm:$0xff]
  %v36 = vld [vmem:[%s0 + $0x54] sm:$0xff]
  %v37 = vld [vmem:[%s0 + $0x5c] sm:$0xff]
  %v38 = vld [vmem:[%s0 + $0x64] sm:$0xf]
  %v39 = vld [vmem:[%s1] sm:$0xff]
  %v40 = vld [vmem:[%s1 + $0x8] sm:$0xff]
  %v41 = vld [vmem:[%s1 + $0x10] sm:$0xff]
  %v42 = vld [vmem:[%s1 + $0x18] sm:$0xff]
  %v43 = vld [vmem:[%s1 + $0x20] sm:$0xff]
  %v44 = vld [vmem:[%s1 + $0x28] sm:$0xff]
  %v45 = vld [vmem:[%s1 + $0x30] sm:$0xff]
  %v46 = vld [vmem:[%s1 + $0x38] sm:$0xff]
  %v47 = vld [vmem:[%s1 + $0x40] sm:$0xff]
  %v48 = vld [vmem:[%s1 + $0x48] sm:$0xff]
  %v49 = vld [vmem:[%s1 + $0x50] sm:$0xff]
  %v50 = vld [vmem:[%s1 + $0x58] sm:$0xff]
  %v51 = vld [vmem:[%s1 + $0x60] sm:$0xff]
  %v52 = vld [vmem:[%s1 + $0x68] sm:$0xff]
  %v53 = vld [vmem:[%s1 + $0x70] sm:$0xff]
  %v54 = vld [vmem:[%s1 + $0x78] sm:$0xff]
  %v55 = vld [vmem:[%s1 + $0x80] sm:$0xff]
  %v56 = vld [vmem:[%s1 + $0x88] sm:$0xff]
  %v57 = vld [vmem:[%s1 + $0x90] sm:$0xff]
  %v58 = vld [vmem:[%s1 + $0x98] sm:$0xff]
  %v59 = vld [vmem:[%s1 + $0xa0] sm:$0xff]
  %v60 = vld [vmem:[%s1 + $0xa8] sm:$0xff]
  %v61 = vld [vmem:[%s1 + $0xb0] sm:$0xff]
  %v62 = vld [vmem:[%s1 + $0xb8] sm:$0xff]
  %v63 = vld [vmem:[%s1 + $0xc0] sm:$0xff]
  %v64 = vld [vmem:[%s1 + $0xc8] sm:$0xff]
  %v65 = vld [vmem:[%s1 + $0xd0] sm:$0xff]
  %v66 = vld [vmem:[%s1 + $0xd8] sm:$0xff]
  %v67 = vld [vmem:[%s1 + $0xe0] sm:$0xff]
  %v68 = vld [vmem:[%s1 + $0xe8] sm:$0xff]
  %v69 = vld [vmem:[%s1 + $0xf0] sm:$0xff]
  %v70 = vld [vmem:[%s1 + $0xf8] sm:$0xff]
  %v71 = vld [vmem:[%s1 + $0x100] sm:$0xff]
  %v72 = vld [vmem:[%s1 + $0x108] sm:$0xff]
  %v73 = vld [vmem:[%s1 + $0x110] sm:$0xff]
  %v74 = vld [vmem:[%s1 + $0x118] sm:$0xff]
  %v75 = vld [vmem:[%s1 + $0x120] sm:$0xff]
  %v76 = vld [vmem:[%s1 + $0x128] sm:$0xff]
  %v77 = vld [vmem:[%s1 + $0x130] sm:$0xff]
  %v78 = vld [vmem:[%s1 + $0x138] sm:$0xff]
  %v79 = vld [vmem:[%s1 + $0x140] sm:$0xff]
  %v80 = vld [vmem:[%s1 + $0x148] sm:$0xff]
  %v81 = vld [vmem:[%s1 + $0x150] sm:$0xff]
  %v82 = vld [vmem:[%s1 + $0x158] sm:$0xff]
  %v83 = vld [vmem:[%s1 + $0x160] sm:$0xff]
  %v84 = vld [vmem:[%s1 + $0x168] sm:$0xff]
  %v85 = vld [vmem:[%s1 + $0x170] sm:$0xff]
  %v86 = vld [vmem:[%s1 + $0x178] sm:$0xff]
  %v87 = vld [vmem:[%s1 + $0x180] sm:$0xff]
  %v88 = vld [vmem:[%s1 + $0x188] sm:$0xff]
  %v89 = vld [vmem:[%s1 + $0x190] sm:$0xff]
  %v90 = vld [vmem:[%s1 + $0x198] sm:$0xff]
  %v91 = vld [vmem:[%s1 + $0x1a0] sm:$0xff]
  %v92 = vld [vmem:[%s1 + $0x1a8] sm:$0xff]
  %v93 = vld [vmem:[%s1 + $0x1b0] sm:$0xff]
  %v94 = vld [vmem:[%s1 + $0x1b8] sm:$0xff]
  %v95 = vld [vmem:[%s1 + $0x1c0] sm:$0xff]
  %v96 = vld [vmem:[%s1 + $0x1c8] sm:$0xff]
  %v97 = vld [vmem:[%s1 + $0x1d0] sm:$0xff]
  %v98 = vld [vmem:[%s1 + $0x1d8] sm:$0xff]
  %v99 = vld [vmem:[%s1 + $0x1e0] sm:$0xff]
  %v100 = vld [vmem:[%s1 + $0x1e8] sm:$0xff]
  %v101 = vld [vmem:[%s1 + $0x1f0] sm:$0xff]
  %v102 = vld [vmem:[%s1 + $0x1f8] sm:$0xff]
  %v103 = vld [vmem:[%s1 + $0x200] sm:$0xff]
  %v104 = vld [vmem:[%s1 + $0x208] sm:$0xff]
  %v105 = vld [vmem:[%s1 + $0x210] sm:$0xff]
  %v106 = vld [vmem:[%s1 + $0x218] sm:$0xff]
  %v107 = vld [vmem:[%s1 + $0x220] sm:$0xff]
  %v108 = vld [vmem:[%s1 + $0x228] sm:$0xff]
  %v109 = vld [vmem:[%s1 + $0x230] sm:$0xff]
  %v110 = vld [vmem:[%s1 + $0x238] sm:$0xff]
  %v111 = vld [vmem:[%s1 + $0x240] sm:$0xff]
  %v112 = vld [vmem:[%s1 + $0x248] sm:$0xff]
  %v113 = vld [vmem:[%s1 + $0x250] sm:$0xff]
  %v114 = vld [vmem:[%s1 + $0x258] sm:$0xff]
  %v115 = vld [vmem:[%s1 + $0x260] sm:$0xff]
  %v116 = vld [vmem:[%s1 + $0x268] sm:$0xff]
  %v117 = vld [vmem:[%s1 + $0x270] sm:$0xff]
  %v118 = vld [vmem:[%s1 + $0x278] sm:$0xff]
  %v119 = vld [vmem:[%s1 + $0x280] sm:$0xff]
  %v120 = vld [vmem:[%s1 + $0x288] sm:$0xff]
  %v121 = vld [vmem:[%s1 + $0x290] sm:$0xff]
  %v122 = vld [vmem:[%s1 + $0x298] sm:$0xff]
  %v123 = vld [vmem:[%s1 + $0x2a0] sm:$0xff]
  %v124 = vld [vmem:[%s1 + $0x2a8] sm:$0xff]
  %v125 = vld [vmem:[%s1 + $0x2b0] sm:$0xff]
  %v126 = vld [vmem:[%s1 + $0x2b8] sm:$0xff]
  %v127 = vld [vmem:[%s1 + $0x2c0] sm:$0xff]
  %v128 = vld [vmem:[%s1 + $0x2c8] sm:$0xff]
  %v129 = vld [vmem:[%s1 + $0x2d0] sm:$0xff]
  %v130 = vld [vmem:[%s1 + $0x2d8] sm:$0xff]
  %v131 = vld [vmem:[%s1 + $0x2e0] sm:$0xff]
  %v132 = vld [vmem:[%s1 + $0x2e8] sm:$0xff]
  %v133 = vld [vmem:[%s1 + $0x2f0] sm:$0xff]
  %v134 = vld [vmem:[%s1 + $0x2f8] sm:$0xff]
  %v135 = vld [vmem:[%s1 + $0x300] sm:$0xff]
  %v136 = vld [vmem:[%s1 + $0x308] sm:$0xff]
  %v137 = vld [vmem:[%s1 + $0x310] sm:$0xff]
  %v138 = vld [vmem:[%s1 + $0x318] sm:$0xff]
  %v139 = vld [vmem:[%s1 + $0x320] sm:$0xff]
  %v140 = vld [vmem:[%s1 + $0x328] sm:$0xff]
  %v141 = vld [vmem:[%s1 + $0x330] sm:$0xff]
  %v142 = vld [vmem:[%s1 + $0x338] sm:$0xff]
  %v143 = vld [vmem:[%s1 + $0x340] sm:$0xff]
  %v144 = vld [vmem:[%s1 + $0x348] sm:$0xff]
  %v145 = vld [vmem:[%s1 + $0x350] sm:$0xff]
  %v146 = vld [vmem:[%s1 + $0x358] sm:$0xff]
  %v147 = vld [vmem:[%s1 + $0x360] sm:$0xff]
  %v148 = vld [vmem:[%s1 + $0x368] sm:$0xff]
  %v149 = vld [vmem:[%s1 + $0x370] sm:$0xff]
  %v150 = vld [vmem:[%s1 + $0x378] sm:$0xff]
  %v151 = vld [vmem:[%s1 + $0x380] sm:$0xff]
  %v152 = vld [vmem:[%s1 + $0x388] sm:$0xff]
  %v153 = vld [vmem:[%s1 + $0x390] sm:$0xff]
  %v154 = vld [vmem:[%s1 + $0x398] sm:$0xff]
  %v155 = vld [vmem:[%s1 + $0x3a0] sm:$0xff]
  %v156 = vld [vmem:[%s1 + $0x3a8] sm:$0xff]
  %v157 = vld [vmem:[%s1 + $0x3b0] sm:$0xff]
  %v158 = vld [vmem:[%s1 + $0x3b8] sm:$0xff]
  %v159 = vld [vmem:[%s1 + $0x3c0] sm:$0xff]
  %v160 = vld [vmem:[%s1 + $0x3c8] sm:$0xff]
  %v161 = vld [vmem:[%s1 + $0x3d0] sm:$0xff]
  %v162 = vld [vmem:[%s1 + $0x3d8] sm:$0xff]
  %v163 = vld [vmem:[%s1 + $0x3e0] sm:$0xff]
  %v164 = vld [vmem:[%s1 + $0x3e8] sm:$0xff]
  %v165 = vld [vmem:[%s1 + $0x3f0] sm:$0xff]
  %v166 = vld [vmem:[%s1 + $0x3f8] sm:$0xff]
  %v167 = vld [vmem:[%s1 + $0x400] sm:$0xff]
  %v168 = vld [vmem:[%s1 + $0x408] sm:$0xff]
  %v169 = vld [vmem:[%s1 + $0x410] sm:$0xff]
  %v170 = vld [vmem:[%s1 + $0x418] sm:$0xff]
  %v171 = vld [vmem:[%s1 + $0x420] sm:$0xff]
  %v172 = vld [vmem:[%s1 + $0x428] sm:$0xff]
  %v173 = vld [vmem:[%s1 + $0x430] sm:$0xff]
  %v174 = vld [vmem:[%s1 + $0x438] sm:$0xff]
  %v175 = vld [vmem:[%s1 + $0x440] sm:$0xff]
  %v176 = vld [vmem:[%s1 + $0x448] sm:$0xff]
  %v177 = vld [vmem:[%s1 + $0x450] sm:$0xff]
  %v178 = vld [vmem:[%s1 + $0x458] sm:$0xff]
  %v179 = vld [vmem:[%s1 + $0x460] sm:$0xff]
  %v180 = vld [vmem:[%s1 + $0x468] sm:$0xff]
  %v181 = vld [vmem:[%s1 + $0x470] sm:$0xff]
  %v182 = vld [vmem:[%s1 + $0x478] sm:$0xff]
  %v183 = vld [vmem:[%s1 + $0x480] sm:$0xff]
  %v184 = vld [vmem:[%s1 + $0x488] sm:$0xff]
  %v185 = vld [vmem:[%s1 + $0x490] sm:$0xff]
  %v186 = vld [vmem:[%s1 + $0x498] sm:$0xff]
  %v187 = vld [vmem:[%s1 + $0x4a0] sm:$0xff]
  %v188 = vld [vmem:[%s1 + $0x4a8] sm:$0xff]
  %v189 = vld [vmem:[%s1 + $0x4b0] sm:$0xff]
  %v190 = vld [vmem:[%s1 + $0x4b8] sm:$0xff]
  %v191 = vld [vmem:[%s1 + $0x4c0] sm:$0xff]
  %v192 = vld [vmem:[%s1 + $0x4c8] sm:$0xff]
  %v193 = vld [vmem:[%s1 + $0x4d0] sm:$0xff]
  %v194 = vld [vmem:[%s1 + $0x4d8] sm:$0xff]
  %v195 = vld [vmem:[%s1 + $0x4e0] sm:$0xff]
  %v196 = vld [vmem:[%s1 + $0x4e8] sm:$0xff]
  %v197 = vld [vmem:[%s1 + $0x4f0] sm:$0xff]
  %v198 = vld [vmem:[%s1 + $0x4f8] sm:$0xff]
  %v199 = vld [vmem:[%s1 + $0x500] sm:$0xff]
  %v200 = vld [vmem:[%s1 + $0x508] sm:$0xff]
  %v201 = vld [vmem:[%s1 + $0x510] sm:$0xff]
  %v202 = vld [vmem:[%s1 + $0x518] sm:$0xff]
  %v203 = vld [vmem:[%s1 + $0x520] sm:$0xff]
  %v204 = vld [vmem:[%s1 + $0x528] sm:$0xff]
  %v205 = vld [vmem:[%s1 + $0x530] sm:$0xff]
  %v206 = vld [vmem:[%s1 + $0x538] sm:$0xff]
  %v207 = vld [vmem:[%s1 + $0x540] sm:$0xff]
  %v208 = vld [vmem:[%s1 + $0x548] sm:$0xff]
  %v209 = vld [vmem:[%s1 + $0x550] sm:$0xff]
  %v210 = vld [vmem:[%s1 + $0x558] sm:$0xff]
  %v211 = vld [vmem:[%s1 + $0x560] sm:$0xff]
  %v212 = vld [vmem:[%s1 + $0x568] sm:$0xff]
  %v213 = vld [vmem:[%s1 + $0x570] sm:$0xff]
  %v214 = vld [vmem:[%s1 + $0x578] sm:$0xff]
  %v215 = vld [vmem:[%s1 + $0x580] sm:$0xff]
  %v216 = vld [vmem:[%s1 + $0x588] sm:$0xff]
  %v217 = vld [vmem:[%s1 + $0x590] sm:$0xff]
  %v218 = vld [vmem:[%s1 + $0x598] sm:$0xff]
  %v219 = vld [vmem:[%s1 + $0x5a0] sm:$0xff]
  %v220 = vld [vmem:[%s1 + $0x5a8] sm:$0xff]
  %v221 = vld [vmem:[%s1 + $0x5b0] sm:$0xff]
  %v222 = vld [vmem:[%s1 + $0x5b8] sm:$0xff]
  %v223 = vld [vmem:[%s1 + $0x5c0] sm:$0xff]
  %v224 = vld [vmem:[%s1 + $0x5c8] sm:$0xff]
  %v225 = vld [vmem:[%s1 + $0x5d0] sm:$0xff]
  %v226 = vld [vmem:[%s1 + $0x5d8] sm:$0xff]
  %v227 = vld [vmem:[%s1 + $0x5e0] sm:$0xff]
  %v228 = vld [vmem:[%s1 + $0x5e8] sm:$0xff]
  %v229 = vld [vmem:[%s1 + $0x5f0] sm:$0xff]
  %v230 = vld [vmem:[%s1 + $0x5f8] sm:$0xff]
  %v231 = vld [vmem:[%s1 + $0x600] sm:$0xff]
  %v232 = vld [vmem:[%s1 + $0x608] sm:$0xff]
  %v233 = vld [vmem:[%s1 + $0x610] sm:$0xff]
  %v234 = vld [vmem:[%s1 + $0x618] sm:$0xff]
  %v235 = vld [vmem:[%s1 + $0x620] sm:$0xff]
  %v236 = vld [vmem:[%s1 + $0x628] sm:$0xff]
  %v237 = vld [vmem:[%s1 + $0x630] sm:$0xff]
  %v238 = vld [vmem:[%s1 + $0x638] sm:$0xff]
  %v239 = vld [vmem:[%s1 + $0x640] sm:$0xff]
  %v240 = vld [vmem:[%s1 + $0x648] sm:$0xff]
  %v241 = vld [vmem:[%s1 + $0x650] sm:$0xff]
  %v242 = vld [vmem:[%s1 + $0x658] sm:$0xff]
  %v243 = vld [vmem:[%s1 + $0x660] sm:$0xff]
  %v244 = vld [vmem:[%s1 + $0x668] sm:$0xff]
  %v245 = vld [vmem:[%s1 + $0x670] sm:$0xff]
  %v246 = vld [vmem:[%s1 + $0x678] sm:$0xff]
  %v247 = vld [vmem:[%s1 + $0x680] sm:$0xff]
  %v248 = vld [vmem:[%s1 + $0x688] sm:$0xff]
  %v249 = vld [vmem:[%s1 + $0x690] sm:$0xff]
  %v250 = vld [vmem:[%s1 + $0x698] sm:$0xff]
  %v251 = vld [vmem:[%s1 + $0x6a0] sm:$0xff]
  %v252 = vld [vmem:[%s1 + $0x6a8] sm:$0xff]
  %v253 = vld [vmem:[%s1 + $0x6b0] sm:$0xff]
  %v254 = vld [vmem:[%s1 + $0x6b8] sm:$0xff]
  %v255 = vld [vmem:[%s1 + $0x6c0] sm:$0xff]
  %v256 = vld [vmem:[%s1 + $0x6c8] sm:$0xff]
  %v257 = vld [vmem:[%s1 + $0x6d0] sm:$0xff]
  %v258 = vld [vmem:[%s1 + $0x6d8] sm:$0xff]
  %v259 = vld [vmem:[%s1 + $0x6e0] sm:$0xff]
  %v260 = vld [vmem:[%s1 + $0x6e8] sm:$0xff]
  %v261 = vld [vmem:[%s1 + $0x6f0] sm:$0xff]
  %v262 = vld [vmem:[%s1 + $0x6f8] sm:$0xff]
  %v263 = vld [vmem:[%s1 + $0x700] sm:$0xff]
  %v264 = vld [vmem:[%s1 + $0x708] sm:$0xff]
  %v265 = vld [vmem:[%s1 + $0x710] sm:$0xff]
  %v266 = vld [vmem:[%s1 + $0x718] sm:$0xff]
  %v267 = vld [vmem:[%s1 + $0x720] sm:$0xff]
  %v268 = vld [vmem:[%s1 + $0x728] sm:$0xff]
  %v269 = vld [vmem:[%s1 + $0x730] sm:$0xff]
  %v270 = vld [vmem:[%s1 + $0x738] sm:$0xff]
  %v271 = vld [vmem:[%s1 + $0x740] sm:$0xff]
  %v272 = vld [vmem:[%s1 + $0x748] sm:$0xff]
  %v273 = vld [vmem:[%s1 + $0x750] sm:$0xff]
  %v274 = vld [vmem:[%s1 + $0x758] sm:$0xff]
  %v275 = vld [vmem:[%s1 + $0x760] sm:$0xff]
  %v276 = vld [vmem:[%s1 + $0x768] sm:$0xff]
  %v277 = vld [vmem:[%s1 + $0x770] sm:$0xff]
  %v278 = vld [vmem:[%s1 + $0x778] sm:$0xff]
  %v279 = vld [vmem:[%s1 + $0x780] sm:$0xff]
  %v280 = vld [vmem:[%s1 + $0x788] sm:$0xff]
  %v281 = vld [vmem:[%s1 + $0x790] sm:$0xff]
  %v282 = vld [vmem:[%s1 + $0x798] sm:$0xff]
  %v283 = vld [vmem:[%s1 + $0x7a0] sm:$0xff]
  %v284 = vld [vmem:[%s1 + $0x7a8] sm:$0xff]
  %v285 = vld [vmem:[%s1 + $0x7b0] sm:$0xff]
  %v286 = vld [vmem:[%s1 + $0x7b8] sm:$0xff]
  %v287 = vld [vmem:[%s1 + $0x7c0] sm:$0xff]
  %v288 = vld [vmem:[%s1 + $0x7c8] sm:$0xff]
  %v289 = vld [vmem:[%s1 + $0x7d0] sm:$0xff]
  %v290 = vld [vmem:[%s1 + $0x7d8] sm:$0xff]
  %v291 = vld [vmem:[%s1 + $0x7e0] sm:$0xff]
  %v292 = vld [vmem:[%s1 + $0x7e8] sm:$0xff]
  %v293 = vld [vmem:[%s1 + $0x7f0] sm:$0xff]
  %v294 = vld [vmem:[%s1 + $0x7f8] sm:$0xff]
  %v295 = vld [vmem:[%s1 + $0x800] sm:$0xff]
  %v296 = vld [vmem:[%s1 + $0x808] sm:$0xff]
  %v297 = vld [vmem:[%s1 + $0x810] sm:$0xff]
  %v298 = vld [vmem:[%s1 + $0x818] sm:$0xff]
  %v299 = vld [vmem:[%s1 + $0x820] sm:$0xff]
  %v300 = vld [vmem:[%s1 + $0x828] sm:$0xff]
  %v301 = vld [vmem:[%s1 + $0x830] sm:$0xff]
  %v302 = vld [vmem:[%s1 + $0x838] sm:$0xff]
  %v303 = vld [vmem:[%s1 + $0x840] sm:$0xff]
  %v304 = vld [vmem:[%s1 + $0x848] sm:$0xff]
  %v305 = vld [vmem:[%s1 + $0x850] sm:$0xff]
  %v306 = vld [vmem:[%s1 + $0x858] sm:$0xff]
  %v307 = vld [vmem:[%s1 + $0x860] sm:$0xff]
  %v308 = vld [vmem:[%s1 + $0x868] sm:$0xff]
  %v309 = vld [vmem:[%s1 + $0x870] sm:$0xff]
  %v310 = vld [vmem:[%s1 + $0x878] sm:$0xff]
  %v311 = vld [vmem:[%s1 + $0x880] sm:$0xff]
  %v312 = vld [vmem:[%s1 + $0x888] sm:$0xff]
  %v313 = vld [vmem:[%s1 + $0x890] sm:$0xff]
  %v314 = vld [vmem:[%s1 + $0x898] sm:$0xff]
  %v315 = vld [vmem:[%s1 + $0x8a0] sm:$0xff]
  %v316 = vld [vmem:[%s1 + $0x8a8] sm:$0xff]
  %v317 = vld [vmem:[%s1 + $0x8b0] sm:$0xff]
  %v318 = vld [vmem:[%s1 + $0x8b8] sm:$0xff]
  %v319 = vld [vmem:[%s1 + $0x8c0] sm:$0xff]
  %v320 = vld [vmem:[%s1 + $0x8c8] sm:$0xff]
  %v321 = vld [vmem:[%s1 + $0x8d0] sm:$0xff]
  %v322 = vld [vmem:[%s1 + $0x8d8] sm:$0xff]
  %v323 = vld [vmem:[%s1 + $0x8e0] sm:$0xff]
  %v324 = vld [vmem:[%s1 + $0x8e8] sm:$0xff]
  %v325 = vld [vmem:[%s1 + $0x8f0] sm:$0xff]
  %v326 = vld [vmem:[%s1 + $0x8f8] sm:$0xff]
  %v327 = vld [vmem:[%s1 + $0x900] sm:$0xff]
  %v328 = vld [vmem:[%s1 + $0x908] sm:$0xff]
  %v329 = vld [vmem:[%s1 + $0x910] sm:$0xff]
  %v330 = vld [vmem:[%s1 + $0x918] sm:$0xff]
  %v331 = vld [vmem:[%s1 + $0x920] sm:$0xff]
  %v332 = vld [vmem:[%s1 + $0x928] sm:$0xff]
  %v333 = vld [vmem:[%s1 + $0x930] sm:$0xff]
  %v334 = vld [vmem:[%s1 + $0x938] sm:$0xff]
  %v335 = vld [vmem:[%s1 + $0x940] sm:$0xff]
  %v336 = vld [vmem:[%s1 + $0x948] sm:$0xff]
  %v337 = vld [vmem:[%s1 + $0x950] sm:$0xff]
  %v338 = vld [vmem:[%s1 + $0x958] sm:$0xff]
  %v339 = vld [vmem:[%s1 + $0x960] sm:$0xff]
  %v340 = vld [vmem:[%s1 + $0x968] sm:$0xff]
  %v341 = vld [vmem:[%s1 + $0x970] sm:$0xff]
  %v342 = vld [vmem:[%s1 + $0x978] sm:$0xff]
  %v343 = vld [vmem:[%s1 + $0x980] sm:$0xff]
  %v344 = vld [vmem:[%s1 + $0x988] sm:$0xff]
  %v345 = vld [vmem:[%s1 + $0x990] sm:$0xff]
  %v346 = vld [vmem:[%s1 + $0x998] sm:$0xff]
  %v347 = vld [vmem:[%s1 + $0x9a0] sm:$0xff]
  %v348 = vld [vmem:[%s1 + $0x9a8] sm:$0xff]
  %v349 = vld [vmem:[%s1 + $0x9b0] sm:$0xff]
  %v350 = vld [vmem:[%s1 + $0x9b8] sm:$0xff]
  %v351 = vld [vmem:[%s1 + $0x9c0] sm:$0xff]
  %v352 = vld [vmem:[%s1 + $0x9c8] sm:$0xff]
  %v353 = vld [vmem:[%s1 + $0x9d0] sm:$0xff]
  %v354 = vld [vmem:[%s1 + $0x9d8] sm:$0xff]
  %v355 = vld [vmem:[%s1 + $0x9e0] sm:$0xff]
  %v356 = vld [vmem:[%s1 + $0x9e8] sm:$0xff]
  %v357 = vld [vmem:[%s1 + $0x9f0] sm:$0xff]
  %v358 = vld [vmem:[%s1 + $0x9f8] sm:$0xff]
  %v359 = vld [vmem:[%s1 + $0xa00] sm:$0xff]
  %v360 = vld [vmem:[%s1 + $0xa08] sm:$0xff]
  %v361 = vld [vmem:[%s1 + $0xa10] sm:$0xff]
  %v362 = vld [vmem:[%s1 + $0xa18] sm:$0xff]
  %v363 = vld [vmem:[%s1 + $0xa20] sm:$0xff]
  %v364 = vld [vmem:[%s1 + $0xa28] sm:$0xff]
  %v365 = vld [vmem:[%s1 + $0xa30] sm:$0xff]
  %v366 = vld [vmem:[%s1 + $0xa38] sm:$0xff]
  %v367 = vld [vmem:[%s1 + $0xa40] sm:$0xff]
  %v368 = vld [vmem:[%s1 + $0xa48] sm:$0xff]
  %v369 = vld [vmem:[%s1 + $0xa50] sm:$0xff]
  %v370 = vld [vmem:[%s1 + $0xa58] sm:$0xff]
  %v371 = vld [vmem:[%s1 + $0xa60] sm:$0xff]
  %v372 = vld [vmem:[%s1 + $0xa68] sm:$0xff]
  %v373 = vld [vmem:[%s1 + $0xa70] sm:$0xff]
  %v374 = vld [vmem:[%s1 + $0xa78] sm:$0xff]
  %v375 = vld [vmem:[%s1 + $0xa80] sm:$0xff]
  %v376 = vld [vmem:[%s1 + $0xa88] sm:$0xff]
  %v377 = vld [vmem:[%s1 + $0xa90] sm:$0xff]
  %v378 = vld [vmem:[%s1 + $0xa98] sm:$0xff]
  %v379 = vld [vmem:[%s1 + $0xaa0] sm:$0xff]
  %v380 = vld [vmem:[%s1 + $0xaa8] sm:$0xff]
  %v381 = vld [vmem:[%s1 + $0xab0] sm:$0xff]
  %v382 = vld [vmem:[%s1 + $0xab8] sm:$0xff]
  %v383 = vld [vmem:[%s1 + $0xac0] sm:$0xff]
  %v384 = vld [vmem:[%s1 + $0xac8] sm:$0xff]
  %v385 = vld [vmem:[%s1 + $0xad0] sm:$0xff]
  %v386 = vld [vmem:[%s1 + $0xad8] sm:$0xff]
  %v387 = vld [vmem:[%s1 + $0xae0] sm:$0xff]
  %v388 = vld [vmem:[%s1 + $0xae8] sm:$0xff]
  %v389 = vld [vmem:[%s1 + $0xaf0] sm:$0xff]
  %v390 = vld [vmem:[%s1 + $0xaf8] sm:$0xff]
  %v391 = vld [vmem:[%s1 + $0xb00] sm:$0xff]
  %v392 = vld [vmem:[%s1 + $0xb08] sm:$0xff]
  %v393 = vld [vmem:[%s1 + $0xb10] sm:$0xff]
  %v394 = vld [vmem:[%s1 + $0xb18] sm:$0xff]
  %v395 = vld [vmem:[%s1 + $0xb20] sm:$0xff]
  %v396 = vld [vmem:[%s1 + $0xb28] sm:$0xff]
  %v397 = vld [vmem:[%s1 + $0xb30] sm:$0xff]
  %v398 = vld [vmem:[%s1 + $0xb38] sm:$0xff]
  %v399 = vld [vmem:[%s1 + $0xb40] sm:$0xff]
  %v400 = vld [vmem:[%s1 + $0xb48] sm:$0xff]
  %v401 = vld [vmem:[%s1 + $0xb50] sm:$0xff]
  %v402 = vld [vmem:[%s1 + $0xb58] sm:$0xff]
  %v403 = vld [vmem:[%s1 + $0xb60] sm:$0xff]
  %v404 = vld [vmem:[%s1 + $0xb68] sm:$0xff]
  %v405 = vld [vmem:[%s1 + $0xb70] sm:$0xff]
  %v406 = vld [vmem:[%s1 + $0xb78] sm:$0xff]
  %v407 = vld [vmem:[%s1 + $0xb80] sm:$0xff]
  %v408 = vld [vmem:[%s1 + $0xb88] sm:$0xff]
  %v409 = vld [vmem:[%s1 + $0xb90] sm:$0xff]
  %v410 = vld [vmem:[%s1 + $0xb98] sm:$0xff]
  %v411 = vld [vmem:[%s1 + $0xba0] sm:$0xff]
  %v412 = vld [vmem:[%s1 + $0xba8] sm:$0xff]
  %v413 = vld [vmem:[%s1 + $0xbb0] sm:$0xff]
  %v414 = vld [vmem:[%s1 + $0xbb8] sm:$0xff]
  %v415 = vld [vmem:[%s1 + $0xbc0] sm:$0xff]
  %v416 = vld [vmem:[%s1 + $0xbc8] sm:$0xff]
  %v417 = vld [vmem:[%s1 + $0xbd0] sm:$0xff]
  %v418 = vld [vmem:[%s1 + $0xbd8] sm:$0xff]
  %v419 = vld [vmem:[%s1 + $0xbe0] sm:$0xff]
  %v420 = vld [vmem:[%s1 + $0xbe8] sm:$0xff]
  %v421 = vld [vmem:[%s1 + $0xbf0] sm:$0xff]
  %v422 = vld [vmem:[%s1 + $0xbf8] sm:$0xff]
  %v423 = vld [vmem:[%s1 + $0xc00] sm:$0xff]
  %v424 = vld [vmem:[%s1 + $0xc08] sm:$0xff]
  %v425 = vld [vmem:[%s1 + $0xc10] sm:$0xff]
  %v426 = vld [vmem:[%s1 + $0xc18] sm:$0xff]
  %v427 = vld [vmem:[%s1 + $0xc20] sm:$0xff]
  %v428 = vld [vmem:[%s1 + $0xc28] sm:$0xff]
  %v429 = vld [vmem:[%s1 + $0xc30] sm:$0xff]
  %v430 = vld [vmem:[%s1 + $0xc38] sm:$0xff]
  %v431 = vld [vmem:[%s2] sm:$0xf]
  %v433 = vperm.slane %v431, 0
  %v434 = vperm.slane %v431, 1
  %v435 = vperm.slane %v431, 2
  %v436 = vperm.slane %v431, 3
  %v455 = vunpack.c.l.b16 %v25
  %v456 = vunpack.c.h.b16 %v25
  %v457 = vunpack.c.l.b16 %v26
  %v458 = vunpack.c.h.b16 %v26
  %v459 = vunpack.c.l.b16 %v27
  %v460 = vunpack.c.h.b16 %v27
  %v461 = vunpack.c.l.b16 %v28
  %v462 = vunpack.c.h.b16 %v28
  %v463 = vunpack.c.l.b16 %v29
  %v464 = vunpack.c.h.b16 %v29
  %v465 = vunpack.c.l.b16 %v30
  %v466 = vunpack.c.h.b16 %v30
  %v467 = vunpack.c.l.b16 %v31
  %v468 = vunpack.c.l.b16 %v32
  %v469 = vunpack.c.h.b16 %v32
  %v470 = vunpack.c.l.b16 %v33
  %v471 = vunpack.c.h.b16 %v33
  %v472 = vunpack.c.l.b16 %v34
  %v473 = vunpack.c.h.b16 %v34
  %v474 = vunpack.c.l.b16 %v35
  %v475 = vunpack.c.h.b16 %v35
  %v476 = vunpack.c.l.b16 %v36
  %v477 = vunpack.c.h.b16 %v36
  %v478 = vunpack.c.l.b16 %v37
  %v479 = vunpack.c.h.b16 %v37
  %v480 = vunpack.c.l.b16 %v38
  %v481 = vpack.c.b16 %v468, %v455
  %v482 = vpack.c.b16 %v469, %v456
  %v483 = vpack.c.b16 %v470, %v457
  %v484 = vpack.c.b16 %v471, %v458
  %v485 = vpack.c.b16 %v472, %v459
  %v486 = vpack.c.b16 %v473, %v460
  %v487 = vpack.c.b16 %v474, %v461
  %v488 = vpack.c.b16 %v475, %v462
  %v489 = vpack.c.b16 %v476, %v463
  %v490 = vpack.c.b16 %v477, %v464
  %v491 = vpack.c.b16 %v478, %v465
  %v492 = vpack.c.b16 %v479, %v466
  %v493 = vpack.c.b16 %v480, %v467
  %v898 = vunpack.c.l.b16 %v39
  %v899 = vunpack.c.h.b16 %v39
  %v900 = vunpack.c.l.b16 %v40
  %v901 = vunpack.c.h.b16 %v40
  %v902 = vunpack.c.l.b16 %v41
  %v903 = vunpack.c.h.b16 %v41
  %v904 = vunpack.c.l.b16 %v42
  %v905 = vunpack.c.h.b16 %v42
  %v906 = vunpack.c.l.b16 %v43
  %v907 = vunpack.c.h.b16 %v43
  %v908 = vunpack.c.l.b16 %v44
  %v909 = vunpack.c.h.b16 %v44
  %v910 = vunpack.c.l.b16 %v45
  %v911 = vunpack.c.h.b16 %v45
  %v912 = vunpack.c.l.b16 %v46
  %v913 = vunpack.c.h.b16 %v46
  %v914 = vunpack.c.l.b16 %v47
  %v915 = vunpack.c.h.b16 %v47
  %v916 = vunpack.c.l.b16 %v48
  %v917 = vunpack.c.h.b16 %v48
  %v918 = vunpack.c.l.b16 %v49
  %v919 = vunpack.c.h.b16 %v49
  %v920 = vunpack.c.l.b16 %v50
  %v921 = vunpack.c.h.b16 %v50
  %v922 = vunpack.c.l.b16 %v51
  %v923 = vunpack.c.h.b16 %v51
  %v924 = vunpack.c.l.b16 %v52
  %v925 = vunpack.c.h.b16 %v52
  %v926 = vunpack.c.l.b16 %v53
  %v927 = vunpack.c.h.b16 %v53
  %v928 = vunpack.c.l.b16 %v54
  %v929 = vunpack.c.h.b16 %v54
  %v930 = vunpack.c.l.b16 %v55
  %v931 = vunpack.c.h.b16 %v55
  %v932 = vunpack.c.l.b16 %v56
  %v933 = vunpack.c.h.b16 %v56
  %v934 = vunpack.c.l.b16 %v57
  %v935 = vunpack.c.h.b16 %v57
  %v936 = vunpack.c.l.b16 %v58
  %v937 = vunpack.c.h.b16 %v58
  %v938 = vunpack.c.l.b16 %v59
  %v939 = vunpack.c.h.b16 %v59
  %v940 = vunpack.c.l.b16 %v60
  %v941 = vunpack.c.h.b16 %v60
  %v942 = vunpack.c.l.b16 %v61
  %v943 = vunpack.c.h.b16 %v61
  %v944 = vunpack.c.l.b16 %v62
  %v945 = vunpack.c.h.b16 %v62
  %v946 = vunpack.c.l.b16 %v63
  %v947 = vunpack.c.h.b16 %v63
  %v948 = vunpack.c.l.b16 %v64
  %v949 = vunpack.c.h.b16 %v64
  %v950 = vunpack.c.l.b16 %v65
  %v951 = vunpack.c.h.b16 %v65
  %v952 = vunpack.c.l.b16 %v66
  %v953 = vunpack.c.h.b16 %v66
  %v954 = vunpack.c.l.b16 %v67
  %v955 = vunpack.c.h.b16 %v67
  %v956 = vunpack.c.l.b16 %v68
  %v957 = vunpack.c.h.b16 %v68
  %v958 = vunpack.c.l.b16 %v69
  %v959 = vunpack.c.h.b16 %v69
  %v960 = vunpack.c.l.b16 %v70
  %v961 = vunpack.c.h.b16 %v70
  %v962 = vunpack.c.l.b16 %v71
  %v963 = vunpack.c.h.b16 %v71
  %v964 = vunpack.c.l.b16 %v72
  %v965 = vunpack.c.h.b16 %v72
  %v966 = vunpack.c.l.b16 %v73
  %v967 = vunpack.c.h.b16 %v73
  %v968 = vunpack.c.l.b16 %v74
  %v969 = vunpack.c.h.b16 %v74
  %v970 = vunpack.c.l.b16 %v75
  %v971 = vunpack.c.h.b16 %v75
  %v972 = vunpack.c.l.b16 %v76
  %v973 = vunpack.c.h.b16 %v76
  %v974 = vunpack.c.l.b16 %v77
  %v975 = vunpack.c.h.b16 %v77
  %v976 = vunpack.c.l.b16 %v78
  %v977 = vunpack.c.h.b16 %v78
  %v978 = vunpack.c.l.b16 %v79
  %v979 = vunpack.c.h.b16 %v79
  %v980 = vunpack.c.l.b16 %v80
  %v981 = vunpack.c.h.b16 %v80
  %v982 = vunpack.c.l.b16 %v81
  %v983 = vunpack.c.h.b16 %v81
  %v984 = vunpack.c.l.b16 %v82
  %v985 = vunpack.c.h.b16 %v82
  %v986 = vunpack.c.l.b16 %v83
  %v987 = vunpack.c.h.b16 %v83
  %v988 = vunpack.c.l.b16 %v84
  %v989 = vunpack.c.h.b16 %v84
  %v990 = vunpack.c.l.b16 %v85
  %v991 = vunpack.c.h.b16 %v85
  %v992 = vunpack.c.l.b16 %v86
  %v993 = vunpack.c.h.b16 %v86
  %v994 = vunpack.c.l.b16 %v87
  %v995 = vunpack.c.h.b16 %v87
  %v996 = vunpack.c.l.b16 %v88
  %v997 = vunpack.c.h.b16 %v88
  %v998 = vunpack.c.l.b16 %v89
  %v999 = vunpack.c.h.b16 %v89
  %v1000 = vunpack.c.l.b16 %v90
  %v1001 = vunpack.c.h.b16 %v90
  %v1002 = vunpack.c.l.b16 %v91
  %v1003 = vunpack.c.h.b16 %v91
  %v1004 = vunpack.c.l.b16 %v92
  %v1005 = vunpack.c.h.b16 %v92
  %v1006 = vunpack.c.l.b16 %v93
  %v1007 = vunpack.c.h.b16 %v93
  %v1008 = vunpack.c.l.b16 %v94
  %v1009 = vunpack.c.h.b16 %v94
  %v1010 = vunpack.c.l.b16 %v95
  %v1011 = vunpack.c.h.b16 %v95
  %v1012 = vunpack.c.l.b16 %v96
  %v1013 = vunpack.c.h.b16 %v96
  %v1014 = vunpack.c.l.b16 %v97
  %v1015 = vunpack.c.h.b16 %v97
  %v1016 = vunpack.c.l.b16 %v98
  %v1017 = vunpack.c.h.b16 %v98
  %v1018 = vunpack.c.l.b16 %v99
  %v1019 = vunpack.c.h.b16 %v99
  %v1020 = vunpack.c.l.b16 %v100
  %v1021 = vunpack.c.h.b16 %v100
  %v1022 = vunpack.c.l.b16 %v101
  %v1023 = vunpack.c.h.b16 %v101
  %v1024 = vunpack.c.l.b16 %v102
  %v1025 = vunpack.c.h.b16 %v102
  %v1026 = vunpack.c.l.b16 %v103
  %v1027 = vunpack.c.h.b16 %v103
  %v1028 = vunpack.c.l.b16 %v104
  %v1029 = vunpack.c.h.b16 %v104
  %v1030 = vunpack.c.l.b16 %v105
  %v1031 = vunpack.c.h.b16 %v105
  %v1032 = vunpack.c.l.b16 %v106
  %v1033 = vunpack.c.h.b16 %v106
  %v1034 = vunpack.c.l.b16 %v107
  %v1035 = vunpack.c.h.b16 %v107
  %v1036 = vunpack.c.l.b16 %v108
  %v1037 = vunpack.c.h.b16 %v108
  %v1038 = vunpack.c.l.b16 %v109
  %v1039 = vunpack.c.h.b16 %v109
  %v1040 = vunpack.c.l.b16 %v110
  %v1041 = vunpack.c.h.b16 %v110
  %v1042 = vunpack.c.l.b16 %v111
  %v1043 = vunpack.c.h.b16 %v111
  %v1044 = vunpack.c.l.b16 %v112
  %v1045 = vunpack.c.h.b16 %v112
  %v1046 = vunpack.c.l.b16 %v113
  %v1047 = vunpack.c.h.b16 %v113
  %v1048 = vunpack.c.l.b16 %v114
  %v1049 = vunpack.c.h.b16 %v114
  %v1050 = vunpack.c.l.b16 %v115
  %v1051 = vunpack.c.h.b16 %v115
  %v1052 = vunpack.c.l.b16 %v116
  %v1053 = vunpack.c.h.b16 %v116
  %v1054 = vunpack.c.l.b16 %v117
  %v1055 = vunpack.c.h.b16 %v117
  %v1056 = vunpack.c.l.b16 %v118
  %v1057 = vunpack.c.h.b16 %v118
  %v1058 = vunpack.c.l.b16 %v119
  %v1059 = vunpack.c.h.b16 %v119
  %v1060 = vunpack.c.l.b16 %v120
  %v1061 = vunpack.c.h.b16 %v120
  %v1062 = vunpack.c.l.b16 %v121
  %v1063 = vunpack.c.h.b16 %v121
  %v1064 = vunpack.c.l.b16 %v122
  %v1065 = vunpack.c.h.b16 %v122
  %v1066 = vunpack.c.l.b16 %v123
  %v1067 = vunpack.c.h.b16 %v123
  %v1068 = vunpack.c.l.b16 %v124
  %v1069 = vunpack.c.h.b16 %v124
  %v1070 = vunpack.c.l.b16 %v125
  %v1071 = vunpack.c.h.b16 %v125
  %v1072 = vunpack.c.l.b16 %v126
  %v1073 = vunpack.c.h.b16 %v126
  %v1074 = vunpack.c.l.b16 %v127
  %v1075 = vunpack.c.h.b16 %v127
  %v1076 = vunpack.c.l.b16 %v128
  %v1077 = vunpack.c.h.b16 %v128
  %v1078 = vunpack.c.l.b16 %v129
  %v1079 = vunpack.c.h.b16 %v129
  %v1080 = vunpack.c.l.b16 %v130
  %v1081 = vunpack.c.h.b16 %v130
  %v1082 = vunpack.c.l.b16 %v131
  %v1083 = vunpack.c.h.b16 %v131
  %v1084 = vunpack.c.l.b16 %v132
  %v1085 = vunpack.c.h.b16 %v132
  %v1086 = vunpack.c.l.b16 %v133
  %v1087 = vunpack.c.h.b16 %v133
  %v1088 = vunpack.c.l.b16 %v134
  %v1089 = vunpack.c.h.b16 %v134
  %v1090 = vunpack.c.l.b16 %v135
  %v1091 = vunpack.c.h.b16 %v135
  %v1092 = vunpack.c.l.b16 %v136
  %v1093 = vunpack.c.h.b16 %v136
  %v1094 = vunpack.c.l.b16 %v137
  %v1095 = vunpack.c.h.b16 %v137
  %v1096 = vunpack.c.l.b16 %v138
  %v1097 = vunpack.c.h.b16 %v138
  %v1098 = vunpack.c.l.b16 %v139
  %v1099 = vunpack.c.h.b16 %v139
  %v1100 = vunpack.c.l.b16 %v140
  %v1101 = vunpack.c.h.b16 %v140
  %v1102 = vunpack.c.l.b16 %v141
  %v1103 = vunpack.c.h.b16 %v141
  %v1104 = vunpack.c.l.b16 %v142
  %v1105 = vunpack.c.h.b16 %v142
  %v1106 = vunpack.c.l.b16 %v143
  %v1107 = vunpack.c.h.b16 %v143
  %v1108 = vunpack.c.l.b16 %v144
  %v1109 = vunpack.c.h.b16 %v144
  %v1110 = vunpack.c.l.b16 %v145
  %v1111 = vunpack.c.h.b16 %v145
  %v1112 = vunpack.c.l.b16 %v146
  %v1113 = vunpack.c.h.b16 %v146
  %v1114 = vunpack.c.l.b16 %v147
  %v1115 = vunpack.c.h.b16 %v147
  %v1116 = vunpack.c.l.b16 %v148
  %v1117 = vunpack.c.h.b16 %v148
  %v1118 = vunpack.c.l.b16 %v149
  %v1119 = vunpack.c.h.b16 %v149
  %v1120 = vunpack.c.l.b16 %v150
  %v1121 = vunpack.c.h.b16 %v150
  %v1122 = vunpack.c.l.b16 %v151
  %v1123 = vunpack.c.h.b16 %v151
  %v1124 = vunpack.c.l.b16 %v152
  %v1125 = vunpack.c.h.b16 %v152
  %v1126 = vunpack.c.l.b16 %v153
  %v1127 = vunpack.c.h.b16 %v153
  %v1128 = vunpack.c.l.b16 %v154
  %v1129 = vunpack.c.h.b16 %v154
  %v1130 = vunpack.c.l.b16 %v155
  %v1131 = vunpack.c.h.b16 %v155
  %v1132 = vunpack.c.l.b16 %v156
  %v1133 = vunpack.c.h.b16 %v156
  %v1134 = vunpack.c.l.b16 %v157
  %v1135 = vunpack.c.h.b16 %v157
  %v1136 = vunpack.c.l.b16 %v158
  %v1137 = vunpack.c.h.b16 %v158
  %v1138 = vunpack.c.l.b16 %v159
  %v1139 = vunpack.c.h.b16 %v159
  %v1140 = vunpack.c.l.b16 %v160
  %v1141 = vunpack.c.h.b16 %v160
  %v1142 = vunpack.c.l.b16 %v161
  %v1143 = vunpack.c.h.b16 %v161
  %v1144 = vunpack.c.l.b16 %v162
  %v1145 = vunpack.c.h.b16 %v162
  %v1146 = vunpack.c.l.b16 %v163
  %v1147 = vunpack.c.h.b16 %v163
  %v1148 = vunpack.c.l.b16 %v164
  %v1149 = vunpack.c.h.b16 %v164
  %v1150 = vunpack.c.l.b16 %v165
  %v1151 = vunpack.c.h.b16 %v165
  %v1152 = vunpack.c.l.b16 %v166
  %v1153 = vunpack.c.h.b16 %v166
  %v1154 = vunpack.c.l.b16 %v167
  %v1155 = vunpack.c.h.b16 %v167
  %v1156 = vunpack.c.l.b16 %v168
  %v1157 = vunpack.c.h.b16 %v168
  %v1158 = vunpack.c.l.b16 %v169
  %v1159 = vunpack.c.h.b16 %v169
  %v1160 = vunpack.c.l.b16 %v170
  %v1161 = vunpack.c.h.b16 %v170
  %v1162 = vunpack.c.l.b16 %v171
  %v1163 = vunpack.c.h.b16 %v171
  %v1164 = vunpack.c.l.b16 %v172
  %v1165 = vunpack.c.h.b16 %v172
  %v1166 = vunpack.c.l.b16 %v173
  %v1167 = vunpack.c.h.b16 %v173
  %v1168 = vunpack.c.l.b16 %v174
  %v1169 = vunpack.c.h.b16 %v174
  %v1170 = vunpack.c.l.b16 %v175
  %v1171 = vunpack.c.h.b16 %v175
  %v1172 = vunpack.c.l.b16 %v176
  %v1173 = vunpack.c.h.b16 %v176
  %v1174 = vunpack.c.l.b16 %v177
  %v1175 = vunpack.c.h.b16 %v177
  %v1176 = vunpack.c.l.b16 %v178
  %v1177 = vunpack.c.h.b16 %v178
  %v1178 = vunpack.c.l.b16 %v179
  %v1179 = vunpack.c.h.b16 %v179
  %v1180 = vunpack.c.l.b16 %v180
  %v1181 = vunpack.c.h.b16 %v180
  %v1182 = vunpack.c.l.b16 %v181
  %v1183 = vunpack.c.h.b16 %v181
  %v1184 = vunpack.c.l.b16 %v182
  %v1185 = vunpack.c.h.b16 %v182
  %v1186 = vunpack.c.l.b16 %v183
  %v1187 = vunpack.c.h.b16 %v183
  %v1188 = vunpack.c.l.b16 %v184
  %v1189 = vunpack.c.h.b16 %v184
  %v1190 = vunpack.c.l.b16 %v185
  %v1191 = vunpack.c.h.b16 %v185
  %v1192 = vunpack.c.l.b16 %v186
  %v1193 = vunpack.c.h.b16 %v186
  %v1194 = vunpack.c.l.b16 %v187
  %v1195 = vunpack.c.h.b16 %v187
  %v1196 = vunpack.c.l.b16 %v188
  %v1197 = vunpack.c.h.b16 %v188
  %v1198 = vunpack.c.l.b16 %v189
  %v1199 = vunpack.c.h.b16 %v189
  %v1200 = vunpack.c.l.b16 %v190
  %v1201 = vunpack.c.h.b16 %v190
  %v1202 = vunpack.c.l.b16 %v191
  %v1203 = vunpack.c.h.b16 %v191
  %v1204 = vunpack.c.l.b16 %v192
  %v1205 = vunpack.c.h.b16 %v192
  %v1206 = vunpack.c.l.b16 %v193
  %v1207 = vunpack.c.h.b16 %v193
  %v1208 = vunpack.c.l.b16 %v194
  %v1209 = vunpack.c.h.b16 %v194
  %v1210 = vunpack.c.l.b16 %v195
  %v1211 = vunpack.c.h.b16 %v195
  %v1212 = vunpack.c.l.b16 %v196
  %v1213 = vunpack.c.h.b16 %v196
  %v1214 = vunpack.c.l.b16 %v197
  %v1215 = vunpack.c.h.b16 %v197
  %v1216 = vunpack.c.l.b16 %v198
  %v1217 = vunpack.c.h.b16 %v198
  %v1218 = vunpack.c.l.b16 %v199
  %v1219 = vunpack.c.h.b16 %v199
  %v1220 = vunpack.c.l.b16 %v200
  %v1221 = vunpack.c.h.b16 %v200
  %v1222 = vunpack.c.l.b16 %v201
  %v1223 = vunpack.c.h.b16 %v201
  %v1224 = vunpack.c.l.b16 %v202
  %v1225 = vunpack.c.h.b16 %v202
  %v1226 = vunpack.c.l.b16 %v203
  %v1227 = vunpack.c.h.b16 %v203
  %v1228 = vunpack.c.l.b16 %v204
  %v1229 = vunpack.c.h.b16 %v204
  %v1230 = vunpack.c.l.b16 %v205
  %v1231 = vunpack.c.h.b16 %v205
  %v1232 = vunpack.c.l.b16 %v206
  %v1233 = vunpack.c.h.b16 %v206
  %v1234 = vunpack.c.l.b16 %v207
  %v1235 = vunpack.c.h.b16 %v207
  %v1236 = vunpack.c.l.b16 %v208
  %v1237 = vunpack.c.h.b16 %v208
  %v1238 = vunpack.c.l.b16 %v209
  %v1239 = vunpack.c.h.b16 %v209
  %v1240 = vunpack.c.l.b16 %v210
  %v1241 = vunpack.c.h.b16 %v210
  %v1242 = vunpack.c.l.b16 %v211
  %v1243 = vunpack.c.h.b16 %v211
  %v1244 = vunpack.c.l.b16 %v212
  %v1245 = vunpack.c.h.b16 %v212
  %v1246 = vunpack.c.l.b16 %v213
  %v1247 = vunpack.c.h.b16 %v213
  %v1248 = vunpack.c.l.b16 %v214
  %v1249 = vunpack.c.h.b16 %v214
  %v1250 = vunpack.c.l.b16 %v215
  %v1251 = vunpack.c.h.b16 %v215
  %v1252 = vunpack.c.l.b16 %v216
  %v1253 = vunpack.c.h.b16 %v216
  %v1254 = vunpack.c.l.b16 %v217
  %v1255 = vunpack.c.h.b16 %v217
  %v1256 = vunpack.c.l.b16 %v218
  %v1257 = vunpack.c.h.b16 %v218
  %v1258 = vunpack.c.l.b16 %v219
  %v1259 = vunpack.c.h.b16 %v219
  %v1260 = vunpack.c.l.b16 %v220
  %v1261 = vunpack.c.h.b16 %v220
  %v1262 = vunpack.c.l.b16 %v221
  %v1263 = vunpack.c.h.b16 %v221
  %v1264 = vunpack.c.l.b16 %v222
  %v1265 = vunpack.c.h.b16 %v222
  %v1266 = vunpack.c.l.b16 %v223
  %v1267 = vunpack.c.h.b16 %v223
  %v1268 = vunpack.c.l.b16 %v224
  %v1269 = vunpack.c.h.b16 %v224
  %v1270 = vunpack.c.l.b16 %v225
  %v1271 = vunpack.c.h.b16 %v225
  %v1272 = vunpack.c.l.b16 %v226
  %v1273 = vunpack.c.h.b16 %v226
  %v1274 = vunpack.c.l.b16 %v227
  %v1275 = vunpack.c.h.b16 %v227
  %v1276 = vunpack.c.l.b16 %v228
  %v1277 = vunpack.c.h.b16 %v228
  %v1278 = vunpack.c.l.b16 %v229
  %v1279 = vunpack.c.h.b16 %v229
  %v1280 = vunpack.c.l.b16 %v230
  %v1281 = vunpack.c.h.b16 %v230
  %v1282 = vunpack.c.l.b16 %v231
  %v1283 = vunpack.c.h.b16 %v231
  %v1284 = vunpack.c.l.b16 %v232
  %v1285 = vunpack.c.h.b16 %v232
  %v1286 = vunpack.c.l.b16 %v233
  %v1287 = vunpack.c.h.b16 %v233
  %v1288 = vunpack.c.l.b16 %v234
  %v1289 = vunpack.c.h.b16 %v234
  %v1290 = vunpack.c.l.b16 %v235
  %v1291 = vunpack.c.h.b16 %v235
  %v1292 = vunpack.c.l.b16 %v236
  %v1293 = vunpack.c.h.b16 %v236
  %v1294 = vunpack.c.l.b16 %v237
  %v1295 = vunpack.c.h.b16 %v237
  %v1296 = vunpack.c.l.b16 %v238
  %v1297 = vunpack.c.h.b16 %v238
  %v1298 = vunpack.c.l.b16 %v239
  %v1299 = vunpack.c.h.b16 %v239
  %v1300 = vunpack.c.l.b16 %v240
  %v1301 = vunpack.c.h.b16 %v240
  %v1302 = vunpack.c.l.b16 %v241
  %v1303 = vunpack.c.h.b16 %v241
  %v1304 = vunpack.c.l.b16 %v242
  %v1305 = vunpack.c.h.b16 %v242
  %v1306 = vunpack.c.l.b16 %v243
  %v1307 = vunpack.c.h.b16 %v243
  %v1308 = vunpack.c.l.b16 %v244
  %v1309 = vunpack.c.h.b16 %v244
  %v1310 = vunpack.c.l.b16 %v245
  %v1311 = vunpack.c.h.b16 %v245
  %v1312 = vunpack.c.l.b16 %v246
  %v1313 = vunpack.c.h.b16 %v246
  %v1314 = vunpack.c.l.b16 %v247
  %v1315 = vunpack.c.h.b16 %v247
  %v1316 = vunpack.c.l.b16 %v248
  %v1317 = vunpack.c.h.b16 %v248
  %v1318 = vunpack.c.l.b16 %v249
  %v1319 = vunpack.c.h.b16 %v249
  %v1320 = vunpack.c.l.b16 %v250
  %v1321 = vunpack.c.h.b16 %v250
  %v1322 = vunpack.c.l.b16 %v251
  %v1323 = vunpack.c.h.b16 %v251
  %v1324 = vunpack.c.l.b16 %v252
  %v1325 = vunpack.c.h.b16 %v252
  %v1326 = vunpack.c.l.b16 %v253
  %v1327 = vunpack.c.h.b16 %v253
  %v1328 = vunpack.c.l.b16 %v254
  %v1329 = vunpack.c.h.b16 %v254
  %v1330 = vunpack.c.l.b16 %v255
  %v1331 = vunpack.c.h.b16 %v255
  %v1332 = vunpack.c.l.b16 %v256
  %v1333 = vunpack.c.h.b16 %v256
  %v1334 = vunpack.c.l.b16 %v257
  %v1335 = vunpack.c.h.b16 %v257
  %v1336 = vunpack.c.l.b16 %v258
  %v1337 = vunpack.c.h.b16 %v258
  %v1338 = vunpack.c.l.b16 %v259
  %v1339 = vunpack.c.h.b16 %v259
  %v1340 = vunpack.c.l.b16 %v260
  %v1341 = vunpack.c.h.b16 %v260
  %v1342 = vunpack.c.l.b16 %v261
  %v1343 = vunpack.c.h.b16 %v261
  %v1344 = vunpack.c.l.b16 %v262
  %v1345 = vunpack.c.h.b16 %v262
  %v1346 = vunpack.c.l.b16 %v263
  %v1347 = vunpack.c.h.b16 %v263
  %v1348 = vunpack.c.l.b16 %v264
  %v1349 = vunpack.c.h.b16 %v264
  %v1350 = vunpack.c.l.b16 %v265
  %v1351 = vunpack.c.h.b16 %v265
  %v1352 = vunpack.c.l.b16 %v266
  %v1353 = vunpack.c.h.b16 %v266
  %v1354 = vunpack.c.l.b16 %v267
  %v1355 = vunpack.c.h.b16 %v267
  %v1356 = vunpack.c.l.b16 %v268
  %v1357 = vunpack.c.h.b16 %v268
  %v1358 = vunpack.c.l.b16 %v269
  %v1359 = vunpack.c.h.b16 %v269
  %v1360 = vunpack.c.l.b16 %v270
  %v1361 = vunpack.c.h.b16 %v270
  %v1362 = vunpack.c.l.b16 %v271
  %v1363 = vunpack.c.h.b16 %v271
  %v1364 = vunpack.c.l.b16 %v272
  %v1365 = vunpack.c.h.b16 %v272
  %v1366 = vunpack.c.l.b16 %v273
  %v1367 = vunpack.c.h.b16 %v273
  %v1368 = vunpack.c.l.b16 %v274
  %v1369 = vunpack.c.h.b16 %v274
  %v1370 = vunpack.c.l.b16 %v275
  %v1371 = vunpack.c.h.b16 %v275
  %v1372 = vunpack.c.l.b16 %v276
  %v1373 = vunpack.c.h.b16 %v276
  %v1374 = vunpack.c.l.b16 %v277
  %v1375 = vunpack.c.h.b16 %v277
  %v1376 = vunpack.c.l.b16 %v278
  %v1377 = vunpack.c.h.b16 %v278
  %v1378 = vunpack.c.l.b16 %v279
  %v1379 = vunpack.c.h.b16 %v279
  %v1380 = vunpack.c.l.b16 %v280
  %v1381 = vunpack.c.h.b16 %v280
  %v1382 = vunpack.c.l.b16 %v281
  %v1383 = vunpack.c.h.b16 %v281
  %v1384 = vunpack.c.l.b16 %v282
  %v1385 = vunpack.c.h.b16 %v282
  %v1386 = vunpack.c.l.b16 %v283
  %v1387 = vunpack.c.h.b16 %v283
  %v1388 = vunpack.c.l.b16 %v284
  %v1389 = vunpack.c.h.b16 %v284
  %v1390 = vunpack.c.l.b16 %v285
  %v1391 = vunpack.c.h.b16 %v285
  %v1392 = vunpack.c.l.b16 %v286
  %v1393 = vunpack.c.h.b16 %v286
  %v1394 = vunpack.c.l.b16 %v287
  %v1395 = vunpack.c.h.b16 %v287
  %v1396 = vunpack.c.l.b16 %v288
  %v1397 = vunpack.c.h.b16 %v288
  %v1398 = vunpack.c.l.b16 %v289
  %v1399 = vunpack.c.h.b16 %v289
  %v1400 = vunpack.c.l.b16 %v290
  %v1401 = vunpack.c.h.b16 %v290
  %v1402 = vunpack.c.l.b16 %v291
  %v1403 = vunpack.c.h.b16 %v291
  %v1404 = vunpack.c.l.b16 %v292
  %v1405 = vunpack.c.h.b16 %v292
  %v1406 = vunpack.c.l.b16 %v293
  %v1407 = vunpack.c.h.b16 %v293
  %v1408 = vunpack.c.l.b16 %v294
  %v1409 = vunpack.c.h.b16 %v294
  %v1410 = vunpack.c.l.b16 %v295
  %v1411 = vunpack.c.h.b16 %v295
  %v1412 = vunpack.c.l.b16 %v296
  %v1413 = vunpack.c.h.b16 %v296
  %v1414 = vunpack.c.l.b16 %v297
  %v1415 = vunpack.c.h.b16 %v297
  %v1416 = vunpack.c.l.b16 %v298
  %v1417 = vunpack.c.h.b16 %v298
  %v1418 = vunpack.c.l.b16 %v299
  %v1419 = vunpack.c.h.b16 %v299
  %v1420 = vunpack.c.l.b16 %v300
  %v1421 = vunpack.c.h.b16 %v300
  %v1422 = vunpack.c.l.b16 %v301
  %v1423 = vunpack.c.h.b16 %v301
  %v1424 = vunpack.c.l.b16 %v302
  %v1425 = vunpack.c.h.b16 %v302
  %v1426 = vunpack.c.l.b16 %v303
  %v1427 = vunpack.c.h.b16 %v303
  %v1428 = vunpack.c.l.b16 %v304
  %v1429 = vunpack.c.h.b16 %v304
  %v1430 = vunpack.c.l.b16 %v305
  %v1431 = vunpack.c.h.b16 %v305
  %v1432 = vunpack.c.l.b16 %v306
  %v1433 = vunpack.c.h.b16 %v306
  %v1434 = vunpack.c.l.b16 %v307
  %v1435 = vunpack.c.h.b16 %v307
  %v1436 = vunpack.c.l.b16 %v308
  %v1437 = vunpack.c.h.b16 %v308
  %v1438 = vunpack.c.l.b16 %v309
  %v1439 = vunpack.c.h.b16 %v309
  %v1440 = vunpack.c.l.b16 %v310
  %v1441 = vunpack.c.h.b16 %v310
  %v1442 = vunpack.c.l.b16 %v311
  %v1443 = vunpack.c.h.b16 %v311
  %v1444 = vunpack.c.l.b16 %v312
  %v1445 = vunpack.c.h.b16 %v312
  %v1446 = vunpack.c.l.b16 %v313
  %v1447 = vunpack.c.h.b16 %v313
  %v1448 = vunpack.c.l.b16 %v314
  %v1449 = vunpack.c.h.b16 %v314
  %v1450 = vunpack.c.l.b16 %v315
  %v1451 = vunpack.c.h.b16 %v315
  %v1452 = vunpack.c.l.b16 %v316
  %v1453 = vunpack.c.h.b16 %v316
  %v1454 = vunpack.c.l.b16 %v317
  %v1455 = vunpack.c.h.b16 %v317
  %v1456 = vunpack.c.l.b16 %v318
  %v1457 = vunpack.c.h.b16 %v318
  %v1458 = vunpack.c.l.b16 %v319
  %v1459 = vunpack.c.h.b16 %v319
  %v1460 = vunpack.c.l.b16 %v320
  %v1461 = vunpack.c.h.b16 %v320
  %v1462 = vunpack.c.l.b16 %v321
  %v1463 = vunpack.c.h.b16 %v321
  %v1464 = vunpack.c.l.b16 %v322
  %v1465 = vunpack.c.h.b16 %v322
  %v1466 = vunpack.c.l.b16 %v323
  %v1467 = vunpack.c.h.b16 %v323
  %v1468 = vunpack.c.l.b16 %v324
  %v1469 = vunpack.c.h.b16 %v324
  %v1470 = vunpack.c.l.b16 %v325
  %v1471 = vunpack.c.h.b16 %v325
  %v1472 = vunpack.c.l.b16 %v326
  %v1473 = vunpack.c.h.b16 %v326
  %v1474 = vunpack.c.l.b16 %v327
  %v1475 = vunpack.c.h.b16 %v327
  %v1476 = vunpack.c.l.b16 %v328
  %v1477 = vunpack.c.h.b16 %v328
  %v1478 = vunpack.c.l.b16 %v329
  %v1479 = vunpack.c.h.b16 %v329
  %v1480 = vunpack.c.l.b16 %v330
  %v1481 = vunpack.c.h.b16 %v330
  %v1482 = vunpack.c.l.b16 %v331
  %v1483 = vunpack.c.h.b16 %v331
  %v1484 = vunpack.c.l.b16 %v332
  %v1485 = vunpack.c.h.b16 %v332
  %v1486 = vunpack.c.l.b16 %v333
  %v1487 = vunpack.c.h.b16 %v333
  %v1488 = vunpack.c.l.b16 %v334
  %v1489 = vunpack.c.h.b16 %v334
  %v1490 = vunpack.c.l.b16 %v335
  %v1491 = vunpack.c.h.b16 %v335
  %v1492 = vunpack.c.l.b16 %v336
  %v1493 = vunpack.c.h.b16 %v336
  %v1494 = vunpack.c.l.b16 %v337
  %v1495 = vunpack.c.h.b16 %v337
  %v1496 = vunpack.c.l.b16 %v338
  %v1497 = vunpack.c.h.b16 %v338
  %v1498 = vunpack.c.l.b16 %v339
  %v1499 = vunpack.c.h.b16 %v339
  %v1500 = vunpack.c.l.b16 %v340
  %v1501 = vunpack.c.h.b16 %v340
  %v1502 = vunpack.c.l.b16 %v341
  %v1503 = vunpack.c.h.b16 %v341
  %v1504 = vunpack.c.l.b16 %v342
  %v1505 = vunpack.c.h.b16 %v342
  %v1506 = vunpack.c.l.b16 %v343
  %v1507 = vunpack.c.h.b16 %v343
  %v1508 = vunpack.c.l.b16 %v344
  %v1509 = vunpack.c.h.b16 %v344
  %v1510 = vunpack.c.l.b16 %v345
  %v1511 = vunpack.c.h.b16 %v345
  %v1512 = vunpack.c.l.b16 %v346
  %v1513 = vunpack.c.h.b16 %v346
  %v1514 = vunpack.c.l.b16 %v347
  %v1515 = vunpack.c.h.b16 %v347
  %v1516 = vunpack.c.l.b16 %v348
  %v1517 = vunpack.c.h.b16 %v348
  %v1518 = vunpack.c.l.b16 %v349
  %v1519 = vunpack.c.h.b16 %v349
  %v1520 = vunpack.c.l.b16 %v350
  %v1521 = vunpack.c.h.b16 %v350
  %v1522 = vunpack.c.l.b16 %v351
  %v1523 = vunpack.c.h.b16 %v351
  %v1524 = vunpack.c.l.b16 %v352
  %v1525 = vunpack.c.h.b16 %v352
  %v1526 = vunpack.c.l.b16 %v353
  %v1527 = vunpack.c.h.b16 %v353
  %v1528 = vunpack.c.l.b16 %v354
  %v1529 = vunpack.c.h.b16 %v354
  %v1530 = vunpack.c.l.b16 %v355
  %v1531 = vunpack.c.h.b16 %v355
  %v1532 = vunpack.c.l.b16 %v356
  %v1533 = vunpack.c.h.b16 %v356
  %v1534 = vunpack.c.l.b16 %v357
  %v1535 = vunpack.c.h.b16 %v357
  %v1536 = vunpack.c.l.b16 %v358
  %v1537 = vunpack.c.h.b16 %v358
  %v1538 = vunpack.c.l.b16 %v359
  %v1539 = vunpack.c.h.b16 %v359
  %v1540 = vunpack.c.l.b16 %v360
  %v1541 = vunpack.c.h.b16 %v360
  %v1542 = vunpack.c.l.b16 %v361
  %v1543 = vunpack.c.h.b16 %v361
  %v1544 = vunpack.c.l.b16 %v362
  %v1545 = vunpack.c.h.b16 %v362
  %v1546 = vunpack.c.l.b16 %v363
  %v1547 = vunpack.c.h.b16 %v363
  %v1548 = vunpack.c.l.b16 %v364
  %v1549 = vunpack.c.h.b16 %v364
  %v1550 = vunpack.c.l.b16 %v365
  %v1551 = vunpack.c.h.b16 %v365
  %v1552 = vunpack.c.l.b16 %v366
  %v1553 = vunpack.c.h.b16 %v366
  %v1554 = vunpack.c.l.b16 %v367
  %v1555 = vunpack.c.h.b16 %v367
  %v1556 = vunpack.c.l.b16 %v368
  %v1557 = vunpack.c.h.b16 %v368
  %v1558 = vunpack.c.l.b16 %v369
  %v1559 = vunpack.c.h.b16 %v369
  %v1560 = vunpack.c.l.b16 %v370
  %v1561 = vunpack.c.h.b16 %v370
  %v1562 = vunpack.c.l.b16 %v371
  %v1563 = vunpack.c.h.b16 %v371
  %v1564 = vunpack.c.l.b16 %v372
  %v1565 = vunpack.c.h.b16 %v372
  %v1566 = vunpack.c.l.b16 %v373
  %v1567 = vunpack.c.h.b16 %v373
  %v1568 = vunpack.c.l.b16 %v374
  %v1569 = vunpack.c.h.b16 %v374
  %v1570 = vunpack.c.l.b16 %v375
  %v1571 = vunpack.c.h.b16 %v375
  %v1572 = vunpack.c.l.b16 %v376
  %v1573 = vunpack.c.h.b16 %v376
  %v1574 = vunpack.c.l.b16 %v377
  %v1575 = vunpack.c.h.b16 %v377
  %v1576 = vunpack.c.l.b16 %v378
  %v1577 = vunpack.c.h.b16 %v378
  %v1578 = vunpack.c.l.b16 %v379
  %v1579 = vunpack.c.h.b16 %v379
  %v1580 = vunpack.c.l.b16 %v380
  %v1581 = vunpack.c.h.b16 %v380
  %v1582 = vunpack.c.l.b16 %v381
  %v1583 = vunpack.c.h.b16 %v381
  %v1584 = vunpack.c.l.b16 %v382
  %v1585 = vunpack.c.h.b16 %v382
  %v1586 = vunpack.c.l.b16 %v383
  %v1587 = vunpack.c.h.b16 %v383
  %v1588 = vunpack.c.l.b16 %v384
  %v1589 = vunpack.c.h.b16 %v384
  %v1590 = vunpack.c.l.b16 %v385
  %v1591 = vunpack.c.h.b16 %v385
  %v1592 = vunpack.c.l.b16 %v386
  %v1593 = vunpack.c.h.b16 %v386
  %v1594 = vunpack.c.l.b16 %v387
  %v1595 = vunpack.c.h.b16 %v387
  %v1596 = vunpack.c.l.b16 %v388
  %v1597 = vunpack.c.h.b16 %v388
  %v1598 = vunpack.c.l.b16 %v389
  %v1599 = vunpack.c.h.b16 %v389
  %v1600 = vunpack.c.l.b16 %v390
  %v1601 = vunpack.c.h.b16 %v390
  %v1602 = vunpack.c.l.b16 %v391
  %v1603 = vunpack.c.h.b16 %v391
  %v1604 = vunpack.c.l.b16 %v392
  %v1605 = vunpack.c.h.b16 %v392
  %v1606 = vunpack.c.l.b16 %v393
  %v1607 = vunpack.c.h.b16 %v393
  %v1608 = vunpack.c.l.b16 %v394
  %v1609 = vunpack.c.h.b16 %v394
  %v1610 = vunpack.c.l.b16 %v395
  %v1611 = vunpack.c.h.b16 %v395
  %v1612 = vunpack.c.l.b16 %v396
  %v1613 = vunpack.c.h.b16 %v396
  %v1614 = vunpack.c.l.b16 %v397
  %v1615 = vunpack.c.h.b16 %v397
  %v1616 = vunpack.c.l.b16 %v398
  %v1617 = vunpack.c.h.b16 %v398
  %v1618 = vunpack.c.l.b16 %v399
  %v1619 = vunpack.c.h.b16 %v399
  %v1620 = vunpack.c.l.b16 %v400
  %v1621 = vunpack.c.h.b16 %v400
  %v1622 = vunpack.c.l.b16 %v401
  %v1623 = vunpack.c.h.b16 %v401
  %v1624 = vunpack.c.l.b16 %v402
  %v1625 = vunpack.c.h.b16 %v402
  %v1626 = vunpack.c.l.b16 %v403
  %v1627 = vunpack.c.h.b16 %v403
  %v1628 = vunpack.c.l.b16 %v404
  %v1629 = vunpack.c.h.b16 %v404
  %v1630 = vunpack.c.l.b16 %v405
  %v1631 = vunpack.c.h.b16 %v405
  %v1632 = vunpack.c.l.b16 %v406
  %v1633 = vunpack.c.h.b16 %v406
  %v1634 = vunpack.c.l.b16 %v407
  %v1635 = vunpack.c.h.b16 %v407
  %v1636 = vunpack.c.l.b16 %v408
  %v1637 = vunpack.c.h.b16 %v408
  %v1638 = vunpack.c.l.b16 %v409
  %v1639 = vunpack.c.h.b16 %v409
  %v1640 = vunpack.c.l.b16 %v410
  %v1641 = vunpack.c.h.b16 %v410
  %v1642 = vunpack.c.l.b16 %v411
  %v1643 = vunpack.c.h.b16 %v411
  %v1644 = vunpack.c.l.b16 %v412
  %v1645 = vunpack.c.h.b16 %v412
  %v1646 = vunpack.c.l.b16 %v413
  %v1647 = vunpack.c.h.b16 %v413
  %v1648 = vunpack.c.l.b16 %v414
  %v1649 = vunpack.c.h.b16 %v414
  %v1650 = vunpack.c.l.b16 %v415
  %v1651 = vunpack.c.h.b16 %v415
  %v1652 = vunpack.c.l.b16 %v416
  %v1653 = vunpack.c.h.b16 %v416
  %v1654 = vunpack.c.l.b16 %v417
  %v1655 = vunpack.c.h.b16 %v417
  %v1656 = vunpack.c.l.b16 %v418
  %v1657 = vunpack.c.h.b16 %v418
  %v1658 = vunpack.c.l.b16 %v419
  %v1659 = vunpack.c.h.b16 %v419
  %v1660 = vunpack.c.l.b16 %v420
  %v1661 = vunpack.c.h.b16 %v420
  %v1662 = vunpack.c.l.b16 %v421
  %v1663 = vunpack.c.h.b16 %v421
  %v1664 = vunpack.c.l.b16 %v422
  %v1665 = vunpack.c.h.b16 %v422
  %v1666 = vunpack.c.l.b16 %v423
  %v1667 = vunpack.c.h.b16 %v423
  %v1668 = vunpack.c.l.b16 %v424
  %v1669 = vunpack.c.h.b16 %v424
  %v1670 = vunpack.c.l.b16 %v425
  %v1671 = vunpack.c.h.b16 %v425
  %v1672 = vunpack.c.l.b16 %v426
  %v1673 = vunpack.c.h.b16 %v426
  %v1674 = vunpack.c.l.b16 %v427
  %v1675 = vunpack.c.h.b16 %v427
  %v1676 = vunpack.c.l.b16 %v428
  %v1677 = vunpack.c.h.b16 %v428
  %v1678 = vunpack.c.l.b16 %v429
  %v1679 = vunpack.c.h.b16 %v429
  %v1680 = vunpack.c.l.b16 %v430
  %v1681 = vunpack.c.h.b16 %v430
  %v1682 = vpack.c.b16 %v902, %v898
  %v1683 = vpack.c.b16 %v903, %v899
  %v1684 = vpack.c.b16 %v904, %v900
  %v1685 = vpack.c.b16 %v905, %v901
  %v1686 = vpack.c.b16 %v910, %v906
  %v1687 = vpack.c.b16 %v911, %v907
  %v1688 = vpack.c.b16 %v912, %v908
  %v1689 = vpack.c.b16 %v913, %v909
  %v1690 = vpack.c.b16 %v918, %v914
  %v1691 = vpack.c.b16 %v919, %v915
  %v1692 = vpack.c.b16 %v920, %v916
  %v1693 = vpack.c.b16 %v921, %v917
  %v1694 = vpack.c.b16 %v926, %v922
  %v1695 = vpack.c.b16 %v927, %v923
  %v1696 = vpack.c.b16 %v928, %v924
  %v1697 = vpack.c.b16 %v929, %v925
  %v1698 = vpack.c.b16 %v934, %v930
  %v1699 = vpack.c.b16 %v935, %v931
  %v1700 = vpack.c.b16 %v936, %v932
  %v1701 = vpack.c.b16 %v937, %v933
  %v1702 = vpack.c.b16 %v942, %v938
  %v1703 = vpack.c.b16 %v943, %v939
  %v1704 = vpack.c.b16 %v944, %v940
  %v1705 = vpack.c.b16 %v945, %v941
  %v1706 = vpack.c.b16 %v950, %v946
  %v1707 = vpack.c.b16 %v951, %v947
  %v1708 = vpack.c.b16 %v952, %v948
  %v1709 = vpack.c.b16 %v953, %v949
  %v1710 = vpack.c.b16 %v958, %v954
  %v1711 = vpack.c.b16 %v959, %v955
  %v1712 = vpack.c.b16 %v960, %v956
  %v1713 = vpack.c.b16 %v961, %v957
  %v1714 = vpack.c.b16 %v966, %v962
  %v1715 = vpack.c.b16 %v967, %v963
  %v1716 = vpack.c.b16 %v968, %v964
  %v1717 = vpack.c.b16 %v969, %v965
  %v1718 = vpack.c.b16 %v974, %v970
  %v1719 = vpack.c.b16 %v975, %v971
  %v1720 = vpack.c.b16 %v976, %v972
  %v1721 = vpack.c.b16 %v977, %v973
  %v1722 = vpack.c.b16 %v982, %v978
  %v1723 = vpack.c.b16 %v983, %v979
  %v1724 = vpack.c.b16 %v984, %v980
  %v1725 = vpack.c.b16 %v985, %v981
  %v1726 = vpack.c.b16 %v990, %v986
  %v1727 = vpack.c.b16 %v991, %v987
  %v1728 = vpack.c.b16 %v992, %v988
  %v1729 = vpack.c.b16 %v993, %v989
  %v1730 = vpack.c.b16 %v998, %v994
  %v1731 = vpack.c.b16 %v999, %v995
  %v1732 = vpack.c.b16 %v1000, %v996
  %v1733 = vpack.c.b16 %v1001, %v997
  %v1734 = vpack.c.b16 %v1006, %v1002
  %v1735 = vpack.c.b16 %v1007, %v1003
  %v1736 = vpack.c.b16 %v1008, %v1004
  %v1737 = vpack.c.b16 %v1009, %v1005
  %v1738 = vpack.c.b16 %v1014, %v1010
  %v1739 = vpack.c.b16 %v1015, %v1011
  %v1740 = vpack.c.b16 %v1016, %v1012
  %v1741 = vpack.c.b16 %v1017, %v1013
  %v1742 = vpack.c.b16 %v1022, %v1018
  %v1743 = vpack.c.b16 %v1023, %v1019
  %v1744 = vpack.c.b16 %v1024, %v1020
  %v1745 = vpack.c.b16 %v1025, %v1021
  %v1746 = vpack.c.b16 %v1030, %v1026
  %v1747 = vpack.c.b16 %v1031, %v1027
  %v1748 = vpack.c.b16 %v1032, %v1028
  %v1749 = vpack.c.b16 %v1033, %v1029
  %v1750 = vpack.c.b16 %v1038, %v1034
  %v1751 = vpack.c.b16 %v1039, %v1035
  %v1752 = vpack.c.b16 %v1040, %v1036
  %v1753 = vpack.c.b16 %v1041, %v1037
  %v1754 = vpack.c.b16 %v1046, %v1042
  %v1755 = vpack.c.b16 %v1047, %v1043
  %v1756 = vpack.c.b16 %v1048, %v1044
  %v1757 = vpack.c.b16 %v1049, %v1045
  %v1758 = vpack.c.b16 %v1054, %v1050
  %v1759 = vpack.c.b16 %v1055, %v1051
  %v1760 = vpack.c.b16 %v1056, %v1052
  %v1761 = vpack.c.b16 %v1057, %v1053
  %v1762 = vpack.c.b16 %v1062, %v1058
  %v1763 = vpack.c.b16 %v1063, %v1059
  %v1764 = vpack.c.b16 %v1064, %v1060
  %v1765 = vpack.c.b16 %v1065, %v1061
  %v1766 = vpack.c.b16 %v1070, %v1066
  %v1767 = vpack.c.b16 %v1071, %v1067
  %v1768 = vpack.c.b16 %v1072, %v1068
  %v1769 = vpack.c.b16 %v1073, %v1069
  %v1770 = vpack.c.b16 %v1078, %v1074
  %v1771 = vpack.c.b16 %v1079, %v1075
  %v1772 = vpack.c.b16 %v1080, %v1076
  %v1773 = vpack.c.b16 %v1081, %v1077
  %v1774 = vpack.c.b16 %v1086, %v1082
  %v1775 = vpack.c.b16 %v1087, %v1083
  %v1776 = vpack.c.b16 %v1088, %v1084
  %v1777 = vpack.c.b16 %v1089, %v1085
  %v1778 = vpack.c.b16 %v1094, %v1090
  %v1779 = vpack.c.b16 %v1095, %v1091
  %v1780 = vpack.c.b16 %v1096, %v1092
  %v1781 = vpack.c.b16 %v1097, %v1093
  %v1782 = vpack.c.b16 %v1102, %v1098
  %v1783 = vpack.c.b16 %v1103, %v1099
  %v1784 = vpack.c.b16 %v1104, %v1100
  %v1785 = vpack.c.b16 %v1105, %v1101
  %v1786 = vpack.c.b16 %v1110, %v1106
  %v1787 = vpack.c.b16 %v1111, %v1107
  %v1788 = vpack.c.b16 %v1112, %v1108
  %v1789 = vpack.c.b16 %v1113, %v1109
  %v1790 = vpack.c.b16 %v1118, %v1114
  %v1791 = vpack.c.b16 %v1119, %v1115
  %v1792 = vpack.c.b16 %v1120, %v1116
  %v1793 = vpack.c.b16 %v1121, %v1117
  %v1794 = vpack.c.b16 %v1126, %v1122
  %v1795 = vpack.c.b16 %v1127, %v1123
  %v1796 = vpack.c.b16 %v1128, %v1124
  %v1797 = vpack.c.b16 %v1129, %v1125
  %v1798 = vpack.c.b16 %v1134, %v1130
  %v1799 = vpack.c.b16 %v1135, %v1131
  %v1800 = vpack.c.b16 %v1136, %v1132
  %v1801 = vpack.c.b16 %v1137, %v1133
  %v1802 = vpack.c.b16 %v1142, %v1138
  %v1803 = vpack.c.b16 %v1143, %v1139
  %v1804 = vpack.c.b16 %v1144, %v1140
  %v1805 = vpack.c.b16 %v1145, %v1141
  %v1806 = vpack.c.b16 %v1150, %v1146
  %v1807 = vpack.c.b16 %v1151, %v1147
  %v1808 = vpack.c.b16 %v1152, %v1148
  %v1809 = vpack.c.b16 %v1153, %v1149
  %v1810 = vpack.c.b16 %v1158, %v1154
  %v1811 = vpack.c.b16 %v1159, %v1155
  %v1812 = vpack.c.b16 %v1160, %v1156
  %v1813 = vpack.c.b16 %v1161, %v1157
  %v1814 = vpack.c.b16 %v1166, %v1162
  %v1815 = vpack.c.b16 %v1167, %v1163
  %v1816 = vpack.c.b16 %v1168, %v1164
  %v1817 = vpack.c.b16 %v1169, %v1165
  %v1818 = vpack.c.b16 %v1174, %v1170
  %v1819 = vpack.c.b16 %v1175, %v1171
  %v1820 = vpack.c.b16 %v1176, %v1172
  %v1821 = vpack.c.b16 %v1177, %v1173
  %v1822 = vpack.c.b16 %v1182, %v1178
  %v1823 = vpack.c.b16 %v1183, %v1179
  %v1824 = vpack.c.b16 %v1184, %v1180
  %v1825 = vpack.c.b16 %v1185, %v1181
  %v1826 = vpack.c.b16 %v1190, %v1186
  %v1827 = vpack.c.b16 %v1191, %v1187
  %v1828 = vpack.c.b16 %v1192, %v1188
  %v1829 = vpack.c.b16 %v1193, %v1189
  %v1830 = vpack.c.b16 %v1198, %v1194
  %v1831 = vpack.c.b16 %v1199, %v1195
  %v1832 = vpack.c.b16 %v1200, %v1196
  %v1833 = vpack.c.b16 %v1201, %v1197
  %v1834 = vpack.c.b16 %v1206, %v1202
  %v1835 = vpack.c.b16 %v1207, %v1203
  %v1836 = vpack.c.b16 %v1208, %v1204
  %v1837 = vpack.c.b16 %v1209, %v1205
  %v1838 = vpack.c.b16 %v1214, %v1210
  %v1839 = vpack.c.b16 %v1215, %v1211
  %v1840 = vpack.c.b16 %v1216, %v1212
  %v1841 = vpack.c.b16 %v1217, %v1213
  %v1842 = vpack.c.b16 %v1222, %v1218
  %v1843 = vpack.c.b16 %v1223, %v1219
  %v1844 = vpack.c.b16 %v1224, %v1220
  %v1845 = vpack.c.b16 %v1225, %v1221
  %v1846 = vpack.c.b16 %v1230, %v1226
  %v1847 = vpack.c.b16 %v1231, %v1227
  %v1848 = vpack.c.b16 %v1232, %v1228
  %v1849 = vpack.c.b16 %v1233, %v1229
  %v1850 = vpack.c.b16 %v1238, %v1234
  %v1851 = vpack.c.b16 %v1239, %v1235
  %v1852 = vpack.c.b16 %v1240, %v1236
  %v1853 = vpack.c.b16 %v1241, %v1237
  %v1854 = vpack.c.b16 %v1246, %v1242
  %v1855 = vpack.c.b16 %v1247, %v1243
  %v1856 = vpack.c.b16 %v1248, %v1244
  %v1857 = vpack.c.b16 %v1249, %v1245
  %v1858 = vpack.c.b16 %v1254, %v1250
  %v1859 = vpack.c.b16 %v1255, %v1251
  %v1860 = vpack.c.b16 %v1256, %v1252
  %v1861 = vpack.c.b16 %v1257, %v1253
  %v1862 = vpack.c.b16 %v1262, %v1258
  %v1863 = vpack.c.b16 %v1263, %v1259
  %v1864 = vpack.c.b16 %v1264, %v1260
  %v1865 = vpack.c.b16 %v1265, %v1261
  %v1866 = vpack.c.b16 %v1270, %v1266
  %v1867 = vpack.c.b16 %v1271, %v1267
  %v1868 = vpack.c.b16 %v1272, %v1268
  %v1869 = vpack.c.b16 %v1273, %v1269
  %v1870 = vpack.c.b16 %v1278, %v1274
  %v1871 = vpack.c.b16 %v1279, %v1275
  %v1872 = vpack.c.b16 %v1280, %v1276
  %v1873 = vpack.c.b16 %v1281, %v1277
  %v1874 = vpack.c.b16 %v1286, %v1282
  %v1875 = vpack.c.b16 %v1287, %v1283
  %v1876 = vpack.c.b16 %v1288, %v1284
  %v1877 = vpack.c.b16 %v1289, %v1285
  %v1878 = vpack.c.b16 %v1294, %v1290
  %v1879 = vpack.c.b16 %v1295, %v1291
  %v1880 = vpack.c.b16 %v1296, %v1292
  %v1881 = vpack.c.b16 %v1297, %v1293
  %v1882 = vpack.c.b16 %v1302, %v1298
  %v1883 = vpack.c.b16 %v1303, %v1299
  %v1884 = vpack.c.b16 %v1304, %v1300
  %v1885 = vpack.c.b16 %v1305, %v1301
  %v1886 = vpack.c.b16 %v1310, %v1306
  %v1887 = vpack.c.b16 %v1311, %v1307
  %v1888 = vpack.c.b16 %v1312, %v1308
  %v1889 = vpack.c.b16 %v1313, %v1309
  %v1890 = vpack.c.b16 %v1318, %v1314
  %v1891 = vpack.c.b16 %v1319, %v1315
  %v1892 = vpack.c.b16 %v1320, %v1316
  %v1893 = vpack.c.b16 %v1321, %v1317
  %v1894 = vpack.c.b16 %v1326, %v1322
  %v1895 = vpack.c.b16 %v1327, %v1323
  %v1896 = vpack.c.b16 %v1328, %v1324
  %v1897 = vpack.c.b16 %v1329, %v1325
  %v1898 = vpack.c.b16 %v1334, %v1330
  %v1899 = vpack.c.b16 %v1335, %v1331
  %v1900 = vpack.c.b16 %v1336, %v1332
  %v1901 = vpack.c.b16 %v1337, %v1333
  %v1902 = vpack.c.b16 %v1342, %v1338
  %v1903 = vpack.c.b16 %v1343, %v1339
  %v1904 = vpack.c.b16 %v1344, %v1340
  %v1905 = vpack.c.b16 %v1345, %v1341
  %v1906 = vpack.c.b16 %v1350, %v1346
  %v1907 = vpack.c.b16 %v1351, %v1347
  %v1908 = vpack.c.b16 %v1352, %v1348
  %v1909 = vpack.c.b16 %v1353, %v1349
  %v1910 = vpack.c.b16 %v1358, %v1354
  %v1911 = vpack.c.b16 %v1359, %v1355
  %v1912 = vpack.c.b16 %v1360, %v1356
  %v1913 = vpack.c.b16 %v1361, %v1357
  %v1914 = vpack.c.b16 %v1366, %v1362
  %v1915 = vpack.c.b16 %v1367, %v1363
  %v1916 = vpack.c.b16 %v1368, %v1364
  %v1917 = vpack.c.b16 %v1369, %v1365
  %v1918 = vpack.c.b16 %v1374, %v1370
  %v1919 = vpack.c.b16 %v1375, %v1371
  %v1920 = vpack.c.b16 %v1376, %v1372
  %v1921 = vpack.c.b16 %v1377, %v1373
  %v1922 = vpack.c.b16 %v1382, %v1378
  %v1923 = vpack.c.b16 %v1383, %v1379
  %v1924 = vpack.c.b16 %v1384, %v1380
  %v1925 = vpack.c.b16 %v1385, %v1381
  %v1926 = vpack.c.b16 %v1390, %v1386
  %v1927 = vpack.c.b16 %v1391, %v1387
  %v1928 = vpack.c.b16 %v1392, %v1388
  %v1929 = vpack.c.b16 %v1393, %v1389
  %v1930 = vpack.c.b16 %v1398, %v1394
  %v1931 = vpack.c.b16 %v1399, %v1395
  %v1932 = vpack.c.b16 %v1400, %v1396
  %v1933 = vpack.c.b16 %v1401, %v1397
  %v1934 = vpack.c.b16 %v1406, %v1402
  %v1935 = vpack.c.b16 %v1407, %v1403
  %v1936 = vpack.c.b16 %v1408, %v1404
  %v1937 = vpack.c.b16 %v1409, %v1405
  %v1938 = vpack.c.b16 %v1414, %v1410
  %v1939 = vpack.c.b16 %v1415, %v1411
  %v1940 = vpack.c.b16 %v1416, %v1412
  %v1941 = vpack.c.b16 %v1417, %v1413
  %v1942 = vpack.c.b16 %v1422, %v1418
  %v1943 = vpack.c.b16 %v1423, %v1419
  %v1944 = vpack.c.b16 %v1424, %v1420
  %v1945 = vpack.c.b16 %v1425, %v1421
  %v1946 = vpack.c.b16 %v1430, %v1426
  %v1947 = vpack.c.b16 %v1431, %v1427
  %v1948 = vpack.c.b16 %v1432, %v1428
  %v1949 = vpack.c.b16 %v1433, %v1429
  %v1950 = vpack.c.b16 %v1438, %v1434
  %v1951 = vpack.c.b16 %v1439, %v1435
  %v1952 = vpack.c.b16 %v1440, %v1436
  %v1953 = vpack.c.b16 %v1441, %v1437
  %v1954 = vpack.c.b16 %v1446, %v1442
  %v1955 = vpack.c.b16 %v1447, %v1443
  %v1956 = vpack.c.b16 %v1448, %v1444
  %v1957 = vpack.c.b16 %v1449, %v1445
  %v1958 = vpack.c.b16 %v1454, %v1450
  %v1959 = vpack.c.b16 %v1455, %v1451
  %v1960 = vpack.c.b16 %v1456, %v1452
  %v1961 = vpack.c.b16 %v1457, %v1453
  %v1962 = vpack.c.b16 %v1462, %v1458
  %v1963 = vpack.c.b16 %v1463, %v1459
  %v1964 = vpack.c.b16 %v1464, %v1460
  %v1965 = vpack.c.b16 %v1465, %v1461
  %v1966 = vpack.c.b16 %v1470, %v1466
  %v1967 = vpack.c.b16 %v1471, %v1467
  %v1968 = vpack.c.b16 %v1472, %v1468
  %v1969 = vpack.c.b16 %v1473, %v1469
  %v1970 = vpack.c.b16 %v1478, %v1474
  %v1971 = vpack.c.b16 %v1479, %v1475
  %v1972 = vpack.c.b16 %v1480, %v1476
  %v1973 = vpack.c.b16 %v1481, %v1477
  %v1974 = vpack.c.b16 %v1486, %v1482
  %v1975 = vpack.c.b16 %v1487, %v1483
  %v1976 = vpack.c.b16 %v1488, %v1484
  %v1977 = vpack.c.b16 %v1489, %v1485
  %v1978 = vpack.c.b16 %v1494, %v1490
  %v1979 = vpack.c.b16 %v1495, %v1491
  %v1980 = vpack.c.b16 %v1496, %v1492
  %v1981 = vpack.c.b16 %v1497, %v1493
  %v1982 = vpack.c.b16 %v1502, %v1498
  %v1983 = vpack.c.b16 %v1503, %v1499
  %v1984 = vpack.c.b16 %v1504, %v1500
  %v1985 = vpack.c.b16 %v1505, %v1501
  %v1986 = vpack.c.b16 %v1510, %v1506
  %v1987 = vpack.c.b16 %v1511, %v1507
  %v1988 = vpack.c.b16 %v1512, %v1508
  %v1989 = vpack.c.b16 %v1513, %v1509
  %v1990 = vpack.c.b16 %v1518, %v1514
  %v1991 = vpack.c.b16 %v1519, %v1515
  %v1992 = vpack.c.b16 %v1520, %v1516
  %v1993 = vpack.c.b16 %v1521, %v1517
  %v1994 = vpack.c.b16 %v1526, %v1522
  %v1995 = vpack.c.b16 %v1527, %v1523
  %v1996 = vpack.c.b16 %v1528, %v1524
  %v1997 = vpack.c.b16 %v1529, %v1525
  %v1998 = vpack.c.b16 %v1534, %v1530
  %v1999 = vpack.c.b16 %v1535, %v1531
  %v2000 = vpack.c.b16 %v1536, %v1532
  %v2001 = vpack.c.b16 %v1537, %v1533
  %v2002 = vpack.c.b16 %v1542, %v1538
  %v2003 = vpack.c.b16 %v1543, %v1539
  %v2004 = vpack.c.b16 %v1544, %v1540
  %v2005 = vpack.c.b16 %v1545, %v1541
  %v2006 = vpack.c.b16 %v1550, %v1546
  %v2007 = vpack.c.b16 %v1551, %v1547
  %v2008 = vpack.c.b16 %v1552, %v1548
  %v2009 = vpack.c.b16 %v1553, %v1549
  %v2010 = vpack.c.b16 %v1558, %v1554
  %v2011 = vpack.c.b16 %v1559, %v1555
  %v2012 = vpack.c.b16 %v1560, %v1556
  %v2013 = vpack.c.b16 %v1561, %v1557
  %v2014 = vpack.c.b16 %v1566, %v1562
  %v2015 = vpack.c.b16 %v1567, %v1563
  %v2016 = vpack.c.b16 %v1568, %v1564
  %v2017 = vpack.c.b16 %v1569, %v1565
  %v2018 = vpack.c.b16 %v1574, %v1570
  %v2019 = vpack.c.b16 %v1575, %v1571
  %v2020 = vpack.c.b16 %v1576, %v1572
  %v2021 = vpack.c.b16 %v1577, %v1573
  %v2022 = vpack.c.b16 %v1582, %v1578
  %v2023 = vpack.c.b16 %v1583, %v1579
  %v2024 = vpack.c.b16 %v1584, %v1580
  %v2025 = vpack.c.b16 %v1585, %v1581
  %v2026 = vpack.c.b16 %v1590, %v1586
  %v2027 = vpack.c.b16 %v1591, %v1587
  %v2028 = vpack.c.b16 %v1592, %v1588
  %v2029 = vpack.c.b16 %v1593, %v1589
  %v2030 = vpack.c.b16 %v1598, %v1594
  %v2031 = vpack.c.b16 %v1599, %v1595
  %v2032 = vpack.c.b16 %v1600, %v1596
  %v2033 = vpack.c.b16 %v1601, %v1597
  %v2034 = vpack.c.b16 %v1606, %v1602
  %v2035 = vpack.c.b16 %v1607, %v1603
  %v2036 = vpack.c.b16 %v1608, %v1604
  %v2037 = vpack.c.b16 %v1609, %v1605
  %v2038 = vpack.c.b16 %v1614, %v1610
  %v2039 = vpack.c.b16 %v1615, %v1611
  %v2040 = vpack.c.b16 %v1616, %v1612
  %v2041 = vpack.c.b16 %v1617, %v1613
  %v2042 = vpack.c.b16 %v1622, %v1618
  %v2043 = vpack.c.b16 %v1623, %v1619
  %v2044 = vpack.c.b16 %v1624, %v1620
  %v2045 = vpack.c.b16 %v1625, %v1621
  %v2046 = vpack.c.b16 %v1630, %v1626
  %v2047 = vpack.c.b16 %v1631, %v1627
  %v2048 = vpack.c.b16 %v1632, %v1628
  %v2049 = vpack.c.b16 %v1633, %v1629
  %v2050 = vpack.c.b16 %v1638, %v1634
  %v2051 = vpack.c.b16 %v1639, %v1635
  %v2052 = vpack.c.b16 %v1640, %v1636
  %v2053 = vpack.c.b16 %v1641, %v1637
  %v2054 = vpack.c.b16 %v1646, %v1642
  %v2055 = vpack.c.b16 %v1647, %v1643
  %v2056 = vpack.c.b16 %v1648, %v1644
  %v2057 = vpack.c.b16 %v1649, %v1645
  %v2058 = vpack.c.b16 %v1654, %v1650
  %v2059 = vpack.c.b16 %v1655, %v1651
  %v2060 = vpack.c.b16 %v1656, %v1652
  %v2061 = vpack.c.b16 %v1657, %v1653
  %v2062 = vpack.c.b16 %v1662, %v1658
  %v2063 = vpack.c.b16 %v1663, %v1659
  %v2064 = vpack.c.b16 %v1664, %v1660
  %v2065 = vpack.c.b16 %v1665, %v1661
  %v2066 = vpack.c.b16 %v1670, %v1666
  %v2067 = vpack.c.b16 %v1671, %v1667
  %v2068 = vpack.c.b16 %v1672, %v1668
  %v2069 = vpack.c.b16 %v1673, %v1669
  %v2070 = vpack.c.b16 %v1678, %v1674
  %v2071 = vpack.c.b16 %v1679, %v1675
  %v2072 = vpack.c.b16 %v1680, %v1676
  %v2073 = vpack.c.b16 %v1681, %v1677
  %vm2466 = vcmask 261120
  %v2468 = vsel %vm2466, %v493, 0
  %2470 = vmatpush.bf16.msra.mxu0 %v1710
  %2471 = vmatpush.bf16.msra.mxu0 %v1706
  %2472 = vmatpush.bf16.msra.mxu0 %v1702
  %2473 = vmatpush.bf16.msra.mxu0 %v1698
  %2474 = vmatpush.bf16.msra.mxu0 %v1694
  %2475 = vmatpush.bf16.msra.mxu0 %v1690
  %2476 = vmatpush.bf16.msra.mxu0 %v1686
  %2477 = vmatpush.bf16.msra.mxu0 %v1682
  %2478 = vmatmul.bf16.gmra.mxu0 %v481
  %v2479 = vpop.f32.mrf.mxu0
  %v2480 = vadd.f32 %v433, %v2479
  %v2481 = vpop.f32.mrf.mxu0
  %v2482 = vadd.f32 %v433, %v2481
  %2483 = vdwg.mxu0
  %2484 = vmatpush.bf16.msra.mxu0 %v1742
  %2485 = vmatpush.bf16.msra.mxu0 %v1738
  %2486 = vmatpush.bf16.msra.mxu0 %v1734
  %2487 = vmatpush.bf16.msra.mxu0 %v1730
  %2488 = vmatpush.bf16.msra.mxu0 %v1726
  %2489 = vmatpush.bf16.msra.mxu0 %v1722
  %2490 = vmatpush.bf16.msra.mxu0 %v1718
  %2491 = vmatpush.bf16.msra.mxu0 %v1714
  %2492 = vmatmul.bf16.gmra.mxu0 %v482
  %v2493 = vpop.f32.mrf.mxu0
  %v2494 = vadd.f32 %v2480, %v2493
  %v2495 = vpop.f32.mrf.mxu0
  %v2496 = vadd.f32 %v2482, %v2495
  %2497 = vdwg.mxu0
  %2498 = vmatpush.bf16.msra.mxu0 %v1774
  %2499 = vmatpush.bf16.msra.mxu0 %v1770
  %2500 = vmatpush.bf16.msra.mxu0 %v1766
  %2501 = vmatpush.bf16.msra.mxu0 %v1762
  %2502 = vmatpush.bf16.msra.mxu0 %v1758
  %2503 = vmatpush.bf16.msra.mxu0 %v1754
  %2504 = vmatpush.bf16.msra.mxu0 %v1750
  %2505 = vmatpush.bf16.msra.mxu0 %v1746
  %2506 = vmatmul.bf16.gmra.mxu0 %v483
  %v2507 = vpop.f32.mrf.mxu0
  %v2508 = vadd.f32 %v2494, %v2507
  %v2509 = vpop.f32.mrf.mxu0
  %v2510 = vadd.f32 %v2496, %v2509
  %2511 = vdwg.mxu0
  %2512 = vmatpush.bf16.msra.mxu0 %v1806
  %2513 = vmatpush.bf16.msra.mxu0 %v1802
  %2514 = vmatpush.bf16.msra.mxu0 %v1798
  %2515 = vmatpush.bf16.msra.mxu0 %v1794
  %2516 = vmatpush.bf16.msra.mxu0 %v1790
  %2517 = vmatpush.bf16.msra.mxu0 %v1786
  %2518 = vmatpush.bf16.msra.mxu0 %v1782
  %2519 = vmatpush.bf16.msra.mxu0 %v1778
  %2520 = vmatmul.bf16.gmra.mxu0 %v484
  %v2521 = vpop.f32.mrf.mxu0
  %v2522 = vadd.f32 %v2508, %v2521
  %v2523 = vpop.f32.mrf.mxu0
  %v2524 = vadd.f32 %v2510, %v2523
  %2525 = vdwg.mxu0
  %2526 = vmatpush.bf16.msra.mxu0 %v1838
  %2527 = vmatpush.bf16.msra.mxu0 %v1834
  %2528 = vmatpush.bf16.msra.mxu0 %v1830
  %2529 = vmatpush.bf16.msra.mxu0 %v1826
  %2530 = vmatpush.bf16.msra.mxu0 %v1822
  %2531 = vmatpush.bf16.msra.mxu0 %v1818
  %2532 = vmatpush.bf16.msra.mxu0 %v1814
  %2533 = vmatpush.bf16.msra.mxu0 %v1810
  %2534 = vmatmul.bf16.gmra.mxu0 %v485
  %v2535 = vpop.f32.mrf.mxu0
  %v2536 = vadd.f32 %v2522, %v2535
  %v2537 = vpop.f32.mrf.mxu0
  %v2538 = vadd.f32 %v2524, %v2537
  %2539 = vdwg.mxu0
  %2540 = vmatpush.bf16.msra.mxu0 %v1870
  %2541 = vmatpush.bf16.msra.mxu0 %v1866
  %2542 = vmatpush.bf16.msra.mxu0 %v1862
  %2543 = vmatpush.bf16.msra.mxu0 %v1858
  %2544 = vmatpush.bf16.msra.mxu0 %v1854
  %2545 = vmatpush.bf16.msra.mxu0 %v1850
  %2546 = vmatpush.bf16.msra.mxu0 %v1846
  %2547 = vmatpush.bf16.msra.mxu0 %v1842
  %2548 = vmatmul.bf16.gmra.mxu0 %v486
  %v2549 = vpop.f32.mrf.mxu0
  %v2550 = vadd.f32 %v2536, %v2549
  %v2551 = vpop.f32.mrf.mxu0
  %v2552 = vadd.f32 %v2538, %v2551
  %2553 = vdwg.mxu0
  %2554 = vmatpush.bf16.msra.mxu0 %v1902
  %2555 = vmatpush.bf16.msra.mxu0 %v1898
  %2556 = vmatpush.bf16.msra.mxu0 %v1894
  %2557 = vmatpush.bf16.msra.mxu0 %v1890
  %2558 = vmatpush.bf16.msra.mxu0 %v1886
  %2559 = vmatpush.bf16.msra.mxu0 %v1882
  %2560 = vmatpush.bf16.msra.mxu0 %v1878
  %2561 = vmatpush.bf16.msra.mxu0 %v1874
  %2562 = vmatmul.bf16.gmra.mxu0 %v487
  %v2563 = vpop.f32.mrf.mxu0
  %v2564 = vadd.f32 %v2550, %v2563
  %v2565 = vpop.f32.mrf.mxu0
  %v2566 = vadd.f32 %v2552, %v2565
  %2567 = vdwg.mxu0
  %2568 = vmatpush.bf16.msra.mxu0 %v1934
  %2569 = vmatpush.bf16.msra.mxu0 %v1930
  %2570 = vmatpush.bf16.msra.mxu0 %v1926
  %2571 = vmatpush.bf16.msra.mxu0 %v1922
  %2572 = vmatpush.bf16.msra.mxu0 %v1918
  %2573 = vmatpush.bf16.msra.mxu0 %v1914
  %2574 = vmatpush.bf16.msra.mxu0 %v1910
  %2575 = vmatpush.bf16.msra.mxu0 %v1906
  %2576 = vmatmul.bf16.gmra.mxu0 %v488
  %v2577 = vpop.f32.mrf.mxu0
  %v2578 = vadd.f32 %v2564, %v2577
  %v2579 = vpop.f32.mrf.mxu0
  %v2580 = vadd.f32 %v2566, %v2579
  %2581 = vdwg.mxu0
  %2582 = vmatpush.bf16.msra.mxu0 %v1966
  %2583 = vmatpush.bf16.msra.mxu0 %v1962
  %2584 = vmatpush.bf16.msra.mxu0 %v1958
  %2585 = vmatpush.bf16.msra.mxu0 %v1954
  %2586 = vmatpush.bf16.msra.mxu0 %v1950
  %2587 = vmatpush.bf16.msra.mxu0 %v1946
  %2588 = vmatpush.bf16.msra.mxu0 %v1942
  %2589 = vmatpush.bf16.msra.mxu0 %v1938
  %2590 = vmatmul.bf16.gmra.mxu0 %v489
  %v2591 = vpop.f32.mrf.mxu0
  %v2592 = vadd.f32 %v2578, %v2591
  %v2593 = vpop.f32.mrf.mxu0
  %v2594 = vadd.f32 %v2580, %v2593
  %2595 = vdwg.mxu0
  %2596 = vmatpush.bf16.msra.mxu0 %v1998
  %2597 = vmatpush.bf16.msra.mxu0 %v1994
  %2598 = vmatpush.bf16.msra.mxu0 %v1990
  %2599 = vmatpush.bf16.msra.mxu0 %v1986
  %2600 = vmatpush.bf16.msra.mxu0 %v1982
  %2601 = vmatpush.bf16.msra.mxu0 %v1978
  %2602 = vmatpush.bf16.msra.mxu0 %v1974
  %2603 = vmatpush.bf16.msra.mxu0 %v1970
  %2604 = vmatmul.bf16.gmra.mxu0 %v490
  %v2605 = vpop.f32.mrf.mxu0
  %v2606 = vadd.f32 %v2592, %v2605
  %v2607 = vpop.f32.mrf.mxu0
  %v2608 = vadd.f32 %v2594, %v2607
  %2609 = vdwg.mxu0
  %2610 = vmatpush.bf16.msra.mxu0 %v2030
  %2611 = vmatpush.bf16.msra.mxu0 %v2026
  %2612 = vmatpush.bf16.msra.mxu0 %v2022
  %2613 = vmatpush.bf16.msra.mxu0 %v2018
  %2614 = vmatpush.bf16.msra.mxu0 %v2014
  %2615 = vmatpush.bf16.msra.mxu0 %v2010
  %2616 = vmatpush.bf16.msra.mxu0 %v2006
  %2617 = vmatpush.bf16.msra.mxu0 %v2002
  %2618 = vmatmul.bf16.gmra.mxu0 %v491
  %v2619 = vpop.f32.mrf.mxu0
  %v2620 = vadd.f32 %v2606, %v2619
  %v2621 = vpop.f32.mrf.mxu0
  %v2622 = vadd.f32 %v2608, %v2621
  %2623 = vdwg.mxu0
  %2624 = vmatpush.bf16.msra.mxu0 %v2062
  %2625 = vmatpush.bf16.msra.mxu0 %v2058
  %2626 = vmatpush.bf16.msra.mxu0 %v2054
  %2627 = vmatpush.bf16.msra.mxu0 %v2050
  %2628 = vmatpush.bf16.msra.mxu0 %v2046
  %2629 = vmatpush.bf16.msra.mxu0 %v2042
  %2630 = vmatpush.bf16.msra.mxu0 %v2038
  %2631 = vmatpush.bf16.msra.mxu0 %v2034
  %2632 = vmatmul.bf16.gmra.mxu0 %v492
  %v2633 = vpop.f32.mrf.mxu0
  %v2634 = vadd.f32 %v2620, %v2633
  %v2635 = vpop.f32.mrf.mxu0
  %v2636 = vadd.f32 %v2622, %v2635
  %2637 = vdwg.mxu0
  %2638 = vmatpush.bf16.msra.mxu0 0
  %2639 = vmatpush.bf16.msra.mxu0 0
  %2640 = vmatpush.bf16.msra.mxu0 0
  %2641 = vmatpush.bf16.msra.mxu0 0
  %2642 = vmatpush.bf16.msra.mxu0 0
  %2643 = vmatpush.bf16.msra.mxu0 0
  %2644 = vmatpush.bf16.msra.mxu0 %v2070
  %2645 = vmatpush.bf16.msra.mxu0 %v2066
  %2646 = vmatmul.bf16.gmra.mxu0 %v2468
  %v2647 = vpop.f32.mrf.mxu0
  %v2648 = vadd.f32 %v2634, %v2647
  %v2649 = vpop.f32.mrf.mxu0
  %v2650 = vadd.f32 %v2636, %v2649
  %2651 = vdwg.mxu0
  %2652 = vmatpush.bf16.msra.mxu0 %v1711
  %2653 = vmatpush.bf16.msra.mxu0 %v1707
  %2654 = vmatpush.bf16.msra.mxu0 %v1703
  %2655 = vmatpush.bf16.msra.mxu0 %v1699
  %2656 = vmatpush.bf16.msra.mxu0 %v1695
  %2657 = vmatpush.bf16.msra.mxu0 %v1691
  %2658 = vmatpush.bf16.msra.mxu0 %v1687
  %2659 = vmatpush.bf16.msra.mxu0 %v1683
  %2660 = vmatmul.bf16.gmra.mxu0 %v481
  %v2661 = vpop.f32.mrf.mxu0
  %v2662 = vadd.f32 %v434, %v2661
  %v2663 = vpop.f32.mrf.mxu0
  %v2664 = vadd.f32 %v434, %v2663
  %2665 = vdwg.mxu0
  %2666 = vmatpush.bf16.msra.mxu0 %v1743
  %2667 = vmatpush.bf16.msra.mxu0 %v1739
  %2668 = vmatpush.bf16.msra.mxu0 %v1735
  %2669 = vmatpush.bf16.msra.mxu0 %v1731
  %2670 = vmatpush.bf16.msra.mxu0 %v1727
  %2671 = vmatpush.bf16.msra.mxu0 %v1723
  %2672 = vmatpush.bf16.msra.mxu0 %v1719
  %2673 = vmatpush.bf16.msra.mxu0 %v1715
  %2674 = vmatmul.bf16.gmra.mxu0 %v482
  %v2675 = vpop.f32.mrf.mxu0
  %v2676 = vadd.f32 %v2662, %v2675
  %v2677 = vpop.f32.mrf.mxu0
  %v2678 = vadd.f32 %v2664, %v2677
  %2679 = vdwg.mxu0
  %2680 = vmatpush.bf16.msra.mxu0 %v1775
  %2681 = vmatpush.bf16.msra.mxu0 %v1771
  %2682 = vmatpush.bf16.msra.mxu0 %v1767
  %2683 = vmatpush.bf16.msra.mxu0 %v1763
  %2684 = vmatpush.bf16.msra.mxu0 %v1759
  %2685 = vmatpush.bf16.msra.mxu0 %v1755
  %2686 = vmatpush.bf16.msra.mxu0 %v1751
  %2687 = vmatpush.bf16.msra.mxu0 %v1747
  %2688 = vmatmul.bf16.gmra.mxu0 %v483
  %v2689 = vpop.f32.mrf.mxu0
  %v2690 = vadd.f32 %v2676, %v2689
  %v2691 = vpop.f32.mrf.mxu0
  %v2692 = vadd.f32 %v2678, %v2691
  %2693 = vdwg.mxu0
  %2694 = vmatpush.bf16.msra.mxu0 %v1807
  %2695 = vmatpush.bf16.msra.mxu0 %v1803
  %2696 = vmatpush.bf16.msra.mxu0 %v1799
  %2697 = vmatpush.bf16.msra.mxu0 %v1795
  %2698 = vmatpush.bf16.msra.mxu0 %v1791
  %2699 = vmatpush.bf16.msra.mxu0 %v1787
  %2700 = vmatpush.bf16.msra.mxu0 %v1783
  %2701 = vmatpush.bf16.msra.mxu0 %v1779
  %2702 = vmatmul.bf16.gmra.mxu0 %v484
  %v2703 = vpop.f32.mrf.mxu0
  %v2704 = vadd.f32 %v2690, %v2703
  %v2705 = vpop.f32.mrf.mxu0
  %v2706 = vadd.f32 %v2692, %v2705
  %2707 = vdwg.mxu0
  %2708 = vmatpush.bf16.msra.mxu0 %v1839
  %2709 = vmatpush.bf16.msra.mxu0 %v1835
  %2710 = vmatpush.bf16.msra.mxu0 %v1831
  %2711 = vmatpush.bf16.msra.mxu0 %v1827
  %2712 = vmatpush.bf16.msra.mxu0 %v1823
  %2713 = vmatpush.bf16.msra.mxu0 %v1819
  %2714 = vmatpush.bf16.msra.mxu0 %v1815
  %2715 = vmatpush.bf16.msra.mxu0 %v1811
  %2716 = vmatmul.bf16.gmra.mxu0 %v485
  %v2717 = vpop.f32.mrf.mxu0
  %v2718 = vadd.f32 %v2704, %v2717
  %v2719 = vpop.f32.mrf.mxu0
  %v2720 = vadd.f32 %v2706, %v2719
  %2721 = vdwg.mxu0
  %2722 = vmatpush.bf16.msra.mxu0 %v1871
  %2723 = vmatpush.bf16.msra.mxu0 %v1867
  %2724 = vmatpush.bf16.msra.mxu0 %v1863
  %2725 = vmatpush.bf16.msra.mxu0 %v1859
  %2726 = vmatpush.bf16.msra.mxu0 %v1855
  %2727 = vmatpush.bf16.msra.mxu0 %v1851
  %2728 = vmatpush.bf16.msra.mxu0 %v1847
  %2729 = vmatpush.bf16.msra.mxu0 %v1843
  %2730 = vmatmul.bf16.gmra.mxu0 %v486
  %v2731 = vpop.f32.mrf.mxu0
  %v2732 = vadd.f32 %v2718, %v2731
  %v2733 = vpop.f32.mrf.mxu0
  %v2734 = vadd.f32 %v2720, %v2733
  %2735 = vdwg.mxu0
  %2736 = vmatpush.bf16.msra.mxu0 %v1903
  %2737 = vmatpush.bf16.msra.mxu0 %v1899
  %2738 = vmatpush.bf16.msra.mxu0 %v1895
  %2739 = vmatpush.bf16.msra.mxu0 %v1891
  %2740 = vmatpush.bf16.msra.mxu0 %v1887
  %2741 = vmatpush.bf16.msra.mxu0 %v1883
  %2742 = vmatpush.bf16.msra.mxu0 %v1879
  %2743 = vmatpush.bf16.msra.mxu0 %v1875
  %2744 = vmatmul.bf16.gmra.mxu0 %v487
  %v2745 = vpop.f32.mrf.mxu0
  %v2746 = vadd.f32 %v2732, %v2745
  %v2747 = vpop.f32.mrf.mxu0
  %v2748 = vadd.f32 %v2734, %v2747
  %2749 = vdwg.mxu0
  %2750 = vmatpush.bf16.msra.mxu0 %v1935
  %2751 = vmatpush.bf16.msra.mxu0 %v1931
  %2752 = vmatpush.bf16.msra.mxu0 %v1927
  %2753 = vmatpush.bf16.msra.mxu0 %v1923
  %2754 = vmatpush.bf16.msra.mxu0 %v1919
  %2755 = vmatpush.bf16.msra.mxu0 %v1915
  %2756 = vmatpush.bf16.msra.mxu0 %v1911
  %2757 = vmatpush.bf16.msra.mxu0 %v1907
  %2758 = vmatmul.bf16.gmra.mxu0 %v488
  %v2759 = vpop.f32.mrf.mxu0
  %v2760 = vadd.f32 %v2746, %v2759
  %v2761 = vpop.f32.mrf.mxu0
  %v2762 = vadd.f32 %v2748, %v2761
  %2763 = vdwg.mxu0
  %2764 = vmatpush.bf16.msra.mxu0 %v1967
  %2765 = vmatpush.bf16.msra.mxu0 %v1963
  %2766 = vmatpush.bf16.msra.mxu0 %v1959
  %2767 = vmatpush.bf16.msra.mxu0 %v1955
  %2768 = vmatpush.bf16.msra.mxu0 %v1951
  %2769 = vmatpush.bf16.msra.mxu0 %v1947
  %2770 = vmatpush.bf16.msra.mxu0 %v1943
  %2771 = vmatpush.bf16.msra.mxu0 %v1939
  %2772 = vmatmul.bf16.gmra.mxu0 %v489
  %v2773 = vpop.f32.mrf.mxu0
  %v2774 = vadd.f32 %v2760, %v2773
  %v2775 = vpop.f32.mrf.mxu0
  %v2776 = vadd.f32 %v2762, %v2775
  %2777 = vdwg.mxu0
  %2778 = vmatpush.bf16.msra.mxu0 %v1999
  %2779 = vmatpush.bf16.msra.mxu0 %v1995
  %2780 = vmatpush.bf16.msra.mxu0 %v1991
  %2781 = vmatpush.bf16.msra.mxu0 %v1987
  %2782 = vmatpush.bf16.msra.mxu0 %v1983
  %2783 = vmatpush.bf16.msra.mxu0 %v1979
  %2784 = vmatpush.bf16.msra.mxu0 %v1975
  %2785 = vmatpush.bf16.msra.mxu0 %v1971
  %2786 = vmatmul.bf16.gmra.mxu0 %v490
  %v2787 = vpop.f32.mrf.mxu0
  %v2788 = vadd.f32 %v2774, %v2787
  %v2789 = vpop.f32.mrf.mxu0
  %v2790 = vadd.f32 %v2776, %v2789
  %2791 = vdwg.mxu0
  %2792 = vmatpush.bf16.msra.mxu0 %v2031
  %2793 = vmatpush.bf16.msra.mxu0 %v2027
  %2794 = vmatpush.bf16.msra.mxu0 %v2023
  %2795 = vmatpush.bf16.msra.mxu0 %v2019
  %2796 = vmatpush.bf16.msra.mxu0 %v2015
  %2797 = vmatpush.bf16.msra.mxu0 %v2011
  %2798 = vmatpush.bf16.msra.mxu0 %v2007
  %2799 = vmatpush.bf16.msra.mxu0 %v2003
  %2800 = vmatmul.bf16.gmra.mxu0 %v491
  %v2801 = vpop.f32.mrf.mxu0
  %v2802 = vadd.f32 %v2788, %v2801
  %v2803 = vpop.f32.mrf.mxu0
  %v2804 = vadd.f32 %v2790, %v2803
  %2805 = vdwg.mxu0
  %2806 = vmatpush.bf16.msra.mxu0 %v2063
  %2807 = vmatpush.bf16.msra.mxu0 %v2059
  %2808 = vmatpush.bf16.msra.mxu0 %v2055
  %2809 = vmatpush.bf16.msra.mxu0 %v2051
  %2810 = vmatpush.bf16.msra.mxu0 %v2047
  %2811 = vmatpush.bf16.msra.mxu0 %v2043
  %2812 = vmatpush.bf16.msra.mxu0 %v2039
  %2813 = vmatpush.bf16.msra.mxu0 %v2035
  %2814 = vmatmul.bf16.gmra.mxu0 %v492
  %v2815 = vpop.f32.mrf.mxu0
  %v2816 = vadd.f32 %v2802, %v2815
  %v2817 = vpop.f32.mrf.mxu0
  %v2818 = vadd.f32 %v2804, %v2817
  %2819 = vdwg.mxu0
  %2820 = vmatpush.bf16.msra.mxu0 0
  %2821 = vmatpush.bf16.msra.mxu0 0
  %2822 = vmatpush.bf16.msra.mxu0 0
  %2823 = vmatpush.bf16.msra.mxu0 0
  %2824 = vmatpush.bf16.msra.mxu0 0
  %2825 = vmatpush.bf16.msra.mxu0 0
  %2826 = vmatpush.bf16.msra.mxu0 %v2071
  %2827 = vmatpush.bf16.msra.mxu0 %v2067
  %2828 = vmatmul.bf16.gmra.mxu0 %v2468
  %v2829 = vpop.f32.mrf.mxu0
  %v2830 = vadd.f32 %v2816, %v2829
  %v2831 = vpop.f32.mrf.mxu0
  %v2832 = vadd.f32 %v2818, %v2831
  %2833 = vdwg.mxu0
  %2834 = vmatpush.bf16.msra.mxu0 %v1712
  %2835 = vmatpush.bf16.msra.mxu0 %v1708
  %2836 = vmatpush.bf16.msra.mxu0 %v1704
  %2837 = vmatpush.bf16.msra.mxu0 %v1700
  %2838 = vmatpush.bf16.msra.mxu0 %v1696
  %2839 = vmatpush.bf16.msra.mxu0 %v1692
  %2840 = vmatpush.bf16.msra.mxu0 %v1688
  %2841 = vmatpush.bf16.msra.mxu0 %v1684
  %2842 = vmatmul.bf16.gmra.mxu0 %v481
  %v2843 = vpop.f32.mrf.mxu0
  %v2844 = vadd.f32 %v435, %v2843
  %v2845 = vpop.f32.mrf.mxu0
  %v2846 = vadd.f32 %v435, %v2845
  %2847 = vdwg.mxu0
  %2848 = vmatpush.bf16.msra.mxu0 %v1744
  %2849 = vmatpush.bf16.msra.mxu0 %v1740
  %2850 = vmatpush.bf16.msra.mxu0 %v1736
  %2851 = vmatpush.bf16.msra.mxu0 %v1732
  %2852 = vmatpush.bf16.msra.mxu0 %v1728
  %2853 = vmatpush.bf16.msra.mxu0 %v1724
  %2854 = vmatpush.bf16.msra.mxu0 %v1720
  %2855 = vmatpush.bf16.msra.mxu0 %v1716
  %2856 = vmatmul.bf16.gmra.mxu0 %v482
  %v2857 = vpop.f32.mrf.mxu0
  %v2858 = vadd.f32 %v2844, %v2857
  %v2859 = vpop.f32.mrf.mxu0
  %v2860 = vadd.f32 %v2846, %v2859
  %2861 = vdwg.mxu0
  %2862 = vmatpush.bf16.msra.mxu0 %v1776
  %2863 = vmatpush.bf16.msra.mxu0 %v1772
  %2864 = vmatpush.bf16.msra.mxu0 %v1768
  %2865 = vmatpush.bf16.msra.mxu0 %v1764
  %2866 = vmatpush.bf16.msra.mxu0 %v1760
  %2867 = vmatpush.bf16.msra.mxu0 %v1756
  %2868 = vmatpush.bf16.msra.mxu0 %v1752
  %2869 = vmatpush.bf16.msra.mxu0 %v1748
  %2870 = vmatmul.bf16.gmra.mxu0 %v483
  %v2871 = vpop.f32.mrf.mxu0
  %v2872 = vadd.f32 %v2858, %v2871
  %v2873 = vpop.f32.mrf.mxu0
  %v2874 = vadd.f32 %v2860, %v2873
  %2875 = vdwg.mxu0
  %2876 = vmatpush.bf16.msra.mxu0 %v1808
  %2877 = vmatpush.bf16.msra.mxu0 %v1804
  %2878 = vmatpush.bf16.msra.mxu0 %v1800
  %2879 = vmatpush.bf16.msra.mxu0 %v1796
  %2880 = vmatpush.bf16.msra.mxu0 %v1792
  %2881 = vmatpush.bf16.msra.mxu0 %v1788
  %2882 = vmatpush.bf16.msra.mxu0 %v1784
  %2883 = vmatpush.bf16.msra.mxu0 %v1780
  %2884 = vmatmul.bf16.gmra.mxu0 %v484
  %v2885 = vpop.f32.mrf.mxu0
  %v2886 = vadd.f32 %v2872, %v2885
  %v2887 = vpop.f32.mrf.mxu0
  %v2888 = vadd.f32 %v2874, %v2887
  %2889 = vdwg.mxu0
  %2890 = vmatpush.bf16.msra.mxu0 %v1840
  %2891 = vmatpush.bf16.msra.mxu0 %v1836
  %2892 = vmatpush.bf16.msra.mxu0 %v1832
  %2893 = vmatpush.bf16.msra.mxu0 %v1828
  %2894 = vmatpush.bf16.msra.mxu0 %v1824
  %2895 = vmatpush.bf16.msra.mxu0 %v1820
  %2896 = vmatpush.bf16.msra.mxu0 %v1816
  %2897 = vmatpush.bf16.msra.mxu0 %v1812
  %2898 = vmatmul.bf16.gmra.mxu0 %v485
  %v2899 = vpop.f32.mrf.mxu0
  %v2900 = vadd.f32 %v2886, %v2899
  %v2901 = vpop.f32.mrf.mxu0
  %v2902 = vadd.f32 %v2888, %v2901
  %2903 = vdwg.mxu0
  %2904 = vmatpush.bf16.msra.mxu0 %v1872
  %2905 = vmatpush.bf16.msra.mxu0 %v1868
  %2906 = vmatpush.bf16.msra.mxu0 %v1864
  %2907 = vmatpush.bf16.msra.mxu0 %v1860
  %2908 = vmatpush.bf16.msra.mxu0 %v1856
  %2909 = vmatpush.bf16.msra.mxu0 %v1852
  %2910 = vmatpush.bf16.msra.mxu0 %v1848
  %2911 = vmatpush.bf16.msra.mxu0 %v1844
  %2912 = vmatmul.bf16.gmra.mxu0 %v486
  %v2913 = vpop.f32.mrf.mxu0
  %v2914 = vadd.f32 %v2900, %v2913
  %v2915 = vpop.f32.mrf.mxu0
  %v2916 = vadd.f32 %v2902, %v2915
  %2917 = vdwg.mxu0
  %2918 = vmatpush.bf16.msra.mxu0 %v1904
  %2919 = vmatpush.bf16.msra.mxu0 %v1900
  %2920 = vmatpush.bf16.msra.mxu0 %v1896
  %2921 = vmatpush.bf16.msra.mxu0 %v1892
  %2922 = vmatpush.bf16.msra.mxu0 %v1888
  %2923 = vmatpush.bf16.msra.mxu0 %v1884
  %2924 = vmatpush.bf16.msra.mxu0 %v1880
  %2925 = vmatpush.bf16.msra.mxu0 %v1876
  %2926 = vmatmul.bf16.gmra.mxu0 %v487
  %v2927 = vpop.f32.mrf.mxu0
  %v2928 = vadd.f32 %v2914, %v2927
  %v2929 = vpop.f32.mrf.mxu0
  %v2930 = vadd.f32 %v2916, %v2929
  %2931 = vdwg.mxu0
  %2932 = vmatpush.bf16.msra.mxu0 %v1936
  %2933 = vmatpush.bf16.msra.mxu0 %v1932
  %2934 = vmatpush.bf16.msra.mxu0 %v1928
  %2935 = vmatpush.bf16.msra.mxu0 %v1924
  %2936 = vmatpush.bf16.msra.mxu0 %v1920
  %2937 = vmatpush.bf16.msra.mxu0 %v1916
  %2938 = vmatpush.bf16.msra.mxu0 %v1912
  %2939 = vmatpush.bf16.msra.mxu0 %v1908
  %2940 = vmatmul.bf16.gmra.mxu0 %v488
  %v2941 = vpop.f32.mrf.mxu0
  %v2942 = vadd.f32 %v2928, %v2941
  %v2943 = vpop.f32.mrf.mxu0
  %v2944 = vadd.f32 %v2930, %v2943
  %2945 = vdwg.mxu0
  %2946 = vmatpush.bf16.msra.mxu0 %v1968
  %2947 = vmatpush.bf16.msra.mxu0 %v1964
  %2948 = vmatpush.bf16.msra.mxu0 %v1960
  %2949 = vmatpush.bf16.msra.mxu0 %v1956
  %2950 = vmatpush.bf16.msra.mxu0 %v1952
  %2951 = vmatpush.bf16.msra.mxu0 %v1948
  %2952 = vmatpush.bf16.msra.mxu0 %v1944
  %2953 = vmatpush.bf16.msra.mxu0 %v1940
  %2954 = vmatmul.bf16.gmra.mxu0 %v489
  %v2955 = vpop.f32.mrf.mxu0
  %v2956 = vadd.f32 %v2942, %v2955
  %v2957 = vpop.f32.mrf.mxu0
  %v2958 = vadd.f32 %v2944, %v2957
  %2959 = vdwg.mxu0
  %2960 = vmatpush.bf16.msra.mxu0 %v2000
  %2961 = vmatpush.bf16.msra.mxu0 %v1996
  %2962 = vmatpush.bf16.msra.mxu0 %v1992
  %2963 = vmatpush.bf16.msra.mxu0 %v1988
  %2964 = vmatpush.bf16.msra.mxu0 %v1984
  %2965 = vmatpush.bf16.msra.mxu0 %v1980
  %2966 = vmatpush.bf16.msra.mxu0 %v1976
  %2967 = vmatpush.bf16.msra.mxu0 %v1972
  %2968 = vmatmul.bf16.gmra.mxu0 %v490
  %v2969 = vpop.f32.mrf.mxu0
  %v2970 = vadd.f32 %v2956, %v2969
  %v2971 = vpop.f32.mrf.mxu0
  %v2972 = vadd.f32 %v2958, %v2971
  %2973 = vdwg.mxu0
  %2974 = vmatpush.bf16.msra.mxu0 %v2032
  %2975 = vmatpush.bf16.msra.mxu0 %v2028
  %2976 = vmatpush.bf16.msra.mxu0 %v2024
  %2977 = vmatpush.bf16.msra.mxu0 %v2020
  %2978 = vmatpush.bf16.msra.mxu0 %v2016
  %2979 = vmatpush.bf16.msra.mxu0 %v2012
  %2980 = vmatpush.bf16.msra.mxu0 %v2008
  %2981 = vmatpush.bf16.msra.mxu0 %v2004
  %2982 = vmatmul.bf16.gmra.mxu0 %v491
  %v2983 = vpop.f32.mrf.mxu0
  %v2984 = vadd.f32 %v2970, %v2983
  %v2985 = vpop.f32.mrf.mxu0
  %v2986 = vadd.f32 %v2972, %v2985
  %2987 = vdwg.mxu0
  %2988 = vmatpush.bf16.msra.mxu0 %v2064
  %2989 = vmatpush.bf16.msra.mxu0 %v2060
  %2990 = vmatpush.bf16.msra.mxu0 %v2056
  %2991 = vmatpush.bf16.msra.mxu0 %v2052
  %2992 = vmatpush.bf16.msra.mxu0 %v2048
  %2993 = vmatpush.bf16.msra.mxu0 %v2044
  %2994 = vmatpush.bf16.msra.mxu0 %v2040
  %2995 = vmatpush.bf16.msra.mxu0 %v2036
  %2996 = vmatmul.bf16.gmra.mxu0 %v492
  %v2997 = vpop.f32.mrf.mxu0
  %v2998 = vadd.f32 %v2984, %v2997
  %v2999 = vpop.f32.mrf.mxu0
  %v3000 = vadd.f32 %v2986, %v2999
  %3001 = vdwg.mxu0
  %3002 = vmatpush.bf16.msra.mxu0 0
  %3003 = vmatpush.bf16.msra.mxu0 0
  %3004 = vmatpush.bf16.msra.mxu0 0
  %3005 = vmatpush.bf16.msra.mxu0 0
  %3006 = vmatpush.bf16.msra.mxu0 0
  %3007 = vmatpush.bf16.msra.mxu0 0
  %3008 = vmatpush.bf16.msra.mxu0 %v2072
  %3009 = vmatpush.bf16.msra.mxu0 %v2068
  %3010 = vmatmul.bf16.gmra.mxu0 %v2468
  %v3011 = vpop.f32.mrf.mxu0
  %v3012 = vadd.f32 %v2998, %v3011
  %v3013 = vpop.f32.mrf.mxu0
  %v3014 = vadd.f32 %v3000, %v3013
  %3015 = vdwg.mxu0
  %3016 = vmatpush.bf16.msra.mxu0 %v1713
  %3017 = vmatpush.bf16.msra.mxu0 %v1709
  %3018 = vmatpush.bf16.msra.mxu0 %v1705
  %3019 = vmatpush.bf16.msra.mxu0 %v1701
  %3020 = vmatpush.bf16.msra.mxu0 %v1697
  %3021 = vmatpush.bf16.msra.mxu0 %v1693
  %3022 = vmatpush.bf16.msra.mxu0 %v1689
  %3023 = vmatpush.bf16.msra.mxu0 %v1685
  %3024 = vmatmul.bf16.gmra.mxu0 %v481
  %v3025 = vpop.f32.mrf.mxu0
  %v3026 = vadd.f32 %v436, %v3025
  %v3027 = vpop.f32.mrf.mxu0
  %v3028 = vadd.f32 %v436, %v3027
  %3029 = vdwg.mxu0
  %3030 = vmatpush.bf16.msra.mxu0 %v1745
  %3031 = vmatpush.bf16.msra.mxu0 %v1741
  %3032 = vmatpush.bf16.msra.mxu0 %v1737
  %3033 = vmatpush.bf16.msra.mxu0 %v1733
  %3034 = vmatpush.bf16.msra.mxu0 %v1729
  %3035 = vmatpush.bf16.msra.mxu0 %v1725
  %3036 = vmatpush.bf16.msra.mxu0 %v1721
  %3037 = vmatpush.bf16.msra.mxu0 %v1717
  %3038 = vmatmul.bf16.gmra.mxu0 %v482
  %v3039 = vpop.f32.mrf.mxu0
  %v3040 = vadd.f32 %v3026, %v3039
  %v3041 = vpop.f32.mrf.mxu0
  %v3042 = vadd.f32 %v3028, %v3041
  %3043 = vdwg.mxu0
  %3044 = vmatpush.bf16.msra.mxu0 %v1777
  %3045 = vmatpush.bf16.msra.mxu0 %v1773
  %3046 = vmatpush.bf16.msra.mxu0 %v1769
  %3047 = vmatpush.bf16.msra.mxu0 %v1765
  %3048 = vmatpush.bf16.msra.mxu0 %v1761
  %3049 = vmatpush.bf16.msra.mxu0 %v1757
  %3050 = vmatpush.bf16.msra.mxu0 %v1753
  %3051 = vmatpush.bf16.msra.mxu0 %v1749
  %3052 = vmatmul.bf16.gmra.mxu0 %v483
  %v3053 = vpop.f32.mrf.mxu0
  %v3054 = vadd.f32 %v3040, %v3053
  %v3055 = vpop.f32.mrf.mxu0
  %v3056 = vadd.f32 %v3042, %v3055
  %3057 = vdwg.mxu0
  %3058 = vmatpush.bf16.msra.mxu0 %v1809
  %3059 = vmatpush.bf16.msra.mxu0 %v1805
  %3060 = vmatpush.bf16.msra.mxu0 %v1801
  %3061 = vmatpush.bf16.msra.mxu0 %v1797
  %3062 = vmatpush.bf16.msra.mxu0 %v1793
  %3063 = vmatpush.bf16.msra.mxu0 %v1789
  %3064 = vmatpush.bf16.msra.mxu0 %v1785
  %3065 = vmatpush.bf16.msra.mxu0 %v1781
  %3066 = vmatmul.bf16.gmra.mxu0 %v484
  %v3067 = vpop.f32.mrf.mxu0
  %v3068 = vadd.f32 %v3054, %v3067
  %v3069 = vpop.f32.mrf.mxu0
  %v3070 = vadd.f32 %v3056, %v3069
  %3071 = vdwg.mxu0
  %3072 = vmatpush.bf16.msra.mxu0 %v1841
  %3073 = vmatpush.bf16.msra.mxu0 %v1837
  %3074 = vmatpush.bf16.msra.mxu0 %v1833
  %3075 = vmatpush.bf16.msra.mxu0 %v1829
  %3076 = vmatpush.bf16.msra.mxu0 %v1825
  %3077 = vmatpush.bf16.msra.mxu0 %v1821
  %3078 = vmatpush.bf16.msra.mxu0 %v1817
  %3079 = vmatpush.bf16.msra.mxu0 %v1813
  %3080 = vmatmul.bf16.gmra.mxu0 %v485
  %v3081 = vpop.f32.mrf.mxu0
  %v3082 = vadd.f32 %v3068, %v3081
  %v3083 = vpop.f32.mrf.mxu0
  %v3084 = vadd.f32 %v3070, %v3083
  %3085 = vdwg.mxu0
  %3086 = vmatpush.bf16.msra.mxu0 %v1873
  %3087 = vmatpush.bf16.msra.mxu0 %v1869
  %3088 = vmatpush.bf16.msra.mxu0 %v1865
  %3089 = vmatpush.bf16.msra.mxu0 %v1861
  %3090 = vmatpush.bf16.msra.mxu0 %v1857
  %3091 = vmatpush.bf16.msra.mxu0 %v1853
  %3092 = vmatpush.bf16.msra.mxu0 %v1849
  %3093 = vmatpush.bf16.msra.mxu0 %v1845
  %3094 = vmatmul.bf16.gmra.mxu0 %v486
  %v3095 = vpop.f32.mrf.mxu0
  %v3096 = vadd.f32 %v3082, %v3095
  %v3097 = vpop.f32.mrf.mxu0
  %v3098 = vadd.f32 %v3084, %v3097
  %3099 = vdwg.mxu0
  %3100 = vmatpush.bf16.msra.mxu0 %v1905
  %3101 = vmatpush.bf16.msra.mxu0 %v1901
  %3102 = vmatpush.bf16.msra.mxu0 %v1897
  %3103 = vmatpush.bf16.msra.mxu0 %v1893
  %3104 = vmatpush.bf16.msra.mxu0 %v1889
  %3105 = vmatpush.bf16.msra.mxu0 %v1885
  %3106 = vmatpush.bf16.msra.mxu0 %v1881
  %3107 = vmatpush.bf16.msra.mxu0 %v1877
  %3108 = vmatmul.bf16.gmra.mxu0 %v487
  %v3109 = vpop.f32.mrf.mxu0
  %v3110 = vadd.f32 %v3096, %v3109
  %v3111 = vpop.f32.mrf.mxu0
  %v3112 = vadd.f32 %v3098, %v3111
  %3113 = vdwg.mxu0
  %3114 = vmatpush.bf16.msra.mxu0 %v1937
  %3115 = vmatpush.bf16.msra.mxu0 %v1933
  %3116 = vmatpush.bf16.msra.mxu0 %v1929
  %3117 = vmatpush.bf16.msra.mxu0 %v1925
  %3118 = vmatpush.bf16.msra.mxu0 %v1921
  %3119 = vmatpush.bf16.msra.mxu0 %v1917
  %3120 = vmatpush.bf16.msra.mxu0 %v1913
  %3121 = vmatpush.bf16.msra.mxu0 %v1909
  %3122 = vmatmul.bf16.gmra.mxu0 %v488
  %v3123 = vpop.f32.mrf.mxu0
  %v3124 = vadd.f32 %v3110, %v3123
  %v3125 = vpop.f32.mrf.mxu0
  %v3126 = vadd.f32 %v3112, %v3125
  %3127 = vdwg.mxu0
  %3128 = vmatpush.bf16.msra.mxu0 %v1969
  %3129 = vmatpush.bf16.msra.mxu0 %v1965
  %3130 = vmatpush.bf16.msra.mxu0 %v1961
  %3131 = vmatpush.bf16.msra.mxu0 %v1957
  %3132 = vmatpush.bf16.msra.mxu0 %v1953
  %3133 = vmatpush.bf16.msra.mxu0 %v1949
  %3134 = vmatpush.bf16.msra.mxu0 %v1945
  %3135 = vmatpush.bf16.msra.mxu0 %v1941
  %3136 = vmatmul.bf16.gmra.mxu0 %v489
  %v3137 = vpop.f32.mrf.mxu0
  %v3138 = vadd.f32 %v3124, %v3137
  %v3139 = vpop.f32.mrf.mxu0
  %v3140 = vadd.f32 %v3126, %v3139
  %3141 = vdwg.mxu0
  %3142 = vmatpush.bf16.msra.mxu0 %v2001
  %3143 = vmatpush.bf16.msra.mxu0 %v1997
  %3144 = vmatpush.bf16.msra.mxu0 %v1993
  %3145 = vmatpush.bf16.msra.mxu0 %v1989
  %3146 = vmatpush.bf16.msra.mxu0 %v1985
  %3147 = vmatpush.bf16.msra.mxu0 %v1981
  %3148 = vmatpush.bf16.msra.mxu0 %v1977
  %3149 = vmatpush.bf16.msra.mxu0 %v1973
  %3150 = vmatmul.bf16.gmra.mxu0 %v490
  %v3151 = vpop.f32.mrf.mxu0
  %v3152 = vadd.f32 %v3138, %v3151
  %v3153 = vpop.f32.mrf.mxu0
  %v3154 = vadd.f32 %v3140, %v3153
  %3155 = vdwg.mxu0
  %3156 = vmatpush.bf16.msra.mxu0 %v2033
  %3157 = vmatpush.bf16.msra.mxu0 %v2029
  %3158 = vmatpush.bf16.msra.mxu0 %v2025
  %3159 = vmatpush.bf16.msra.mxu0 %v2021
  %3160 = vmatpush.bf16.msra.mxu0 %v2017
  %3161 = vmatpush.bf16.msra.mxu0 %v2013
  %3162 = vmatpush.bf16.msra.mxu0 %v2009
  %3163 = vmatpush.bf16.msra.mxu0 %v2005
  %3164 = vmatmul.bf16.gmra.mxu0 %v491
  %v3165 = vpop.f32.mrf.mxu0
  %v3166 = vadd.f32 %v3152, %v3165
  %v3167 = vpop.f32.mrf.mxu0
  %v3168 = vadd.f32 %v3154, %v3167
  %3169 = vdwg.mxu0
  %3170 = vmatpush.bf16.msra.mxu0 %v2065
  %3171 = vmatpush.bf16.msra.mxu0 %v2061
  %3172 = vmatpush.bf16.msra.mxu0 %v2057
  %3173 = vmatpush.bf16.msra.mxu0 %v2053
  %3174 = vmatpush.bf16.msra.mxu0 %v2049
  %3175 = vmatpush.bf16.msra.mxu0 %v2045
  %3176 = vmatpush.bf16.msra.mxu0 %v2041
  %3177 = vmatpush.bf16.msra.mxu0 %v2037
  %3178 = vmatmul.bf16.gmra.mxu0 %v492
  %v3179 = vpop.f32.mrf.mxu0
  %v3180 = vadd.f32 %v3166, %v3179
  %v3181 = vpop.f32.mrf.mxu0
  %v3182 = vadd.f32 %v3168, %v3181
  %3183 = vdwg.mxu0
  %3184 = vmatpush.bf16.msra.mxu0 0
  %3185 = vmatpush.bf16.msra.mxu0 0
  %3186 = vmatpush.bf16.msra.mxu0 0
  %3187 = vmatpush.bf16.msra.mxu0 0
  %3188 = vmatpush.bf16.msra.mxu0 0
  %3189 = vmatpush.bf16.msra.mxu0 0
  %3190 = vmatpush.bf16.msra.mxu0 %v2073
  %3191 = vmatpush.bf16.msra.mxu0 %v2069
  %3192 = vmatmul.bf16.gmra.mxu0 %v2468
  %v3193 = vpop.f32.mrf.mxu0
  %v3194 = vadd.f32 %v3180, %v3193
  %v3195 = vpop.f32.mrf.mxu0
  %v3196 = vadd.f32 %v3182, %v3195
  %3197 = vdwg.mxu0
  %v3198 = vmax.f32 %v2648, 0.0
  %v3199 = vmax.f32 %v2830, 0.0
  %v3200 = vmax.f32 %v3012, 0.0
  %v3201 = vmax.f32 %v3194, 0.0
  %v3202 = vmax.f32 %v2650, 0.0
  %v3203 = vmax.f32 %v2832, 0.0
  %v3204 = vmax.f32 %v3014, 0.0
  %v3205 = vmax.f32 %v3196, 0.0
  %v3206 = vld [vmem:[%s3] sm:$0xf]
  %v3208 = vperm.slane %v3206, 0
  %v3209 = vperm.slane %v3206, 1
  %v3210 = vperm.slane %v3206, 2
  %v3211 = vperm.slane %v3206, 3
  %v3216 = vmul.f32 %v3198, %v3208
  %v3217 = vmul.f32 %v3199, %v3209
  %v3218 = vmul.f32 %v3200, %v3210
  %v3219 = vmul.f32 %v3201, %v3211
  %v3220 = vmul.f32 %v3202, %v3208
  %v3221 = vmul.f32 %v3203, %v3209
  %v3222 = vmul.f32 %v3204, %v3210
  %v3223 = vmul.f32 %v3205, %v3211
  %v3224 = vadd.f32 %v3216, %v3217
  %v3225 = vadd.f32 %v3224, %v3218
  %v3226 = vadd.f32 %v3225, %v3219
  %3227 = vadd.xlane.f32.xlu0 %v3226
  %v3228 = vpop.xlane.xlu0 %3227
  %v3229 = vadd.f32 %v3220, %v3221
  %v3230 = vadd.f32 %v3229, %v3222
  %v3231 = vadd.f32 %v3230, %v3223
  %3232 = vadd.xlane.f32.xlu0 %v3231
  %v3233 = vpop.xlane.xlu0 %3232
  %v3234 = vld [vmem:[#allocation2] sm:$0x1]
  %v3236 = vperm.slane %v3234, 0
  %v3238 = vadd.f32 %v3228, %v3236
  %v3239 = vadd.f32 %v3233, %v3236
  %3240 = vst [vmem:[%s5] sm:$0xff] %v3198
  %3241 = vst [vmem:[%s5 + $0x8] sm:$0xff] %v3199
  %3242 = vst [vmem:[%s5 + $0x10] sm:$0xff] %v3200
  %3243 = vst [vmem:[%s5 + $0x18] sm:$0xff] %v3201
  %3244 = vst [vmem:[%s5 + $0x20] sm:$0xff] %v3202
  %3245 = vst [vmem:[%s5 + $0x28] sm:$0xff] %v3203
  %3246 = vst [vmem:[%s5 + $0x30] sm:$0xff] %v3204
  %3247 = vst [vmem:[%s5 + $0x38] sm:$0xff] %v3205
  %vm3248 = vcmask 7168
  %3249 = vst.msk [vmem:[%s6] sm:$0xff] %vm3248, %v3238
  %3250 = vst.msk [vmem:[%s6 + $0x8] sm:$0xff] %vm3248, %v3239
  // Predicated region
  $region22: #{cnn_base_forward.7} parent=0 // pred_check
    _
  $region23: #{cnn_base_forward.7} parent=0 // pred_check_branch
    %3252 = sbr.rel (0) target = $region25
  $region24: #{cnn_base_forward.7} parent=0 // pred_region
    _
  $region25: #{cnn_base_forward.7} parent=0 // pred_fallthru
    _
  // Predicated region
  $region26: #{cnn_base_forward.7} parent=0 // pred_check
    _
  $region27: #{cnn_base_forward.7} parent=0 // pred_check_branch
    %3254 = sbr.rel (0) target = $region29
  $region28: #{cnn_base_forward.7} parent=0 // pred_region
    _
  $region29: #{cnn_base_forward.7} parent=0 // pred_fallthru
    _
  // Predicated region
  $region30: #{cnn_base_forward.7} parent=0 // pred_check
    _
  $region31: #{cnn_base_forward.7} parent=0 // pred_check_branch
    %3256 = sbr.rel (0) target = $region33
  $region32: #{cnn_base_forward.7} parent=0 // pred_region
    _
  $region33: #{cnn_base_forward.7} parent=0 // pred_fallthru
    _
  // Predicated region
  $region34: #{cnn_base_forward.7} parent=0 // pred_check
    _
  $region35: #{cnn_base_forward.7} parent=0 // pred_check_branch
    %3258 = sbr.rel (0) target = $region37
  $region36: #{cnn_base_forward.7} parent=0 // pred_region
    _
  $region37: #{cnn_base_forward.7} parent=0 // pred_fallthru
    _

</llo_original>
